<compile_context>
chip_gen: v7x
topology: tpu7x:2x2x1
jax: 0.10.0
libtpu: 0.0.40
codegen_flags: <defaults>
</compile_context>

<pallas_src>
import math

import jax
import jax.numpy as jnp
from jax import lax
from jax.experimental import pallas as pl
from jax.experimental.pallas import tpu as pltpu

# ---------------- small deterministic config ----------------
EMB = 32          # cfg.MODEL.emb_size
N_HEAD = 4
HEAD_DIM = EMB // N_HEAD
N_LAYER = 2       # cfg.n_layer
L_IMG = 8         # number of video frames
L_TXT = 4         # text token length
B = 2
IMG_HW = 8        # synthetic "CLIP" image spatial size
TEMP = 0.05
NEG_INF = -1e9
LN_EPS = 1e-5

# rows of the packed (2 + 6*N_LAYER, EMB) vector slab
_V_EMB_G, _V_EMB_B = 0, 1
_V_PER_LAYER = 6
_V_LN1_G, _V_LN1_B, _V_LN2_G, _V_LN2_B, _V_B_O, _V_B_PROJ = range(6)


# ---------------- fused Pallas kernel ----------------
def _ln(v, g, b):
    # One-pass LayerNorm statistics: sum and sum-of-squares are independent
    # lane reductions (can overlap on the XLU); rsqrt goes to the EUP.
    inv_c = 1.0 / v.shape[-1]
    s1 = jnp.sum(v, axis=-1, keepdims=True)
    s2 = jnp.sum(v * v, axis=-1, keepdims=True)
    mu = s1 * inv_c
    var = s2 * inv_c - mu * mu
    return (v - mu) * lax.rsqrt(var + LN_EPS) * g + b


def _fused_gpt_kernel(x_ref, bias_ref, vec_ref, bqkv_ref, bfc_ref,
                      wqkv_ref, wo_ref, wfc_ref, wproj_ref, o_ref):
    # TODO(synk): the repo's `Block` class is not provided; a standard pre-LN
    # GPT-2 block (causal self-attention + additive padding mask, tanh-GELU MLP)
    # is assumed.
    #
    # x_ref    : (B*Ltot, C)       batch folded into the sublane (row) axis
    # bias_ref : (B*Ltot, B*Ltot)  block-diagonal additive attention bias
    #                              (causal+padding inside each batch block,
    #                               -1e9 across batches)
    # vec_ref  : (2+6*NL, C)       packed LN gains/biases + b_o / b_proj
    # bqkv_ref : (NL, 3C)          fused QKV bias (Q part pre-scaled)
    # bfc_ref  : (NL, 4C)
    # wqkv_ref : (NL, C, 3C)       fused QKV weight (Q columns pre-scaled)
    # wo_ref   : (NL, C, C)
    # wfc_ref  : (NL, C, 4C)
    # wproj_ref: (NL, 4C, C)
    C = EMB
    Dh = HEAD_DIM
    n = x_ref.shape[0]

    x = _ln(x_ref[...],
            vec_ref[_V_EMB_G:_V_EMB_G + 1, :],
            vec_ref[_V_EMB_B:_V_EMB_B + 1, :])             # emb_norm, (N, C)
    bias = bias_ref[...]                                   # (N, N)

    for li in range(N_LAYER):                              # static, unrolled
        base = 2 + li * _V_PER_LAYER
        wo_l = wo_ref[li]                                  # (C, C), loaded once

        # --- causal multi-head self-attention (pre-LN) ---
        h = _ln(x,
                vec_ref[base + _V_LN1_G:base + _V_LN1_G + 1, :],
                vec_ref[base + _V_LN1_B:base + _V_LN1_B + 1, :])
        # one lane-dense fused QKV matmul per layer: (N, 3C)
        qkv = jnp.dot(h, wqkv_ref[li],
                      preferred_element_type=jnp.float32) + bqkv_ref[li:li + 1, :]

        acc = jnp.zeros((n, C), jnp.float32)               # running W_O accumulator
        for hi in range(N_HEAD):                           # static, unrolled
            q = qkv[:, hi * Dh:(hi + 1) * Dh]
            k = qkv[:, C + hi * Dh:C + (hi + 1) * Dh]
            v = qkv[:, 2 * C + hi * Dh:2 * C + (hi + 1) * Dh]
            # scores already scaled (weights pre-scaled); trans_b avoids an
            # explicit K transpose through the XLU.
            s = pl.dot(q, k, trans_b=True) + bias
            s = s - jnp.max(s, axis=-1, keepdims=True)
            p = jnp.exp(s)
            p = p * pl.reciprocal(jnp.sum(p, axis=-1, keepdims=True),
                                  approx=True)
            oh = jnp.dot(p, v, preferred_element_type=jnp.float32)
            # fold head straight into the output projection (no concat)
            acc = acc + jnp.dot(oh, wo_l[hi * Dh:(hi + 1) * Dh, :],
                                preferred_element_type=jnp.float32)
        x = x + acc + vec_ref[base + _V_B_O:base + _V_B_O + 1, :]

        # --- MLP ---
        h2 = _ln(x,
                 vec_ref[base + _V_LN2_G:base + _V_LN2_G + 1, :],
                 vec_ref[base + _V_LN2_B:base + _V_LN2_B + 1, :])
        m = jnp.dot(h2, wfc_ref[li],
                    preferred_element_type=jnp.float32) + bfc_ref[li:li + 1, :]
        m = jax.nn.gelu(m, approximate=True)
        x = x + jnp.dot(m, wproj_ref[li],
                        preferred_element_type=jnp.float32) \
              + vec_ref[base + _V_B_PROJ:base + _V_B_PROJ + 1, :]

    o_ref[...] = x


def run_transformer(hidden0_flat, bias_bd, packed):
    n, C = hidden0_flat.shape
    operands = [hidden0_flat, bias_bd,
                packed['vec_c'], packed['b_qkv'], packed['b_fc'],
                packed['w_qkv'], packed['w_o'], packed['w_fc'], packed['w_proj']]
    vmem = pl.BlockSpec(memory_space=pltpu.MemorySpace.VMEM)
    # No grid, whole-array VMEM blocks -> single invocation, no double-buffering.
    return pl.pallas_call(
        _fused_gpt_kernel,
        out_shape=jax.ShapeDtypeStruct((n, C), jnp.float32),
        in_specs=[vmem] * len(operands),
        out_specs=vmem,
    )(*operands)


# ---------------- parameters ----------------
def init_params(key):
    ks = jax.random.split(key, 6 + N_LAYER)
    p = {
        'sos': 0.02 * jax.random.normal(ks[0], (EMB,), jnp.float32),
        'eos': 0.02 * jax.random.normal(ks[1], (EMB,), jnp.float32),
        'pad': 0.02 * jax.random.normal(ks[2], (EMB,), jnp.float32),
        'wpe': 0.02 * jax.random.normal(ks[3], (128, EMB), jnp.float32),
        'emb_norm_g': jnp.ones((EMB,), jnp.float32),
        'emb_norm_b': jnp.zeros((EMB,), jnp.float32),
        # TODO(synk): CLIP text/image encoders cannot be loaded in-script; they are
        # replaced by a deterministic token-embedding lookup and a linear image
        # projection producing the same output shapes.
        'txt_table': 0.02 * jax.random.normal(ks[4], (64, EMB), jnp.float32),
        'img_proj': 0.02 * jax.random.normal(ks[5], (3 * IMG_HW * IMG_HW, EMB),
                                             jnp.float32),
    }
    blocks = []
    for li in range(N_LAYER):
        bk = jax.random.split(ks[6 + li], 4)
        blocks.append(dict(
            ln1_g=jnp.ones((EMB,), jnp.float32), ln1_b=jnp.zeros((EMB,), jnp.float32),
            w_qkv=0.02 * jax.random.normal(bk[0], (EMB, 3 * EMB), jnp.float32),
            b_qkv=jnp.zeros((3 * EMB,), jnp.float32),
            w_o=0.02 * jax.random.normal(bk[1], (EMB, EMB), jnp.float32),
            b_o=jnp.zeros((EMB,), jnp.float32),
            ln2_g=jnp.ones((EMB,), jnp.float32), ln2_b=jnp.zeros((EMB,), jnp.float32),
            w_fc=0.02 * jax.random.normal(bk[2], (EMB, 4 * EMB), jnp.float32),
            b_fc=jnp.zeros((4 * EMB,), jnp.float32),
            w_proj=0.02 * jax.random.normal(bk[3], (4 * EMB, EMB), jnp.float32),
            b_proj=jnp.zeros((EMB,), jnp.float32),
        ))
    p['blocks'] = blocks
    return p


def pack_params(params):
    """Stack per-layer weights and pack all tiny vectors into a few VMEM slabs."""
    C = EMB
    blocks = params['blocks']
    scale = 1.0 / math.sqrt(HEAD_DIM)
    cat = lambda name: jnp.stack([bp[name] for bp in blocks], axis=0)

    w_qkv = cat('w_qkv')                                    # (NL, C, 3C)
    b_qkv = cat('b_qkv')                                    # (NL, 3C)
    # Pre-scale the Q part by 1/sqrt(HEAD_DIM): deletes the per-score multiply.
    q_scale = jnp.concatenate([jnp.full((C,), scale, jnp.float32),
                               jnp.ones((2 * C,), jnp.float32)])

    rows = [params['emb_norm_g'], params['emb_norm_b']]
    for bp in blocks:
        rows += [bp['ln1_g'], bp['ln1_b'], bp['ln2_g'], bp['ln2_b'],
                 bp['b_o'], bp['b_proj']]

    return dict(
        vec_c=jnp.stack(rows, axis=0),                      # (2 + 6*NL, C)
        b_qkv=b_qkv * q_scale,                              # (NL, 3C)
        b_fc=cat('b_fc'),                                   # (NL, 4C)
        w_qkv=w_qkv * q_scale,                              # (NL, C, 3C)
        w_o=cat('w_o'),                                     # (NL, C, C)
        w_fc=cat('w_fc'),                                   # (NL, C, 4C)
        w_proj=cat('w_proj'),                               # (NL, 4C, C)
    )


# ---------------- forward ----------------
def l2_normalize(x, axis=-1, eps=1e-12):
    n = jnp.sqrt(jnp.sum(x * x, axis=axis, keepdims=True))
    return x / jnp.maximum(n, eps)


def forward(params, text, imgs, padding_mask, valid_len):
    Bsz, Lt = text.shape
    _, Li = padding_mask.shape
    C = EMB

    # ---- extract_feat (non-quantize path), batch-major throughout ----
    text_embds = l2_normalize(params['txt_table'][text], -1)              # (B, Lt, C)
    img_flat = imgs.reshape(Bsz * Li, -1).astype(jnp.float32)
    img_embds = l2_normalize((img_flat @ params['img_proj']).reshape(Bsz, Li, C), -1)
    quantize_loss = 0.0

    # ---- pad / eos insertion ----
    pos = jnp.arange(Li)[None, :]                                         # (1, Li)
    is_pad = pos >= (valid_len[:, None] + 1)                              # (B, Li)
    eos_pos = jnp.minimum(valid_len + 1, Li - 1)                          # (B,)
    is_eos = pos == eos_pos[:, None]
    img_embds = jnp.where(is_pad[..., None], params['pad'], img_embds)
    img_embds = jnp.where(is_eos[..., None], params['eos'], img_embds)
    padding_mask = jnp.where(is_eos, 1.0, padding_mask.astype(jnp.float32))

    sos = jnp.broadcast_to(params['sos'][None, None, :], (Bsz, 1, C))
    img_seq = jnp.concatenate([sos, img_embds], axis=1)                   # (B, Li+1, C)
    pm_img = jnp.concatenate([jnp.ones((Bsz, 1), jnp.float32), padding_mask], axis=1)
    text_mask = (text != 0).astype(jnp.float32)                           # (B, Lt)
    pm_full = jnp.concatenate([text_mask, pm_img], axis=1)                # (B, Ltot)
    Ltot = Lt + Li + 1

    position = params['wpe'][:Ltot][None, :, :]                           # (1, Ltot, C)
    hidden0 = jnp.concatenate([text_embds, img_seq], axis=1) + position   # (B, Ltot, C)

    # ---- block-diagonal attention bias over the batch-folded rows ----
    N = Bsz * Ltot
    idx = jnp.arange(N)
    bidx = idx // Ltot                                                    # batch of row
    ppos = idx % Ltot                                                     # position in seq
    same_b = bidx[:, None] == bidx[None, :]
    causal_ok = ppos[None, :] <= ppos[:, None]
    add_mask = ((1.0 - pm_full) * -10000.0).reshape(N)                    # padding penalty
    bias_bd = jnp.where(same_b & causal_ok, add_mask[None, :],
                        jnp.float32(NEG_INF))                             # (N, N)

    # ---- fused emb_norm + transformer blocks: ONE pallas_call, no grid ----
    packed = pack_params(params)
    hidden_flat = run_transformer(hidden0.reshape(N, C), bias_bd, packed)  # (N, C)
    hidden = hidden_flat.reshape(Bsz, Ltot, C)

    # ---- contrastive loss (tiny; plain jit-fused JAX, no extra kernel launch) ----
    predictions = l2_normalize(hidden[:, Lt:Lt + Li], -1)                 # (B, Li, C)
    img_tgt = l2_normalize(img_embds, -1)                                 # (B, Li, C)
    pm = pm_full[:, Lt + 1:]                                              # (B, Li)

    # NOTE: flattening in (batch, time) order instead of PyTorch's (time, batch)
    # order is a consistent permutation of the sim matrix rows/columns with
    # matching diagonal labels, so loss and accuracy values are unchanged.
    Nf = Bsz * Li
    pred_flat = predictions.reshape(Nf, C)
    gt_flat = img_tgt.reshape(Nf, C)
    sim = jnp.einsum('nc,mc->nm', pred_flat, gt_flat) / TEMP              # (Nf, Nf)

    valid = pm.reshape(Nf) > 0
    logz = jax.nn.logsumexp(sim, axis=1)
    nll = -(jnp.diagonal(sim) - logz)
    n_valid = jnp.sum(valid.astype(jnp.float32))
    loss = jnp.sum(jnp.where(valid, nll, 0.0)) / n_valid
    loss = loss + 1.0 * quantize_loss

    masked_sim = jnp.where(valid[None, :], sim, -jnp.inf)
    argm = jnp.argmax(masked_sim, axis=1)
    correct = jnp.where(valid, (argm == jnp.arange(Nf)).astype(jnp.float32), 0.0)
    acc = jnp.sum(correct) / n_valid

    # is_train=True: kdlls are empty, retrieved_index = 0
    kdlls = [jnp.zeros((0,), jnp.float32) for _ in range(4)]
    retrieved_index = 0
    return loss, acc, kdlls, retrieved_index


if __name__ == "__main__":
    key = jax.random.PRNGKey(0)
    kp, ki = jax.random.split(key, 2)
    params = init_params(kp)

    text = jnp.array([[5, 7, 3, 0],
                      [2, 9, 4, 0]], dtype=jnp.int32)                     # (B, L_TXT)
    imgs = jax.random.normal(ki, (B, L_IMG, 3, IMG_HW, IMG_HW), jnp.float32)
    valid_len = jnp.array([5, 3], dtype=jnp.int32)
    frame_idx = jnp.arange(L_IMG)[None, :]
    padding_mask = (frame_idx <= valid_len[:, None]).astype(jnp.float32)  # (B, L_IMG)

    fwd = jax.jit(forward)
    loss, acc, kdlls, ridx = fwd(params, text, imgs, padding_mask, valid_len)
    jax.block_until_ready((loss, acc))
    print("KERNEL_OK")
</pallas_src>

<mosaic_0001>
module attributes {stable_mosaic.version = 11 : i64} {
  func.func @_fused_gpt_kernel(%arg0: memref<26x32xf32, #tpu.memory_space<vmem>>, %arg1: memref<26x26xf32, #tpu.memory_space<vmem>>, %arg2: memref<14x32xf32, #tpu.memory_space<vmem>>, %arg3: memref<2x96xf32, #tpu.memory_space<vmem>>, %arg4: memref<2x128xf32, #tpu.memory_space<vmem>>, %arg5: memref<2x32x96xf32, #tpu.memory_space<vmem>>, %arg6: memref<2x32x32xf32, #tpu.memory_space<vmem>>, %arg7: memref<2x32x128xf32, #tpu.memory_space<vmem>>, %arg8: memref<2x128x32xf32, #tpu.memory_space<vmem>>, %arg9: memref<26x32xf32, #tpu.memory_space<vmem>>) attributes {dimension_semantics = [], scalar_prefetch = 0 : i64, scratch_operands = 0 : i64, tpu.core_type = #tpu.core_type<tc>} {
    %c0 = arith.constant 0 : index
    %c0_0 = arith.constant 0 : index
    %0 = vector.load %arg0[%c0, %c0_0] : memref<26x32xf32, #tpu.memory_space<vmem>>, vector<26x32xf32>
    %c0_1 = arith.constant 0 : index
    %c0_2 = arith.constant 0 : index
    %1 = vector.load %arg2[%c0_1, %c0_2] : memref<14x32xf32, #tpu.memory_space<vmem>>, vector<1x32xf32>
    %c1 = arith.constant 1 : index
    %c0_3 = arith.constant 0 : index
    %2 = vector.load %arg2[%c1, %c0_3] : memref<14x32xf32, #tpu.memory_space<vmem>>, vector<1x32xf32>
    %cst = arith.constant dense<0.000000e+00> : vector<26xf32>
    %3 = vector.multi_reduction <add>, %0, %cst [1] : vector<26x32xf32> to vector<26xf32>
    %4 = vector.shape_cast %3 : vector<26xf32> to vector<26x1xf32>
    %5 = arith.mulf %0, %0 : vector<26x32xf32>
    %cst_4 = arith.constant dense<0.000000e+00> : vector<26xf32>
    %6 = vector.multi_reduction <add>, %5, %cst_4 [1] : vector<26x32xf32> to vector<26xf32>
    %7 = vector.shape_cast %6 : vector<26xf32> to vector<26x1xf32>
    %cst_5 = arith.constant 3.125000e-02 : f32
    %8 = vector.broadcast %cst_5 : f32 to vector<26x1xf32>
    %9 = arith.mulf %4, %8 : vector<26x1xf32>
    %cst_6 = arith.constant 3.125000e-02 : f32
    %10 = vector.broadcast %cst_6 : f32 to vector<26x1xf32>
    %11 = arith.mulf %7, %10 : vector<26x1xf32>
    %12 = arith.mulf %9, %9 : vector<26x1xf32>
    %13 = arith.subf %11, %12 : vector<26x1xf32>
    %14 = vector.broadcast %9 : vector<26x1xf32> to vector<26x32xf32>
    %15 = arith.subf %0, %14 : vector<26x32xf32>
    %cst_7 = arith.constant 9.99999974E-6 : f32
    %16 = vector.broadcast %cst_7 : f32 to vector<26x1xf32>
    %17 = arith.addf %13, %16 : vector<26x1xf32>
    %18 = math.rsqrt %17 : vector<26x1xf32>
    %19 = vector.broadcast %18 : vector<26x1xf32> to vector<26x32xf32>
    %20 = arith.mulf %15, %19 : vector<26x32xf32>
    %21 = vector.broadcast %1 : vector<1x32xf32> to vector<26x32xf32>
    %22 = arith.mulf %20, %21 : vector<26x32xf32>
    %23 = vector.broadcast %2 : vector<1x32xf32> to vector<26x32xf32>
    %24 = arith.addf %22, %23 : vector<26x32xf32>
    %c0_8 = arith.constant 0 : index
    %c0_9 = arith.constant 0 : index
    %25 = vector.load %arg1[%c0_8, %c0_9] : memref<26x26xf32, #tpu.memory_space<vmem>>, vector<26x26xf32>
    %c0_10 = arith.constant 0 : index
    %c0_11 = arith.constant 0 : index
    %c0_12 = arith.constant 0 : index
    %26 = vector.load %arg6[%c0_10, %c0_11, %c0_12] : memref<2x32x32xf32, #tpu.memory_space<vmem>>, vector<1x32x32xf32>
    %27 = vector.shape_cast %26 : vector<1x32x32xf32> to vector<32x32xf32>
    %c2 = arith.constant 2 : index
    %c0_13 = arith.constant 0 : index
    %28 = vector.load %arg2[%c2, %c0_13] : memref<14x32xf32, #tpu.memory_space<vmem>>, vector<1x32xf32>
    %c3 = arith.constant 3 : index
    %c0_14 = arith.constant 0 : index
    %29 = vector.load %arg2[%c3, %c0_14] : memref<14x32xf32, #tpu.memory_space<vmem>>, vector<1x32xf32>
    %cst_15 = arith.constant dense<0.000000e+00> : vector<26xf32>
    %30 = vector.multi_reduction <add>, %24, %cst_15 [1] : vector<26x32xf32> to vector<26xf32>
    %31 = vector.shape_cast %30 : vector<26xf32> to vector<26x1xf32>
    %32 = arith.mulf %24, %24 : vector<26x32xf32>
    %cst_16 = arith.constant dense<0.000000e+00> : vector<26xf32>
    %33 = vector.multi_reduction <add>, %32, %cst_16 [1] : vector<26x32xf32> to vector<26xf32>
    %34 = vector.shape_cast %33 : vector<26xf32> to vector<26x1xf32>
    %cst_17 = arith.constant 3.125000e-02 : f32
    %35 = vector.broadcast %cst_17 : f32 to vector<26x1xf32>
    %36 = arith.mulf %31, %35 : vector<26x1xf32>
    %cst_18 = arith.constant 3.125000e-02 : f32
    %37 = vector.broadcast %cst_18 : f32 to vector<26x1xf32>
    %38 = arith.mulf %34, %37 : vector<26x1xf32>
    %39 = arith.mulf %36, %36 : vector<26x1xf32>
    %40 = arith.subf %38, %39 : vector<26x1xf32>
    %41 = vector.broadcast %36 : vector<26x1xf32> to vector<26x32xf32>
    %42 = arith.subf %24, %41 : vector<26x32xf32>
    %cst_19 = arith.constant 9.99999974E-6 : f32
    %43 = vector.broadcast %cst_19 : f32 to vector<26x1xf32>
    %44 = arith.addf %40, %43 : vector<26x1xf32>
    %45 = math.rsqrt %44 : vector<26x1xf32>
    %46 = vector.broadcast %45 : vector<26x1xf32> to vector<26x32xf32>
    %47 = arith.mulf %42, %46 : vector<26x32xf32>
    %48 = vector.broadcast %28 : vector<1x32xf32> to vector<26x32xf32>
    %49 = arith.mulf %47, %48 : vector<26x32xf32>
    %50 = vector.broadcast %29 : vector<1x32xf32> to vector<26x32xf32>
    %51 = arith.addf %49, %50 : vector<26x32xf32>
    %c0_20 = arith.constant 0 : index
    %c0_21 = arith.constant 0 : index
    %c0_22 = arith.constant 0 : index
    %52 = vector.load %arg5[%c0_20, %c0_21, %c0_22] : memref<2x32x96xf32, #tpu.memory_space<vmem>>, vector<1x32x96xf32>
    %53 = vector.shape_cast %52 : vector<1x32x96xf32> to vector<32x96xf32>
    %cst_23 = arith.constant dense<0.000000e+00> : vector<26x96xf32>
    %54 = tpu.matmul %51, %53, %cst_23 {dimension_numbers = #tpu.dot_dimension_numbers<[1], [0], [0], [1], [0, 0, 1, 1], [], []>} : vector<26x32xf32>, vector<32x96xf32>, vector<26x96xf32> -> vector<26x96xf32>
    %c0_24 = arith.constant 0 : index
    %c0_25 = arith.constant 0 : index
    %55 = vector.load %arg3[%c0_24, %c0_25] : memref<2x96xf32, #tpu.memory_space<vmem>>, vector<1x96xf32>
    %56 = vector.broadcast %55 : vector<1x96xf32> to vector<26x96xf32>
    %57 = arith.addf %54, %56 : vector<26x96xf32>
    %cst_26 = arith.constant 0.000000e+00 : f32
    %58 = vector.broadcast %cst_26 : f32 to vector<26x32xf32>
    %59 = vector.extract_strided_slice %57 {offsets = [0, 0], sizes = [26, 8], strides = [1, 1]} : vector<26x96xf32> to vector<26x8xf32>
    %60 = vector.extract_strided_slice %57 {offsets = [0, 32], sizes = [26, 8], strides = [1, 1]} : vector<26x96xf32> to vector<26x8xf32>
    %61 = vector.extract_strided_slice %57 {offsets = [0, 64], sizes = [26, 8], strides = [1, 1]} : vector<26x96xf32> to vector<26x8xf32>
    %cst_27 = arith.constant dense<0.000000e+00> : vector<26x26xf32>
    %62 = tpu.matmul %59, %60, %cst_27 {dimension_numbers = #tpu.dot_dimension_numbers<[1], [1], [0], [0], [0, 0, 1, 0], [], []>} : vector<26x8xf32>, vector<26x8xf32>, vector<26x26xf32> -> vector<26x26xf32>
    %63 = arith.addf %62, %25 : vector<26x26xf32>
    %cst_28 = arith.constant dense<0xFF800000> : vector<26xf32>
    %64 = vector.multi_reduction <maximumf>, %63, %cst_28 [1] : vector<26x26xf32> to vector<26xf32>
    %65 = vector.shape_cast %64 : vector<26xf32> to vector<26x1xf32>
    %66 = vector.broadcast %65 : vector<26x1xf32> to vector<26x26xf32>
    %67 = arith.subf %63, %66 : vector<26x26xf32>
    %68 = math.exp %67 : vector<26x26xf32>
    %cst_29 = arith.constant dense<0.000000e+00> : vector<26xf32>
    %69 = vector.multi_reduction <add>, %68, %cst_29 [1] : vector<26x26xf32> to vector<26xf32>
    %70 = vector.shape_cast %69 : vector<26xf32> to vector<26x1xf32>
    %71 = tpu.reciprocal %70 {approx = true} : vector<26x1xf32> -> vector<26x1xf32>
    %72 = vector.broadcast %71 : vector<26x1xf32> to vector<26x26xf32>
    %73 = arith.mulf %68, %72 : vector<26x26xf32>
    %cst_30 = arith.constant dense<0.000000e+00> : vector<26x8xf32>
    %74 = tpu.matmul %73, %61, %cst_30 {dimension_numbers = #tpu.dot_dimension_numbers<[1], [0], [0], [1], [0, 0, 1, 1], [], []>} : vector<26x26xf32>, vector<26x8xf32>, vector<26x8xf32> -> vector<26x8xf32>
    %75 = vector.extract_strided_slice %27 {offsets = [0, 0], sizes = [8, 32], strides = [1, 1]} : vector<32x32xf32> to vector<8x32xf32>
    %cst_31 = arith.constant dense<0.000000e+00> : vector<26x32xf32>
    %76 = tpu.matmul %74, %75, %cst_31 {dimension_numbers = #tpu.dot_dimension_numbers<[1], [0], [0], [1], [0, 0, 1, 1], [], []>} : vector<26x8xf32>, vector<8x32xf32>, vector<26x32xf32> -> vector<26x32xf32>
    %77 = arith.addf %58, %76 : vector<26x32xf32>
    %78 = vector.extract_strided_slice %57 {offsets = [0, 8], sizes = [26, 8], strides = [1, 1]} : vector<26x96xf32> to vector<26x8xf32>
    %79 = vector.extract_strided_slice %57 {offsets = [0, 40], sizes = [26, 8], strides = [1, 1]} : vector<26x96xf32> to vector<26x8xf32>
    %80 = vector.extract_strided_slice %57 {offsets = [0, 72], sizes = [26, 8], strides = [1, 1]} : vector<26x96xf32> to vector<26x8xf32>
    %cst_32 = arith.constant dense<0.000000e+00> : vector<26x26xf32>
    %81 = tpu.matmul %78, %79, %cst_32 {dimension_numbers = #tpu.dot_dimension_numbers<[1], [1], [0], [0], [0, 0, 1, 0], [], []>} : vector<26x8xf32>, vector<26x8xf32>, vector<26x26xf32> -> vector<26x26xf32>
    %82 = arith.addf %81, %25 : vector<26x26xf32>
    %cst_33 = arith.constant dense<0xFF800000> : vector<26xf32>
    %83 = vector.multi_reduction <maximumf>, %82, %cst_33 [1] : vector<26x26xf32> to vector<26xf32>
    %84 = vector.shape_cast %83 : vector<26xf32> to vector<26x1xf32>
    %85 = vector.broadcast %84 : vector<26x1xf32> to vector<26x26xf32>
    %86 = arith.subf %82, %85 : vector<26x26xf32>
    %87 = math.exp %86 : vector<26x26xf32>
    %cst_34 = arith.constant dense<0.000000e+00> : vector<26xf32>
    %88 = vector.multi_reduction <add>, %87, %cst_34 [1] : vector<26x26xf32> to vector<26xf32>
    %89 = vector.shape_cast %88 : vector<26xf32> to vector<26x1xf32>
    %90 = tpu.reciprocal %89 {approx = true} : vector<26x1xf32> -> vector<26x1xf32>
    %91 = vector.broadcast %90 : vector<26x1xf32> to vector<26x26xf32>
    %92 = arith.mulf %87, %91 : vector<26x26xf32>
    %cst_35 = arith.constant dense<0.000000e+00> : vector<26x8xf32>
    %93 = tpu.matmul %92, %80, %cst_35 {dimension_numbers = #tpu.dot_dimension_numbers<[1], [0], [0], [1], [0, 0, 1, 1], [], []>} : vector<26x26xf32>, vector<26x8xf32>, vector<26x8xf32> -> vector<26x8xf32>
    %94 = vector.extract_strided_slice %27 {offsets = [8, 0], sizes = [8, 32], strides = [1, 1]} : vector<32x32xf32> to vector<8x32xf32>
    %cst_36 = arith.constant dense<0.000000e+00> : vector<26x32xf32>
    %95 = tpu.matmul %93, %94, %cst_36 {dimension_numbers = #tpu.dot_dimension_numbers<[1], [0], [0], [1], [0, 0, 1, 1], [], []>} : vector<26x8xf32>, vector<8x32xf32>, vector<26x32xf32> -> vector<26x32xf32>
    %96 = arith.addf %77, %95 : vector<26x32xf32>
    %97 = vector.extract_strided_slice %57 {offsets = [0, 16], sizes = [26, 8], strides = [1, 1]} : vector<26x96xf32> to vector<26x8xf32>
    %98 = vector.extract_strided_slice %57 {offsets = [0, 48], sizes = [26, 8], strides = [1, 1]} : vector<26x96xf32> to vector<26x8xf32>
    %99 = vector.extract_strided_slice %57 {offsets = [0, 80], sizes = [26, 8], strides = [1, 1]} : vector<26x96xf32> to vector<26x8xf32>
    %cst_37 = arith.constant dense<0.000000e+00> : vector<26x26xf32>
    %100 = tpu.matmul %97, %98, %cst_37 {dimension_numbers = #tpu.dot_dimension_numbers<[1], [1], [0], [0], [0, 0, 1, 0], [], []>} : vector<26x8xf32>, vector<26x8xf32>, vector<26x26xf32> -> vector<26x26xf32>
    %101 = arith.addf %100, %25 : vector<26x26xf32>
    %cst_38 = arith.constant dense<0xFF800000> : vector<26xf32>
    %102 = vector.multi_reduction <maximumf>, %101, %cst_38 [1] : vector<26x26xf32> to vector<26xf32>
    %103 = vector.shape_cast %102 : vector<26xf32> to vector<26x1xf32>
    %104 = vector.broadcast %103 : vector<26x1xf32> to vector<26x26xf32>
    %105 = arith.subf %101, %104 : vector<26x26xf32>
    %106 = math.exp %105 : vector<26x26xf32>
    %cst_39 = arith.constant dense<0.000000e+00> : vector<26xf32>
    %107 = vector.multi_reduction <add>, %106, %cst_39 [1] : vector<26x26xf32> to vector<26xf32>
    %108 = vector.shape_cast %107 : vector<26xf32> to vector<26x1xf32>
    %109 = tpu.reciprocal %108 {approx = true} : vector<26x1xf32> -> vector<26x1xf32>
    %110 = vector.broadcast %109 : vector<26x1xf32> to vector<26x26xf32>
    %111 = arith.mulf %106, %110 : vector<26x26xf32>
    %cst_40 = arith.constant dense<0.000000e+00> : vector<26x8xf32>
    %112 = tpu.matmul %111, %99, %cst_40 {dimension_numbers = #tpu.dot_dimension_numbers<[1], [0], [0], [1], [0, 0, 1, 1], [], []>} : vector<26x26xf32>, vector<26x8xf32>, vector<26x8xf32> -> vector<26x8xf32>
    %113 = vector.extract_strided_slice %27 {offsets = [16, 0], sizes = [8, 32], strides = [1, 1]} : vector<32x32xf32> to vector<8x32xf32>
    %cst_41 = arith.constant dense<0.000000e+00> : vector<26x32xf32>
    %114 = tpu.matmul %112, %113, %cst_41 {dimension_numbers = #tpu.dot_dimension_numbers<[1], [0], [0], [1], [0, 0, 1, 1], [], []>} : vector<26x8xf32>, vector<8x32xf32>, vector<26x32xf32> -> vector<26x32xf32>
    %115 = arith.addf %96, %114 : vector<26x32xf32>
    %116 = vector.extract_strided_slice %57 {offsets = [0, 24], sizes = [26, 8], strides = [1, 1]} : vector<26x96xf32> to vector<26x8xf32>
    %117 = vector.extract_strided_slice %57 {offsets = [0, 56], sizes = [26, 8], strides = [1, 1]} : vector<26x96xf32> to vector<26x8xf32>
    %118 = vector.extract_strided_slice %57 {offsets = [0, 88], sizes = [26, 8], strides = [1, 1]} : vector<26x96xf32> to vector<26x8xf32>
    %cst_42 = arith.constant dense<0.000000e+00> : vector<26x26xf32>
    %119 = tpu.matmul %116, %117, %cst_42 {dimension_numbers = #tpu.dot_dimension_numbers<[1], [1], [0], [0], [0, 0, 1, 0], [], []>} : vector<26x8xf32>, vector<26x8xf32>, vector<26x26xf32> -> vector<26x26xf32>
    %120 = arith.addf %119, %25 : vector<26x26xf32>
    %cst_43 = arith.constant dense<0xFF800000> : vector<26xf32>
    %121 = vector.multi_reduction <maximumf>, %120, %cst_43 [1] : vector<26x26xf32> to vector<26xf32>
    %122 = vector.shape_cast %121 : vector<26xf32> to vector<26x1xf32>
    %123 = vector.broadcast %122 : vector<26x1xf32> to vector<26x26xf32>
    %124 = arith.subf %120, %123 : vector<26x26xf32>
    %125 = math.exp %124 : vector<26x26xf32>
    %cst_44 = arith.constant dense<0.000000e+00> : vector<26xf32>
    %126 = vector.multi_reduction <add>, %125, %cst_44 [1] : vector<26x26xf32> to vector<26xf32>
    %127 = vector.shape_cast %126 : vector<26xf32> to vector<26x1xf32>
    %128 = tpu.reciprocal %127 {approx = true} : vector<26x1xf32> -> vector<26x1xf32>
    %129 = vector.broadcast %128 : vector<26x1xf32> to vector<26x26xf32>
    %130 = arith.mulf %125, %129 : vector<26x26xf32>
    %cst_45 = arith.constant dense<0.000000e+00> : vector<26x8xf32>
    %131 = tpu.matmul %130, %118, %cst_45 {dimension_numbers = #tpu.dot_dimension_numbers<[1], [0], [0], [1], [0, 0, 1, 1], [], []>} : vector<26x26xf32>, vector<26x8xf32>, vector<26x8xf32> -> vector<26x8xf32>
    %132 = vector.extract_strided_slice %27 {offsets = [24, 0], sizes = [8, 32], strides = [1, 1]} : vector<32x32xf32> to vector<8x32xf32>
    %cst_46 = arith.constant dense<0.000000e+00> : vector<26x32xf32>
    %133 = tpu.matmul %131, %132, %cst_46 {dimension_numbers = #tpu.dot_dimension_numbers<[1], [0], [0], [1], [0, 0, 1, 1], [], []>} : vector<26x8xf32>, vector<8x32xf32>, vector<26x32xf32> -> vector<26x32xf32>
    %134 = arith.addf %115, %133 : vector<26x32xf32>
    %135 = arith.addf %24, %134 : vector<26x32xf32>
    %c6 = arith.constant 6 : index
    %c0_47 = arith.constant 0 : index
    %136 = vector.load %arg2[%c6, %c0_47] : memref<14x32xf32, #tpu.memory_space<vmem>>, vector<1x32xf32>
    %137 = vector.broadcast %136 : vector<1x32xf32> to vector<26x32xf32>
    %138 = arith.addf %135, %137 : vector<26x32xf32>
    %c4 = arith.constant 4 : index
    %c0_48 = arith.constant 0 : index
    %139 = vector.load %arg2[%c4, %c0_48] : memref<14x32xf32, #tpu.memory_space<vmem>>, vector<1x32xf32>
    %c5 = arith.constant 5 : index
    %c0_49 = arith.constant 0 : index
    %140 = vector.load %arg2[%c5, %c0_49] : memref<14x32xf32, #tpu.memory_space<vmem>>, vector<1x32xf32>
    %cst_50 = arith.constant dense<0.000000e+00> : vector<26xf32>
    %141 = vector.multi_reduction <add>, %138, %cst_50 [1] : vector<26x32xf32> to vector<26xf32>
    %142 = vector.shape_cast %141 : vector<26xf32> to vector<26x1xf32>
    %143 = arith.mulf %138, %138 : vector<26x32xf32>
    %cst_51 = arith.constant dense<0.000000e+00> : vector<26xf32>
    %144 = vector.multi_reduction <add>, %143, %cst_51 [1] : vector<26x32xf32> to vector<26xf32>
    %145 = vector.shape_cast %144 : vector<26xf32> to vector<26x1xf32>
    %cst_52 = arith.constant 3.125000e-02 : f32
    %146 = vector.broadcast %cst_52 : f32 to vector<26x1xf32>
    %147 = arith.mulf %142, %146 : vector<26x1xf32>
    %cst_53 = arith.constant 3.125000e-02 : f32
    %148 = vector.broadcast %cst_53 : f32 to vector<26x1xf32>
    %149 = arith.mulf %145, %148 : vector<26x1xf32>
    %150 = arith.mulf %147, %147 : vector<26x1xf32>
    %151 = arith.subf %149, %150 : vector<26x1xf32>
    %152 = vector.broadcast %147 : vector<26x1xf32> to vector<26x32xf32>
    %153 = arith.subf %138, %152 : vector<26x32xf32>
    %cst_54 = arith.constant 9.99999974E-6 : f32
    %154 = vector.broadcast %cst_54 : f32 to vector<26x1xf32>
    %155 = arith.addf %151, %154 : vector<26x1xf32>
    %156 = math.rsqrt %155 : vector<26x1xf32>
    %157 = vector.broadcast %156 : vector<26x1xf32> to vector<26x32xf32>
    %158 = arith.mulf %153, %157 : vector<26x32xf32>
    %159 = vector.broadcast %139 : vector<1x32xf32> to vector<26x32xf32>
    %160 = arith.mulf %158, %159 : vector<26x32xf32>
    %161 = vector.broadcast %140 : vector<1x32xf32> to vector<26x32xf32>
    %162 = arith.addf %160, %161 : vector<26x32xf32>
    %c0_55 = arith.constant 0 : index
    %c0_56 = arith.constant 0 : index
    %c0_57 = arith.constant 0 : index
    %163 = vector.load %arg7[%c0_55, %c0_56, %c0_57] : memref<2x32x128xf32, #tpu.memory_space<vmem>>, vector<1x32x128xf32>
    %164 = vector.shape_cast %163 : vector<1x32x128xf32> to vector<32x128xf32>
    %cst_58 = arith.constant dense<0.000000e+00> : vector<26x128xf32>
    %165 = tpu.matmul %162, %164, %cst_58 {dimension_numbers = #tpu.dot_dimension_numbers<[1], [0], [0], [1], [0, 0, 1, 1], [], []>} : vector<26x32xf32>, vector<32x128xf32>, vector<26x128xf32> -> vector<26x128xf32>
    %c0_59 = arith.constant 0 : index
    %c0_60 = arith.constant 0 : index
    %166 = vector.load %arg4[%c0_59, %c0_60] : memref<2x128xf32, #tpu.memory_space<vmem>>, vector<1x128xf32>
    %167 = vector.broadcast %166 : vector<1x128xf32> to vector<26x128xf32>
    %168 = arith.addf %165, %167 : vector<26x128xf32>
    %169 = arith.mulf %168, %168 : vector<26x128xf32>
    %170 = arith.mulf %168, %169 : vector<26x128xf32>
    %cst_61 = arith.constant 4.471500e-02 : f32
    %171 = vector.broadcast %cst_61 : f32 to vector<26x128xf32>
    %172 = arith.mulf %171, %170 : vector<26x128xf32>
    %173 = arith.addf %168, %172 : vector<26x128xf32>
    %cst_62 = arith.constant 0.797884583 : f32
    %174 = vector.broadcast %cst_62 : f32 to vector<26x128xf32>
    %175 = arith.mulf %174, %173 : vector<26x128xf32>
    %176 = math.tanh %175 : vector<26x128xf32>
    %cst_63 = arith.constant 1.000000e+00 : f32
    %177 = vector.broadcast %cst_63 : f32 to vector<26x128xf32>
    %178 = arith.addf %177, %176 : vector<26x128xf32>
    %cst_64 = arith.constant 5.000000e-01 : f32
    %179 = vector.broadcast %cst_64 : f32 to vector<26x128xf32>
    %180 = arith.mulf %179, %178 : vector<26x128xf32>
    %181 = arith.mulf %168, %180 : vector<26x128xf32>
    %c0_65 = arith.constant 0 : index
    %c0_66 = arith.constant 0 : index
    %c0_67 = arith.constant 0 : index
    %182 = vector.load %arg8[%c0_65, %c0_66, %c0_67] : memref<2x128x32xf32, #tpu.memory_space<vmem>>, vector<1x128x32xf32>
    %183 = vector.shape_cast %182 : vector<1x128x32xf32> to vector<128x32xf32>
    %cst_68 = arith.constant dense<0.000000e+00> : vector<26x32xf32>
    %184 = tpu.matmul %181, %183, %cst_68 {dimension_numbers = #tpu.dot_dimension_numbers<[1], [0], [0], [1], [0, 0, 1, 1], [], []>} : vector<26x128xf32>, vector<128x32xf32>, vector<26x32xf32> -> vector<26x32xf32>
    %185 = arith.addf %138, %184 : vector<26x32xf32>
    %c7 = arith.constant 7 : index
    %c0_69 = arith.constant 0 : index
    %186 = vector.load %arg2[%c7, %c0_69] : memref<14x32xf32, #tpu.memory_space<vmem>>, vector<1x32xf32>
    %187 = vector.broadcast %186 : vector<1x32xf32> to vector<26x32xf32>
    %188 = arith.addf %185, %187 : vector<26x32xf32>
    %c1_70 = arith.constant 1 : index
    %c0_71 = arith.constant 0 : index
    %c0_72 = arith.constant 0 : index
    %189 = vector.load %arg6[%c1_70, %c0_71, %c0_72] : memref<2x32x32xf32, #tpu.memory_space<vmem>>, vector<1x32x32xf32>
    %190 = vector.shape_cast %189 : vector<1x32x32xf32> to vector<32x32xf32>
    %c8 = arith.constant 8 : index
    %c0_73 = arith.constant 0 : index
    %191 = vector.load %arg2[%c8, %c0_73] : memref<14x32xf32, #tpu.memory_space<vmem>>, vector<1x32xf32>
    %c9 = arith.constant 9 : index
    %c0_74 = arith.constant 0 : index
    %192 = vector.load %arg2[%c9, %c0_74] : memref<14x32xf32, #tpu.memory_space<vmem>>, vector<1x32xf32>
    %cst_75 = arith.constant dense<0.000000e+00> : vector<26xf32>
    %193 = vector.multi_reduction <add>, %188, %cst_75 [1] : vector<26x32xf32> to vector<26xf32>
    %194 = vector.shape_cast %193 : vector<26xf32> to vector<26x1xf32>
    %195 = arith.mulf %188, %188 : vector<26x32xf32>
    %cst_76 = arith.constant dense<0.000000e+00> : vector<26xf32>
    %196 = vector.multi_reduction <add>, %195, %cst_76 [1] : vector<26x32xf32> to vector<26xf32>
    %197 = vector.shape_cast %196 : vector<26xf32> to vector<26x1xf32>
    %cst_77 = arith.constant 3.125000e-02 : f32
    %198 = vector.broadcast %cst_77 : f32 to vector<26x1xf32>
    %199 = arith.mulf %194, %198 : vector<26x1xf32>
    %cst_78 = arith.constant 3.125000e-02 : f32
    %200 = vector.broadcast %cst_78 : f32 to vector<26x1xf32>
    %201 = arith.mulf %197, %200 : vector<26x1xf32>
    %202 = arith.mulf %199, %199 : vector<26x1xf32>
    %203 = arith.subf %201, %202 : vector<26x1xf32>
    %204 = vector.broadcast %199 : vector<26x1xf32> to vector<26x32xf32>
    %205 = arith.subf %188, %204 : vector<26x32xf32>
    %cst_79 = arith.constant 9.99999974E-6 : f32
    %206 = vector.broadcast %cst_79 : f32 to vector<26x1xf32>
    %207 = arith.addf %203, %206 : vector<26x1xf32>
    %208 = math.rsqrt %207 : vector<26x1xf32>
    %209 = vector.broadcast %208 : vector<26x1xf32> to vector<26x32xf32>
    %210 = arith.mulf %205, %209 : vector<26x32xf32>
    %211 = vector.broadcast %191 : vector<1x32xf32> to vector<26x32xf32>
    %212 = arith.mulf %210, %211 : vector<26x32xf32>
    %213 = vector.broadcast %192 : vector<1x32xf32> to vector<26x32xf32>
    %214 = arith.addf %212, %213 : vector<26x32xf32>
    %c1_80 = arith.constant 1 : index
    %c0_81 = arith.constant 0 : index
    %c0_82 = arith.constant 0 : index
    %215 = vector.load %arg5[%c1_80, %c0_81, %c0_82] : memref<2x32x96xf32, #tpu.memory_space<vmem>>, vector<1x32x96xf32>
    %216 = vector.shape_cast %215 : vector<1x32x96xf32> to vector<32x96xf32>
    %cst_83 = arith.constant dense<0.000000e+00> : vector<26x96xf32>
    %217 = tpu.matmul %214, %216, %cst_83 {dimension_numbers = #tpu.dot_dimension_numbers<[1], [0], [0], [1], [0, 0, 1, 1], [], []>} : vector<26x32xf32>, vector<32x96xf32>, vector<26x96xf32> -> vector<26x96xf32>
    %c1_84 = arith.constant 1 : index
    %c0_85 = arith.constant 0 : index
    %218 = vector.load %arg3[%c1_84, %c0_85] : memref<2x96xf32, #tpu.memory_space<vmem>>, vector<1x96xf32>
    %219 = vector.broadcast %218 : vector<1x96xf32> to vector<26x96xf32>
    %220 = arith.addf %217, %219 : vector<26x96xf32>
    %cst_86 = arith.constant 0.000000e+00 : f32
    %221 = vector.broadcast %cst_86 : f32 to vector<26x32xf32>
    %222 = vector.extract_strided_slice %220 {offsets = [0, 0], sizes = [26, 8], strides = [1, 1]} : vector<26x96xf32> to vector<26x8xf32>
    %223 = vector.extract_strided_slice %220 {offsets = [0, 32], sizes = [26, 8], strides = [1, 1]} : vector<26x96xf32> to vector<26x8xf32>
    %224 = vector.extract_strided_slice %220 {offsets = [0, 64], sizes = [26, 8], strides = [1, 1]} : vector<26x96xf32> to vector<26x8xf32>
    %cst_87 = arith.constant dense<0.000000e+00> : vector<26x26xf32>
    %225 = tpu.matmul %222, %223, %cst_87 {dimension_numbers = #tpu.dot_dimension_numbers<[1], [1], [0], [0], [0, 0, 1, 0], [], []>} : vector<26x8xf32>, vector<26x8xf32>, vector<26x26xf32> -> vector<26x26xf32>
    %226 = arith.addf %225, %25 : vector<26x26xf32>
    %cst_88 = arith.constant dense<0xFF800000> : vector<26xf32>
    %227 = vector.multi_reduction <maximumf>, %226, %cst_88 [1] : vector<26x26xf32> to vector<26xf32>
    %228 = vector.shape_cast %227 : vector<26xf32> to vector<26x1xf32>
    %229 = vector.broadcast %228 : vector<26x1xf32> to vector<26x26xf32>
    %230 = arith.subf %226, %229 : vector<26x26xf32>
    %231 = math.exp %230 : vector<26x26xf32>
    %cst_89 = arith.constant dense<0.000000e+00> : vector<26xf32>
    %232 = vector.multi_reduction <add>, %231, %cst_89 [1] : vector<26x26xf32> to vector<26xf32>
    %233 = vector.shape_cast %232 : vector<26xf32> to vector<26x1xf32>
    %234 = tpu.reciprocal %233 {approx = true} : vector<26x1xf32> -> vector<26x1xf32>
    %235 = vector.broadcast %234 : vector<26x1xf32> to vector<26x26xf32>
    %236 = arith.mulf %231, %235 : vector<26x26xf32>
    %cst_90 = arith.constant dense<0.000000e+00> : vector<26x8xf32>
    %237 = tpu.matmul %236, %224, %cst_90 {dimension_numbers = #tpu.dot_dimension_numbers<[1], [0], [0], [1], [0, 0, 1, 1], [], []>} : vector<26x26xf32>, vector<26x8xf32>, vector<26x8xf32> -> vector<26x8xf32>
    %238 = vector.extract_strided_slice %190 {offsets = [0, 0], sizes = [8, 32], strides = [1, 1]} : vector<32x32xf32> to vector<8x32xf32>
    %cst_91 = arith.constant dense<0.000000e+00> : vector<26x32xf32>
    %239 = tpu.matmul %237, %238, %cst_91 {dimension_numbers = #tpu.dot_dimension_numbers<[1], [0], [0], [1], [0, 0, 1, 1], [], []>} : vector<26x8xf32>, vector<8x32xf32>, vector<26x32xf32> -> vector<26x32xf32>
    %240 = arith.addf %221, %239 : vector<26x32xf32>
    %241 = vector.extract_strided_slice %220 {offsets = [0, 8], sizes = [26, 8], strides = [1, 1]} : vector<26x96xf32> to vector<26x8xf32>
    %242 = vector.extract_strided_slice %220 {offsets = [0, 40], sizes = [26, 8], strides = [1, 1]} : vector<26x96xf32> to vector<26x8xf32>
    %243 = vector.extract_strided_slice %220 {offsets = [0, 72], sizes = [26, 8], strides = [1, 1]} : vector<26x96xf32> to vector<26x8xf32>
    %cst_92 = arith.constant dense<0.000000e+00> : vector<26x26xf32>
    %244 = tpu.matmul %241, %242, %cst_92 {dimension_numbers = #tpu.dot_dimension_numbers<[1], [1], [0], [0], [0, 0, 1, 0], [], []>} : vector<26x8xf32>, vector<26x8xf32>, vector<26x26xf32> -> vector<26x26xf32>
    %245 = arith.addf %244, %25 : vector<26x26xf32>
    %cst_93 = arith.constant dense<0xFF800000> : vector<26xf32>
    %246 = vector.multi_reduction <maximumf>, %245, %cst_93 [1] : vector<26x26xf32> to vector<26xf32>
    %247 = vector.shape_cast %246 : vector<26xf32> to vector<26x1xf32>
    %248 = vector.broadcast %247 : vector<26x1xf32> to vector<26x26xf32>
    %249 = arith.subf %245, %248 : vector<26x26xf32>
    %250 = math.exp %249 : vector<26x26xf32>
    %cst_94 = arith.constant dense<0.000000e+00> : vector<26xf32>
    %251 = vector.multi_reduction <add>, %250, %cst_94 [1] : vector<26x26xf32> to vector<26xf32>
    %252 = vector.shape_cast %251 : vector<26xf32> to vector<26x1xf32>
    %253 = tpu.reciprocal %252 {approx = true} : vector<26x1xf32> -> vector<26x1xf32>
    %254 = vector.broadcast %253 : vector<26x1xf32> to vector<26x26xf32>
    %255 = arith.mulf %250, %254 : vector<26x26xf32>
    %cst_95 = arith.constant dense<0.000000e+00> : vector<26x8xf32>
    %256 = tpu.matmul %255, %243, %cst_95 {dimension_numbers = #tpu.dot_dimension_numbers<[1], [0], [0], [1], [0, 0, 1, 1], [], []>} : vector<26x26xf32>, vector<26x8xf32>, vector<26x8xf32> -> vector<26x8xf32>
    %257 = vector.extract_strided_slice %190 {offsets = [8, 0], sizes = [8, 32], strides = [1, 1]} : vector<32x32xf32> to vector<8x32xf32>
    %cst_96 = arith.constant dense<0.000000e+00> : vector<26x32xf32>
    %258 = tpu.matmul %256, %257, %cst_96 {dimension_numbers = #tpu.dot_dimension_numbers<[1], [0], [0], [1], [0, 0, 1, 1], [], []>} : vector<26x8xf32>, vector<8x32xf32>, vector<26x32xf32> -> vector<26x32xf32>
    %259 = arith.addf %240, %258 : vector<26x32xf32>
    %260 = vector.extract_strided_slice %220 {offsets = [0, 16], sizes = [26, 8], strides = [1, 1]} : vector<26x96xf32> to vector<26x8xf32>
    %261 = vector.extract_strided_slice %220 {offsets = [0, 48], sizes = [26, 8], strides = [1, 1]} : vector<26x96xf32> to vector<26x8xf32>
    %262 = vector.extract_strided_slice %220 {offsets = [0, 80], sizes = [26, 8], strides = [1, 1]} : vector<26x96xf32> to vector<26x8xf32>
    %cst_97 = arith.constant dense<0.000000e+00> : vector<26x26xf32>
    %263 = tpu.matmul %260, %261, %cst_97 {dimension_numbers = #tpu.dot_dimension_numbers<[1], [1], [0], [0], [0, 0, 1, 0], [], []>} : vector<26x8xf32>, vector<26x8xf32>, vector<26x26xf32> -> vector<26x26xf32>
    %264 = arith.addf %263, %25 : vector<26x26xf32>
    %cst_98 = arith.constant dense<0xFF800000> : vector<26xf32>
    %265 = vector.multi_reduction <maximumf>, %264, %cst_98 [1] : vector<26x26xf32> to vector<26xf32>
    %266 = vector.shape_cast %265 : vector<26xf32> to vector<26x1xf32>
    %267 = vector.broadcast %266 : vector<26x1xf32> to vector<26x26xf32>
    %268 = arith.subf %264, %267 : vector<26x26xf32>
    %269 = math.exp %268 : vector<26x26xf32>
    %cst_99 = arith.constant dense<0.000000e+00> : vector<26xf32>
    %270 = vector.multi_reduction <add>, %269, %cst_99 [1] : vector<26x26xf32> to vector<26xf32>
    %271 = vector.shape_cast %270 : vector<26xf32> to vector<26x1xf32>
    %272 = tpu.reciprocal %271 {approx = true} : vector<26x1xf32> -> vector<26x1xf32>
    %273 = vector.broadcast %272 : vector<26x1xf32> to vector<26x26xf32>
    %274 = arith.mulf %269, %273 : vector<26x26xf32>
    %cst_100 = arith.constant dense<0.000000e+00> : vector<26x8xf32>
    %275 = tpu.matmul %274, %262, %cst_100 {dimension_numbers = #tpu.dot_dimension_numbers<[1], [0], [0], [1], [0, 0, 1, 1], [], []>} : vector<26x26xf32>, vector<26x8xf32>, vector<26x8xf32> -> vector<26x8xf32>
    %276 = vector.extract_strided_slice %190 {offsets = [16, 0], sizes = [8, 32], strides = [1, 1]} : vector<32x32xf32> to vector<8x32xf32>
    %cst_101 = arith.constant dense<0.000000e+00> : vector<26x32xf32>
    %277 = tpu.matmul %275, %276, %cst_101 {dimension_numbers = #tpu.dot_dimension_numbers<[1], [0], [0], [1], [0, 0, 1, 1], [], []>} : vector<26x8xf32>, vector<8x32xf32>, vector<26x32xf32> -> vector<26x32xf32>
    %278 = arith.addf %259, %277 : vector<26x32xf32>
    %279 = vector.extract_strided_slice %220 {offsets = [0, 24], sizes = [26, 8], strides = [1, 1]} : vector<26x96xf32> to vector<26x8xf32>
    %280 = vector.extract_strided_slice %220 {offsets = [0, 56], sizes = [26, 8], strides = [1, 1]} : vector<26x96xf32> to vector<26x8xf32>
    %281 = vector.extract_strided_slice %220 {offsets = [0, 88], sizes = [26, 8], strides = [1, 1]} : vector<26x96xf32> to vector<26x8xf32>
    %cst_102 = arith.constant dense<0.000000e+00> : vector<26x26xf32>
    %282 = tpu.matmul %279, %280, %cst_102 {dimension_numbers = #tpu.dot_dimension_numbers<[1], [1], [0], [0], [0, 0, 1, 0], [], []>} : vector<26x8xf32>, vector<26x8xf32>, vector<26x26xf32> -> vector<26x26xf32>
    %283 = arith.addf %282, %25 : vector<26x26xf32>
    %cst_103 = arith.constant dense<0xFF800000> : vector<26xf32>
    %284 = vector.multi_reduction <maximumf>, %283, %cst_103 [1] : vector<26x26xf32> to vector<26xf32>
    %285 = vector.shape_cast %284 : vector<26xf32> to vector<26x1xf32>
    %286 = vector.broadcast %285 : vector<26x1xf32> to vector<26x26xf32>
    %287 = arith.subf %283, %286 : vector<26x26xf32>
    %288 = math.exp %287 : vector<26x26xf32>
    %cst_104 = arith.constant dense<0.000000e+00> : vector<26xf32>
    %289 = vector.multi_reduction <add>, %288, %cst_104 [1] : vector<26x26xf32> to vector<26xf32>
    %290 = vector.shape_cast %289 : vector<26xf32> to vector<26x1xf32>
    %291 = tpu.reciprocal %290 {approx = true} : vector<26x1xf32> -> vector<26x1xf32>
    %292 = vector.broadcast %291 : vector<26x1xf32> to vector<26x26xf32>
    %293 = arith.mulf %288, %292 : vector<26x26xf32>
    %cst_105 = arith.constant dense<0.000000e+00> : vector<26x8xf32>
    %294 = tpu.matmul %293, %281, %cst_105 {dimension_numbers = #tpu.dot_dimension_numbers<[1], [0], [0], [1], [0, 0, 1, 1], [], []>} : vector<26x26xf32>, vector<26x8xf32>, vector<26x8xf32> -> vector<26x8xf32>
    %295 = vector.extract_strided_slice %190 {offsets = [24, 0], sizes = [8, 32], strides = [1, 1]} : vector<32x32xf32> to vector<8x32xf32>
    %cst_106 = arith.constant dense<0.000000e+00> : vector<26x32xf32>
    %296 = tpu.matmul %294, %295, %cst_106 {dimension_numbers = #tpu.dot_dimension_numbers<[1], [0], [0], [1], [0, 0, 1, 1], [], []>} : vector<26x8xf32>, vector<8x32xf32>, vector<26x32xf32> -> vector<26x32xf32>
    %297 = arith.addf %278, %296 : vector<26x32xf32>
    %298 = arith.addf %188, %297 : vector<26x32xf32>
    %c12 = arith.constant 12 : index
    %c0_107 = arith.constant 0 : index
    %299 = vector.load %arg2[%c12, %c0_107] : memref<14x32xf32, #tpu.memory_space<vmem>>, vector<1x32xf32>
    %300 = vector.broadcast %299 : vector<1x32xf32> to vector<26x32xf32>
    %301 = arith.addf %298, %300 : vector<26x32xf32>
    %c10 = arith.constant 10 : index
    %c0_108 = arith.constant 0 : index
    %302 = vector.load %arg2[%c10, %c0_108] : memref<14x32xf32, #tpu.memory_space<vmem>>, vector<1x32xf32>
    %c11 = arith.constant 11 : index
    %c0_109 = arith.constant 0 : index
    %303 = vector.load %arg2[%c11, %c0_109] : memref<14x32xf32, #tpu.memory_space<vmem>>, vector<1x32xf32>
    %cst_110 = arith.constant dense<0.000000e+00> : vector<26xf32>
    %304 = vector.multi_reduction <add>, %301, %cst_110 [1] : vector<26x32xf32> to vector<26xf32>
    %305 = vector.shape_cast %304 : vector<26xf32> to vector<26x1xf32>
    %306 = arith.mulf %301, %301 : vector<26x32xf32>
    %cst_111 = arith.constant dense<0.000000e+00> : vector<26xf32>
    %307 = vector.multi_reduction <add>, %306, %cst_111 [1] : vector<26x32xf32> to vector<26xf32>
    %308 = vector.shape_cast %307 : vector<26xf32> to vector<26x1xf32>
    %cst_112 = arith.constant 3.125000e-02 : f32
    %309 = vector.broadcast %cst_112 : f32 to vector<26x1xf32>
    %310 = arith.mulf %305, %309 : vector<26x1xf32>
    %cst_113 = arith.constant 3.125000e-02 : f32
    %311 = vector.broadcast %cst_113 : f32 to vector<26x1xf32>
    %312 = arith.mulf %308, %311 : vector<26x1xf32>
    %313 = arith.mulf %310, %310 : vector<26x1xf32>
    %314 = arith.subf %312, %313 : vector<26x1xf32>
    %315 = vector.broadcast %310 : vector<26x1xf32> to vector<26x32xf32>
    %316 = arith.subf %301, %315 : vector<26x32xf32>
    %cst_114 = arith.constant 9.99999974E-6 : f32
    %317 = vector.broadcast %cst_114 : f32 to vector<26x1xf32>
    %318 = arith.addf %314, %317 : vector<26x1xf32>
    %319 = math.rsqrt %318 : vector<26x1xf32>
    %320 = vector.broadcast %319 : vector<26x1xf32> to vector<26x32xf32>
    %321 = arith.mulf %316, %320 : vector<26x32xf32>
    %322 = vector.broadcast %302 : vector<1x32xf32> to vector<26x32xf32>
    %323 = arith.mulf %321, %322 : vector<26x32xf32>
    %324 = vector.broadcast %303 : vector<1x32xf32> to vector<26x32xf32>
    %325 = arith.addf %323, %324 : vector<26x32xf32>
    %c1_115 = arith.constant 1 : index
    %c0_116 = arith.constant 0 : index
    %c0_117 = arith.constant 0 : index
    %326 = vector.load %arg7[%c1_115, %c0_116, %c0_117] : memref<2x32x128xf32, #tpu.memory_space<vmem>>, vector<1x32x128xf32>
    %327 = vector.shape_cast %326 : vector<1x32x128xf32> to vector<32x128xf32>
    %cst_118 = arith.constant dense<0.000000e+00> : vector<26x128xf32>
    %328 = tpu.matmul %325, %327, %cst_118 {dimension_numbers = #tpu.dot_dimension_numbers<[1], [0], [0], [1], [0, 0, 1, 1], [], []>} : vector<26x32xf32>, vector<32x128xf32>, vector<26x128xf32> -> vector<26x128xf32>
    %c1_119 = arith.constant 1 : index
    %c0_120 = arith.constant 0 : index
    %329 = vector.load %arg4[%c1_119, %c0_120] : memref<2x128xf32, #tpu.memory_space<vmem>>, vector<1x128xf32>
    %330 = vector.broadcast %329 : vector<1x128xf32> to vector<26x128xf32>
    %331 = arith.addf %328, %330 : vector<26x128xf32>
    %332 = arith.mulf %331, %331 : vector<26x128xf32>
    %333 = arith.mulf %331, %332 : vector<26x128xf32>
    %cst_121 = arith.constant 4.471500e-02 : f32
    %334 = vector.broadcast %cst_121 : f32 to vector<26x128xf32>
    %335 = arith.mulf %334, %333 : vector<26x128xf32>
    %336 = arith.addf %331, %335 : vector<26x128xf32>
    %cst_122 = arith.constant 0.797884583 : f32
    %337 = vector.broadcast %cst_122 : f32 to vector<26x128xf32>
    %338 = arith.mulf %337, %336 : vector<26x128xf32>
    %339 = math.tanh %338 : vector<26x128xf32>
    %cst_123 = arith.constant 1.000000e+00 : f32
    %340 = vector.broadcast %cst_123 : f32 to vector<26x128xf32>
    %341 = arith.addf %340, %339 : vector<26x128xf32>
    %cst_124 = arith.constant 5.000000e-01 : f32
    %342 = vector.broadcast %cst_124 : f32 to vector<26x128xf32>
    %343 = arith.mulf %342, %341 : vector<26x128xf32>
    %344 = arith.mulf %331, %343 : vector<26x128xf32>
    %c1_125 = arith.constant 1 : index
    %c0_126 = arith.constant 0 : index
    %c0_127 = arith.constant 0 : index
    %345 = vector.load %arg8[%c1_125, %c0_126, %c0_127] : memref<2x128x32xf32, #tpu.memory_space<vmem>>, vector<1x128x32xf32>
    %346 = vector.shape_cast %345 : vector<1x128x32xf32> to vector<128x32xf32>
    %cst_128 = arith.constant dense<0.000000e+00> : vector<26x32xf32>
    %347 = tpu.matmul %344, %346, %cst_128 {dimension_numbers = #tpu.dot_dimension_numbers<[1], [0], [0], [1], [0, 0, 1, 1], [], []>} : vector<26x128xf32>, vector<128x32xf32>, vector<26x32xf32> -> vector<26x32xf32>
    %348 = arith.addf %301, %347 : vector<26x32xf32>
    %c13 = arith.constant 13 : index
    %c0_129 = arith.constant 0 : index
    %349 = vector.load %arg2[%c13, %c0_129] : memref<14x32xf32, #tpu.memory_space<vmem>>, vector<1x32xf32>
    %350 = vector.broadcast %349 : vector<1x32xf32> to vector<26x32xf32>
    %351 = arith.addf %348, %350 : vector<26x32xf32>
    %c0_130 = arith.constant 0 : index
    %c0_131 = arith.constant 0 : index
    %352 = vector.load %arg9[%c0_130, %c0_131] : memref<26x32xf32, #tpu.memory_space<vmem>>, vector<26x32xf32>
    tpu.vector_store %arg9[%c0_130, %c0_131], %351 {strides = array<i32>} : memref<26x32xf32, #tpu.memory_space<vmem>>, vector<26x32xf32>,
    return
  }
}

</mosaic_0001>

<llo_original>
// kernel: forward.1
$region0: #{forward.1}
  #allocation0 [shape = 'u32[]', space=smem, size = 0x4, offset = 0x4, fixed_abs, tag = 'smem constant byte address 0x4 - core index']
  #allocation1 [shape = 'u32[144,128]{1,0:T(1,128)}', space=vmem, size = 0x12000, scoped, tag = 'internal scratch']
  %s0 = inlined_call_operand.vmem [shape: f32[26,32], index: 0, kind: input, shape index: {}]
  %s1 = inlined_call_operand.vmem [shape: f32[26,26], index: 1, kind: input, shape index: {}]
  %s2 = inlined_call_operand.vmem [shape: f32[14,32], index: 2, kind: input, shape index: {}]
  %s3 = inlined_call_operand.vmem [shape: f32[2,96], index: 3, kind: input, shape index: {}]
  %s4 = inlined_call_operand.vmem [shape: f32[2,128], index: 4, kind: input, shape index: {}]
  %s5 = inlined_call_operand.vmem [shape: f32[2,32,96], index: 5, kind: input, shape index: {}]
  %s6 = inlined_call_operand.vmem [shape: f32[2,32,32], index: 6, kind: input, shape index: {}]
  %s7 = inlined_call_operand.vmem [shape: f32[2,32,128], index: 7, kind: input, shape index: {}]
  %s8 = inlined_call_operand.vmem [shape: f32[2,128,32], index: 8, kind: input, shape index: {}]
  %s9 = inlined_call_operand.vmem [shape: f32[26,32], index: 9, kind: output, shape index: {}]
  %s10 = sld [smem:[#allocation0]]
  $region46: #{forward.1} parent=0
    _
  %s12 = ssub.s32 1, %s10
  %s13 = scalar_select 0, %s12, %s10
  // Predicated region
  $region2: #{forward.1} parent=0 // pred_check
    _
  $region3: #{forward.1} parent=0 // pred_check_branch
    %15 = sbr.rel (0) target = $region5
  $region4: #{forward.1} parent=0 // pred_region
    _
  $region5: #{forward.1} parent=0 // pred_fallthru
    _
  // Predicated region
  $region6: #{forward.1} parent=0 // pred_check
    _
  $region7: #{forward.1} parent=0 // pred_check_branch
    %17 = sbr.rel (0) target = $region9
  $region8: #{forward.1} parent=0 // pred_region
    _
  $region9: #{forward.1} parent=0 // pred_fallthru
    _
  // Predicated region
  $region10: #{forward.1} parent=0 // pred_check
    _
  $region11: #{forward.1} parent=0 // pred_check_branch
    %19 = sbr.rel (0) target = $region13
  $region12: #{forward.1} parent=0 // pred_region
    _
  $region13: #{forward.1} parent=0 // pred_fallthru
    _
  // Predicated region
  $region14: #{forward.1} parent=0 // pred_check
    _
  $region15: #{forward.1} parent=0 // pred_check_branch
    %21 = sbr.rel (0) target = $region17
  $region16: #{forward.1} parent=0 // pred_region
    _
  $region17: #{forward.1} parent=0 // pred_fallthru
    _
  // Predicated region
  $region18: #{forward.1} parent=0 // pred_check
    _
  $region19: #{forward.1} parent=0 // pred_check_branch
    %23 = sbr.rel (0) target = $region21
  $region20: #{forward.1} parent=0 // pred_region
    _
  $region21: #{forward.1} parent=0 // pred_fallthru
    _
  // Predicated region
  $region22: #{forward.1} parent=0 // pred_check
    _
  $region23: #{forward.1} parent=0 // pred_check_branch
    %25 = sbr.rel (0) target = $region25
  $region24: #{forward.1} parent=0 // pred_region
    _
  $region25: #{forward.1} parent=0 // pred_fallthru
    _
  // Predicated region
  $region26: #{forward.1} parent=0 // pred_check
    _
  $region27: #{forward.1} parent=0 // pred_check_branch
    %27 = sbr.rel (0) target = $region29
  $region28: #{forward.1} parent=0 // pred_region
    _
  $region29: #{forward.1} parent=0 // pred_fallthru
    _
  // Predicated region
  $region30: #{forward.1} parent=0 // pred_check
    _
  $region31: #{forward.1} parent=0 // pred_check_branch
    %29 = sbr.rel (0) target = $region33
  $region32: #{forward.1} parent=0 // pred_region
    _
  $region33: #{forward.1} parent=0 // pred_fallthru
    _
  // Predicated region
  $region34: #{forward.1} parent=0 // pred_check
    _
  $region35: #{forward.1} parent=0 // pred_check_branch
    %31 = sbr.rel (0) target = $region37
  $region36: #{forward.1} parent=0 // pred_region
    _
  $region37: #{forward.1} parent=0 // pred_fallthru
    _
  %v32 = vld [vmem:[%s0] sm:$0xff]
  %v33 = vld [vmem:[%s0 + $0x8] sm:$0xff]
  %v34 = vld [vmem:[%s0 + $0x10] sm:$0xff]
  %v35 = vld [vmem:[%s0 + $0x18] sm:$0x3]
  %v36 = vld [vmem:[%s2] sm:$0x1]
  %v37 = vld [vmem:[%s2 + $0x1] sm:$0x1]
  %vm38 = vcmask 261120
  %v39 = vsel %vm38, %v32, 0.0
  %40 = vadd.xlane.f32.xlu0 %v39
  %v41 = vpop.xlane.xlu0 %40
  %v42 = vsel %vm38, %v33, 0.0
  %43 = vadd.xlane.f32.xlu0 %v42
  %v44 = vpop.xlane.xlu0 %43
  %v45 = vsel %vm38, %v34, 0.0
  %46 = vadd.xlane.f32.xlu0 %v45
  %v47 = vpop.xlane.xlu0 %46
  %vm48 = vcmask 254976
  %v49 = vsel %vm48, %v35, 0.0
  %50 = vadd.xlane.f32.xlu0 %v49
  %v51 = vpop.xlane.xlu0 %50
  %v52 = vmul.f32 %v32, %v32
  %v53 = vmul.f32 %v33, %v33
  %v54 = vmul.f32 %v34, %v34
  %v55 = vmul.f32 %v35, %v35
  %v56 = vsel %vm38, %v52, 0.0
  %57 = vadd.xlane.f32.xlu0 %v56
  %v58 = vpop.xlane.xlu0 %57
  %v59 = vsel %vm38, %v53, 0.0
  %60 = vadd.xlane.f32.xlu0 %v59
  %v61 = vpop.xlane.xlu0 %60
  %v62 = vsel %vm38, %v54, 0.0
  %63 = vadd.xlane.f32.xlu0 %v62
  %v64 = vpop.xlane.xlu0 %63
  %v65 = vsel %vm48, %v55, 0.0
  %66 = vadd.xlane.f32.xlu0 %v65
  %v67 = vpop.xlane.xlu0 %66
  %v68 = vmul.f32 %v41, 0.03125
  %v69 = vmul.f32 %v44, 0.03125
  %v70 = vmul.f32 %v47, 0.03125
  %v71 = vmul.f32 %v51, 0.03125
  %v72 = vmul.f32 %v58, 0.03125
  %v73 = vmul.f32 %v61, 0.03125
  %v74 = vmul.f32 %v64, 0.03125
  %v75 = vmul.f32 %v67, 0.03125
  %v76 = vmul.f32 %v68, %v68
  %v77 = vmul.f32 %v69, %v69
  %v78 = vmul.f32 %v70, %v70
  %v79 = vmul.f32 %v71, %v71
  %v80 = vsub.f32 %v72, %v76
  %v81 = vsub.f32 %v73, %v77
  %v82 = vsub.f32 %v74, %v78
  %v83 = vsub.f32 %v75, %v79
  %v84 = vsub.f32 %v32, %v68
  %v85 = vsub.f32 %v33, %v69
  %v86 = vsub.f32 %v34, %v70
  %v87 = vsub.f32 %v35, %v71
  %v88 = vadd.f32 %v80, 1e-05
  %v89 = vadd.f32 %v81, 1e-05
  %v90 = vadd.f32 %v82, 1e-05
  %v91 = vadd.f32 %v83, 1e-05
  %v92 = vrsqrt.pop %v88
  %v93 = vrsqrt.pop %v89
  %v94 = vrsqrt.pop %v90
  %v95 = vrsqrt.pop %v91
  %v96 = vmul.f32 %v84, %v92
  %v97 = vmul.f32 %v85, %v93
  %v98 = vmul.f32 %v86, %v94
  %v99 = vmul.f32 %v87, %v95
  %v100 = vlaneseq
  %v101 = vshrl.u32 %v100, 7
  %v102 = vsub.s32 0, %v101
  %v103 = vrot.slane %v36, %v102
  %v104 = vmul.f32 %v96, %v103
  %v105 = vmul.f32 %v97, %v103
  %v106 = vmul.f32 %v98, %v103
  %v107 = vmul.f32 %v99, %v103
  %v108 = vlaneseq
  %v109 = vshrl.u32 %v108, 7
  %v110 = vsub.s32 0, %v109
  %v111 = vrot.slane %v37, %v110
  %v112 = vadd.f32 %v104, %v111
  %v113 = vadd.f32 %v105, %v111
  %v114 = vadd.f32 %v106, %v111
  %v115 = vadd.f32 %v107, %v111
  %v116 = vld [vmem:[%s1] sm:$0xff]
  %v117 = vld [vmem:[%s1 + $0x8] sm:$0xff]
  %v118 = vld [vmem:[%s1 + $0x10] sm:$0xff]
  %v119 = vld [vmem:[%s1 + $0x18] sm:$0x3]
  %v120 = vld [vmem:[%s6] sm:$0xff]
  %v121 = vld [vmem:[%s6 + $0x8] sm:$0xff]
  %v122 = vld [vmem:[%s6 + $0x10] sm:$0xff]
  %v123 = vld [vmem:[%s6 + $0x18] sm:$0xff]
  %v124 = vld [vmem:[%s2 + $0x2] sm:$0x1]
  %v125 = vld [vmem:[%s2 + $0x3] sm:$0x1]
  %v126 = vsel %vm38, %v112, 0.0
  %127 = vadd.xlane.f32.xlu0 %v126
  %v128 = vpop.xlane.xlu0 %127
  %v129 = vsel %vm38, %v113, 0.0
  %130 = vadd.xlane.f32.xlu0 %v129
  %v131 = vpop.xlane.xlu0 %130
  %v132 = vsel %vm38, %v114, 0.0
  %133 = vadd.xlane.f32.xlu0 %v132
  %v134 = vpop.xlane.xlu0 %133
  %v135 = vsel %vm48, %v115, 0.0
  %136 = vadd.xlane.f32.xlu0 %v135
  %v137 = vpop.xlane.xlu0 %136
  %v138 = vmul.f32 %v112, %v112
  %v139 = vmul.f32 %v113, %v113
  %v140 = vmul.f32 %v114, %v114
  %v141 = vmul.f32 %v115, %v115
  %v142 = vsel %vm38, %v138, 0.0
  %143 = vadd.xlane.f32.xlu0 %v142
  %v144 = vpop.xlane.xlu0 %143
  %v145 = vsel %vm38, %v139, 0.0
  %146 = vadd.xlane.f32.xlu0 %v145
  %v147 = vpop.xlane.xlu0 %146
  %v148 = vsel %vm38, %v140, 0.0
  %149 = vadd.xlane.f32.xlu0 %v148
  %v150 = vpop.xlane.xlu0 %149
  %v151 = vsel %vm48, %v141, 0.0
  %152 = vadd.xlane.f32.xlu0 %v151
  %v153 = vpop.xlane.xlu0 %152
  %v154 = vmul.f32 %v128, 0.03125
  %v155 = vmul.f32 %v131, 0.03125
  %v156 = vmul.f32 %v134, 0.03125
  %v157 = vmul.f32 %v137, 0.03125
  %v158 = vmul.f32 %v144, 0.03125
  %v159 = vmul.f32 %v147, 0.03125
  %v160 = vmul.f32 %v150, 0.03125
  %v161 = vmul.f32 %v153, 0.03125
  %v162 = vmul.f32 %v154, %v154
  %v163 = vmul.f32 %v155, %v155
  %v164 = vmul.f32 %v156, %v156
  %v165 = vmul.f32 %v157, %v157
  %v166 = vsub.f32 %v158, %v162
  %v167 = vsub.f32 %v159, %v163
  %v168 = vsub.f32 %v160, %v164
  %v169 = vsub.f32 %v161, %v165
  %v170 = vsub.f32 %v112, %v154
  %v171 = vsub.f32 %v113, %v155
  %v172 = vsub.f32 %v114, %v156
  %v173 = vsub.f32 %v115, %v157
  %v174 = vadd.f32 %v166, 1e-05
  %v175 = vadd.f32 %v167, 1e-05
  %v176 = vadd.f32 %v168, 1e-05
  %v177 = vadd.f32 %v169, 1e-05
  %v178 = vrsqrt.pop %v174
  %v179 = vrsqrt.pop %v175
  %v180 = vrsqrt.pop %v176
  %v181 = vrsqrt.pop %v177
  %v182 = vmul.f32 %v170, %v178
  %v183 = vmul.f32 %v171, %v179
  %v184 = vmul.f32 %v172, %v180
  %v185 = vmul.f32 %v173, %v181
  %v186 = vlaneseq
  %v187 = vshrl.u32 %v186, 7
  %v188 = vsub.s32 0, %v187
  %v189 = vrot.slane %v124, %v188
  %v190 = vmul.f32 %v182, %v189
  %v191 = vmul.f32 %v183, %v189
  %v192 = vmul.f32 %v184, %v189
  %v193 = vmul.f32 %v185, %v189
  %v194 = vlaneseq
  %v195 = vshrl.u32 %v194, 7
  %v196 = vsub.s32 0, %v195
  %v197 = vrot.slane %v125, %v196
  %v198 = vadd.f32 %v190, %v197
  %v199 = vadd.f32 %v191, %v197
  %v200 = vadd.f32 %v192, %v197
  %v201 = vadd.f32 %v193, %v197
  %v202 = vld [vmem:[%s5] sm:$0xff]
  %v203 = vld [vmem:[%s5 + $0x8] sm:$0xff]
  %v204 = vld [vmem:[%s5 + $0x10] sm:$0xff]
  %v205 = vld [vmem:[%s5 + $0x18] sm:$0xff]
  %v206 = vld [vmem:[%s3] sm:$0x1]
  %v207 = vlaneseq
  %v208 = vshrl.u32 %v207, 7
  %v209 = vsub.s32 0, %v208
  %v210 = vrot.slane %v206, %v209
  %v212 = vsel %vm38, %v198, 0
  %v215 = vsel %vm38, %v199, 0
  %v218 = vsel %vm38, %v200, 0
  %v221 = vsel %vm38, %v201, 0
  %223 = vmatprep.subr.mxu0 0.0
  %224 = vmatpush1.msra.mxu0 %v202
  %225 = vmatprep.subr.mxu0 0.0
  %226 = vmatpush1.msra.mxu0 %v203
  %227 = vmatprep.subr.mxu0 0.0
  %228 = vmatpush1.msra.mxu0 %v204
  %229 = vmatprep.subr.mxu0 0.0
  %230 = vmatpush1.msra.mxu0 %v205
  %231 = vmatprep.subr.mxu0 0.0
  %232 = vmatpush1.msra.mxu0 0.0
  %233 = vmatprep.subr.mxu0 0.0
  %234 = vmatpush1.msra.mxu0 0.0
  %235 = vmatprep.subr.mxu0 0.0
  %236 = vmatpush1.msra.mxu0 0.0
  %237 = vmatprep.subr.mxu0 0.0
  %238 = vmatpush1.msra.mxu0 0.0
  %239 = vmatprep.subr.mxu0 0.0
  %240 = vmatpush1.msra.mxu0 0.0
  %241 = vmatprep.subr.mxu0 0.0
  %242 = vmatpush1.msra.mxu0 0.0
  %243 = vmatprep.subr.mxu0 0.0
  %244 = vmatpush1.msra.mxu0 0.0
  %245 = vmatprep.subr.mxu0 0.0
  %246 = vmatpush1.msra.mxu0 0.0
  %247 = vmatprep.subr.mxu0 0.0
  %248 = vmatpush1.msra.mxu0 0.0
  %249 = vmatprep.subr.mxu0 0.0
  %250 = vmatpush1.msra.mxu0 0.0
  %251 = vmatprep.subr.mxu0 0.0
  %252 = vmatpush1.msra.mxu0 0.0
  %253 = vmatprep.subr.mxu0 0.0
  %254 = vmatpush1.msra.mxu0 0.0
  %255 = vmatprep.subr.mxu0 0.0
  %256 = vmatpush1.msra.mxu0 0.0
  %257 = vmatprep.subr.mxu0 0.0
  %258 = vmatpush1.msra.mxu0 0.0
  %259 = vmatprep.subr.mxu0 0.0
  %260 = vmatpush1.msra.mxu0 0.0
  %261 = vmatprep.subr.mxu0 0.0
  %262 = vmatpush1.msra.mxu0 0.0
  %263 = vmatprep.subr.mxu0 0.0
  %264 = vmatpush1.msra.mxu0 0.0
  %265 = vmatprep.subr.mxu0 0.0
  %266 = vmatpush1.msra.mxu0 0.0
  %267 = vmatprep.subr.mxu0 0.0
  %268 = vmatpush1.msra.mxu0 0.0
  %269 = vmatprep.subr.mxu0 0.0
  %270 = vmatpush1.msra.mxu0 0.0
  %271 = vmatprep.subr.mxu0 0.0
  %272 = vmatpush1.msra.mxu0 0.0
  %273 = vmatprep.subr.mxu0 0.0
  %274 = vmatpush1.msra.mxu0 0.0
  %275 = vmatprep.subr.mxu0 0.0
  %276 = vmatpush1.msra.mxu0 0.0
  %277 = vmatprep.subr.mxu0 0.0
  %278 = vmatpush1.msra.mxu0 0.0
  %279 = vmatprep.subr.mxu0 0.0
  %280 = vmatpush1.msra.mxu0 0.0
  %281 = vmatprep.subr.mxu0 0.0
  %282 = vmatpush1.msra.mxu0 0.0
  %283 = vmatprep.subr.mxu0 0.0
  %284 = vmatpush1.msra.mxu0 0.0
  %285 = vmatprep.subr.mxu0 0.0
  %286 = vmatpush1.msra.mxu0 0.0
  %287 = vmatprep.mubr.f32.mxu0 0.0
  %288 = vmatmul.mubr.f32.gmra.mrb[0].mxu0 %v212
  %v289 = vpop.f32.mrb[0].mxu0
  %v290 = vadd.f32 %v210, %v289
  %v291 = vpop.f32.mrb[0].mxu0
  %292 = vmatprep.mubr.f32.mxu0 0.0
  %293 = vmatmul.mubr.f32.gmra.mrb[0].mxu0 %v215
  %v294 = vpop.f32.mrb[0].mxu0
  %v295 = vadd.f32 %v210, %v294
  %v296 = vpop.f32.mrb[0].mxu0
  %297 = vmatprep.mubr.f32.mxu0 0.0
  %298 = vmatmul.mubr.f32.gmra.mrb[0].mxu0 %v218
  %v299 = vpop.f32.mrb[0].mxu0
  %v300 = vadd.f32 %v210, %v299
  %v301 = vpop.f32.mrb[0].mxu0
  %302 = vmatprep.mubr.f32.mxu0 0.0
  %303 = vmatmul.mubr.f32.gmra.mrb[0].mxu0 %v221
  %v304 = vpop.f32.mrb[0].mxu0
  %v305 = vadd.f32 %v210, %v304
  %v306 = vpop.f32.mrb[0].mxu0
  %307 = vdwg.mxu0
  %312 = vrot.lane.b32.xlu0 %v290, 96
  %v313 = vpop.permute.xlu0 %312
  %314 = vrot.lane.b32.xlu0 %v295, 96
  %v315 = vpop.permute.xlu0 %314
  %316 = vrot.lane.b32.xlu0 %v300, 96
  %v317 = vpop.permute.xlu0 %316
  %318 = vrot.lane.b32.xlu0 %v305, 96
  %v319 = vpop.permute.xlu0 %318
  %vm320 = vcmask 64512
  %v321 = vsel %vm320, %v290, 0
  %v323 = vsel %vm320, %v295, 0
  %v325 = vsel %vm320, %v300, 0
  %v327 = vsel %vm320, %v305, 0
  %v329 = vsel %vm320, %v313, 0
  %v331 = vsel %vm320, %v315, 0
  %v333 = vsel %vm320, %v317, 0
  %v335 = vsel %vm320, %v319, 0
  %337 = vmatprep.subr.mxu0 0.0
  %338 = vmatpush1.xpose.msra.mxu0 %v329
  %339 = vmatprep.subr.mxu0 0.0
  %340 = vmatpush1.xpose.msra.mxu0 %v331
  %341 = vmatprep.subr.mxu0 0.0
  %342 = vmatpush1.xpose.msra.mxu0 %v333
  %343 = vmatprep.subr.mxu0 0.0
  %344 = vmatpush1.xpose.msra.mxu0 %v335
  %345 = vmatprep.subr.mxu0 0.0
  %346 = vmatpush1.xpose.msra.mxu0 0.0
  %347 = vmatprep.subr.mxu0 0.0
  %348 = vmatpush1.xpose.msra.mxu0 0.0
  %349 = vmatprep.subr.mxu0 0.0
  %350 = vmatpush1.xpose.msra.mxu0 0.0
  %351 = vmatprep.subr.mxu0 0.0
  %352 = vmatpush1.xpose.msra.mxu0 0.0
  %353 = vmatprep.subr.mxu0 0.0
  %354 = vmatpush1.xpose.msra.mxu0 0.0
  %355 = vmatprep.subr.mxu0 0.0
  %356 = vmatpush1.xpose.msra.mxu0 0.0
  %357 = vmatprep.subr.mxu0 0.0
  %358 = vmatpush1.xpose.msra.mxu0 0.0
  %359 = vmatprep.subr.mxu0 0.0
  %360 = vmatpush1.xpose.msra.mxu0 0.0
  %361 = vmatprep.subr.mxu0 0.0
  %362 = vmatpush1.xpose.msra.mxu0 0.0
  %363 = vmatprep.subr.mxu0 0.0
  %364 = vmatpush1.xpose.msra.mxu0 0.0
  %365 = vmatprep.subr.mxu0 0.0
  %366 = vmatpush1.xpose.msra.mxu0 0.0
  %367 = vmatprep.subr.mxu0 0.0
  %368 = vmatpush1.xpose.msra.mxu0 0.0
  %369 = vmatprep.subr.mxu0 0.0
  %370 = vmatpush1.xpose.msra.mxu0 0.0
  %371 = vmatprep.subr.mxu0 0.0
  %372 = vmatpush1.xpose.msra.mxu0 0.0
  %373 = vmatprep.subr.mxu0 0.0
  %374 = vmatpush1.xpose.msra.mxu0 0.0
  %375 = vmatprep.subr.mxu0 0.0
  %376 = vmatpush1.xpose.msra.mxu0 0.0
  %377 = vmatprep.subr.mxu0 0.0
  %378 = vmatpush1.xpose.msra.mxu0 0.0
  %379 = vmatprep.subr.mxu0 0.0
  %380 = vmatpush1.xpose.msra.mxu0 0.0
  %381 = vmatprep.subr.mxu0 0.0
  %382 = vmatpush1.xpose.msra.mxu0 0.0
  %383 = vmatprep.subr.mxu0 0.0
  %384 = vmatpush1.xpose.msra.mxu0 0.0
  %385 = vmatprep.subr.mxu0 0.0
  %386 = vmatpush1.xpose.msra.mxu0 0.0
  %387 = vmatprep.subr.mxu0 0.0
  %388 = vmatpush1.xpose.msra.mxu0 0.0
  %389 = vmatprep.subr.mxu0 0.0
  %390 = vmatpush1.xpose.msra.mxu0 0.0
  %391 = vmatprep.subr.mxu0 0.0
  %392 = vmatpush1.xpose.msra.mxu0 0.0
  %393 = vmatprep.subr.mxu0 0.0
  %394 = vmatpush1.xpose.msra.mxu0 0.0
  %395 = vmatprep.subr.mxu0 0.0
  %396 = vmatpush1.xpose.msra.mxu0 0.0
  %397 = vmatprep.subr.mxu0 0.0
  %398 = vmatpush1.xpose.msra.mxu0 0.0
  %399 = vmatprep.subr.mxu0 0.0
  %400 = vmatpush1.xpose.msra.mxu0 0.0
  %401 = vmatprep.mubr.f32.mxu0 0.0
  %402 = vmatmul.mubr.f32.gmra.mrb[0].mxu0 %v321
  %v403 = vpop.f32.mrb[0].mxu0
  %v404 = vadd.f32 %v116, %v403
  %v405 = vpop.f32.mrb[0].mxu0
  %406 = vmatprep.mubr.f32.mxu0 0.0
  %407 = vmatmul.mubr.f32.gmra.mrb[0].mxu0 %v323
  %v408 = vpop.f32.mrb[0].mxu0
  %v409 = vadd.f32 %v117, %v408
  %v410 = vpop.f32.mrb[0].mxu0
  %411 = vmatprep.mubr.f32.mxu0 0.0
  %412 = vmatmul.mubr.f32.gmra.mrb[0].mxu0 %v325
  %v413 = vpop.f32.mrb[0].mxu0
  %v414 = vadd.f32 %v118, %v413
  %v415 = vpop.f32.mrb[0].mxu0
  %416 = vmatprep.mubr.f32.mxu0 0.0
  %417 = vmatmul.mubr.f32.gmra.mrb[0].mxu0 %v327
  %v418 = vpop.f32.mrb[0].mxu0
  %v419 = vadd.f32 %v119, %v418
  %v420 = vpop.f32.mrb[0].mxu0
  %421 = vdwg.mxu0
  %vm422 = vcmask 211968
  %v423 = vsel %vm422, %v404, -inf
  %424 = vmax.xlane.f32.xlu0 %v423
  %v425 = vpop.xlane.xlu0 %424
  %v426 = vsel %vm422, %v409, -inf
  %427 = vmax.xlane.f32.xlu0 %v426
  %v428 = vpop.xlane.xlu0 %427
  %v429 = vsel %vm422, %v414, -inf
  %430 = vmax.xlane.f32.xlu0 %v429
  %v431 = vpop.xlane.xlu0 %430
  %vm432 = vcmask 205824
  %v433 = vsel %vm432, %v419, -inf
  %434 = vmax.xlane.f32.xlu0 %v433
  %v435 = vpop.xlane.xlu0 %434
  %v436 = vsub.f32 %v404, %v425
  %v437 = vsub.f32 %v409, %v428
  %v438 = vsub.f32 %v414, %v431
  %v439 = vsub.f32 %v419, %v435
  %v440 = vmul.f32 %v436, 1.442695
  %v441 = vpow.pop %v440
  %v442 = vmul.f32 %v437, 1.442695
  %v443 = vpow.pop %v442
  %v444 = vmul.f32 %v438, 1.442695
  %v445 = vpow.pop %v444
  %v446 = vmul.f32 %v439, 1.442695
  %v447 = vpow.pop %v446
  %v448 = vsel %vm422, %v441, 0.0
  %449 = vadd.xlane.f32.xlu0 %v448
  %v450 = vpop.xlane.xlu0 %449
  %v451 = vsel %vm422, %v443, 0.0
  %452 = vadd.xlane.f32.xlu0 %v451
  %v453 = vpop.xlane.xlu0 %452
  %v454 = vsel %vm422, %v445, 0.0
  %455 = vadd.xlane.f32.xlu0 %v454
  %v456 = vpop.xlane.xlu0 %455
  %v457 = vsel %vm432, %v447, 0.0
  %458 = vadd.xlane.f32.xlu0 %v457
  %v459 = vpop.xlane.xlu0 %458
  %v460 = vrcp.pop %v450
  %v461 = vrcp.pop %v453
  %v462 = vrcp.pop %v456
  %v463 = vrcp.pop %v459
  %v464 = vmul.f32 %v441, %v460
  %v465 = vmul.f32 %v443, %v461
  %v466 = vmul.f32 %v445, %v462
  %v467 = vmul.f32 %v447, %v463
  %468 = vrot.lane.b32.xlu0 %v290, 64
  %v469 = vpop.permute.xlu0 %468
  %470 = vrot.lane.b32.xlu0 %v295, 64
  %v471 = vpop.permute.xlu0 %470
  %472 = vrot.lane.b32.xlu0 %v300, 64
  %v473 = vpop.permute.xlu0 %472
  %474 = vrot.lane.b32.xlu0 %v305, 64
  %v475 = vpop.permute.xlu0 %474
  %v480 = vsel %vm422, %v464, 0
  %v483 = vsel %vm422, %v465, 0
  %v486 = vsel %vm422, %v466, 0
  %v489 = vsel %vm422, %v467, 0
  %vm491 = vcmask 1041408
  %v492 = vsel %vm491, %v475, 0
  %494 = vmatprep.subr.mxu0 0.0
  %495 = vmatpush1.msra.mxu0 %v469
  %496 = vmatprep.subr.mxu0 0.0
  %497 = vmatpush1.msra.mxu0 %v471
  %498 = vmatprep.subr.mxu0 0.0
  %499 = vmatpush1.msra.mxu0 %v473
  %500 = vmatprep.subr.mxu0 0.0
  %501 = vmatpush1.msra.mxu0 %v492
  %502 = vmatprep.subr.mxu0 0.0
  %503 = vmatpush1.msra.mxu0 0.0
  %504 = vmatprep.subr.mxu0 0.0
  %505 = vmatpush1.msra.mxu0 0.0
  %506 = vmatprep.subr.mxu0 0.0
  %507 = vmatpush1.msra.mxu0 0.0
  %508 = vmatprep.subr.mxu0 0.0
  %509 = vmatpush1.msra.mxu0 0.0
  %510 = vmatprep.subr.mxu0 0.0
  %511 = vmatpush1.msra.mxu0 0.0
  %512 = vmatprep.subr.mxu0 0.0
  %513 = vmatpush1.msra.mxu0 0.0
  %514 = vmatprep.subr.mxu0 0.0
  %515 = vmatpush1.msra.mxu0 0.0
  %516 = vmatprep.subr.mxu0 0.0
  %517 = vmatpush1.msra.mxu0 0.0
  %518 = vmatprep.subr.mxu0 0.0
  %519 = vmatpush1.msra.mxu0 0.0
  %520 = vmatprep.subr.mxu0 0.0
  %521 = vmatpush1.msra.mxu0 0.0
  %522 = vmatprep.subr.mxu0 0.0
  %523 = vmatpush1.msra.mxu0 0.0
  %524 = vmatprep.subr.mxu0 0.0
  %525 = vmatpush1.msra.mxu0 0.0
  %526 = vmatprep.subr.mxu0 0.0
  %527 = vmatpush1.msra.mxu0 0.0
  %528 = vmatprep.subr.mxu0 0.0
  %529 = vmatpush1.msra.mxu0 0.0
  %530 = vmatprep.subr.mxu0 0.0
  %531 = vmatpush1.msra.mxu0 0.0
  %532 = vmatprep.subr.mxu0 0.0
  %533 = vmatpush1.msra.mxu0 0.0
  %534 = vmatprep.subr.mxu0 0.0
  %535 = vmatpush1.msra.mxu0 0.0
  %536 = vmatprep.subr.mxu0 0.0
  %537 = vmatpush1.msra.mxu0 0.0
  %538 = vmatprep.subr.mxu0 0.0
  %539 = vmatpush1.msra.mxu0 0.0
  %540 = vmatprep.subr.mxu0 0.0
  %541 = vmatpush1.msra.mxu0 0.0
  %542 = vmatprep.subr.mxu0 0.0
  %543 = vmatpush1.msra.mxu0 0.0
  %544 = vmatprep.subr.mxu0 0.0
  %545 = vmatpush1.msra.mxu0 0.0
  %546 = vmatprep.subr.mxu0 0.0
  %547 = vmatpush1.msra.mxu0 0.0
  %548 = vmatprep.subr.mxu0 0.0
  %549 = vmatpush1.msra.mxu0 0.0
  %550 = vmatprep.subr.mxu0 0.0
  %551 = vmatpush1.msra.mxu0 0.0
  %552 = vmatprep.subr.mxu0 0.0
  %553 = vmatpush1.msra.mxu0 0.0
  %554 = vmatprep.subr.mxu0 0.0
  %555 = vmatpush1.msra.mxu0 0.0
  %556 = vmatprep.subr.mxu0 0.0
  %557 = vmatpush1.msra.mxu0 0.0
  %558 = vmatprep.mubr.f32.mxu0 0.0
  %559 = vmatmul.mubr.f32.gmra.mrb[0].mxu0 %v480
  %v560 = vpop.f32.mrb[0].mxu0
  %v561 = vadd.f32 0.0, %v560
  %v562 = vpop.f32.mrb[0].mxu0
  %563 = vmatprep.mubr.f32.mxu0 0.0
  %564 = vmatmul.mubr.f32.gmra.mrb[0].mxu0 %v483
  %v565 = vpop.f32.mrb[0].mxu0
  %v566 = vadd.f32 0.0, %v565
  %v567 = vpop.f32.mrb[0].mxu0
  %568 = vmatprep.mubr.f32.mxu0 0.0
  %569 = vmatmul.mubr.f32.gmra.mrb[0].mxu0 %v486
  %v570 = vpop.f32.mrb[0].mxu0
  %v571 = vadd.f32 0.0, %v570
  %v572 = vpop.f32.mrb[0].mxu0
  %573 = vmatprep.mubr.f32.mxu0 0.0
  %574 = vmatmul.mubr.f32.gmra.mrb[0].mxu0 %v489
  %v575 = vpop.f32.mrb[0].mxu0
  %v576 = vadd.f32 0.0, %v575
  %v577 = vpop.f32.mrb[0].mxu0
  %578 = vdwg.mxu0
  %579 = vrot.lane.b32.xlu0 %v290, 120
  %v580 = vpop.permute.xlu0 %579
  %581 = vrot.lane.b32.xlu0 %v295, 120
  %v582 = vpop.permute.xlu0 %581
  %583 = vrot.lane.b32.xlu0 %v300, 120
  %v584 = vpop.permute.xlu0 %583
  %585 = vrot.lane.b32.xlu0 %v305, 120
  %v586 = vpop.permute.xlu0 %585
  %587 = vrot.lane.b32.xlu0 %v290, 88
  %v588 = vpop.permute.xlu0 %587
  %589 = vrot.lane.b32.xlu0 %v295, 88
  %v590 = vpop.permute.xlu0 %589
  %591 = vrot.lane.b32.xlu0 %v300, 88
  %v592 = vpop.permute.xlu0 %591
  %593 = vrot.lane.b32.xlu0 %v305, 88
  %v594 = vpop.permute.xlu0 %593
  %v595 = vsel %vm320, %v580, 0
  %v597 = vsel %vm320, %v582, 0
  %v599 = vsel %vm320, %v584, 0
  %v601 = vsel %vm320, %v586, 0
  %v603 = vsel %vm320, %v588, 0
  %v605 = vsel %vm320, %v590, 0
  %v607 = vsel %vm320, %v592, 0
  %v609 = vsel %vm320, %v594, 0
  %611 = vmatprep.subr.mxu0 0.0
  %612 = vmatpush1.xpose.msra.mxu0 %v603
  %613 = vmatprep.subr.mxu0 0.0
  %614 = vmatpush1.xpose.msra.mxu0 %v605
  %615 = vmatprep.subr.mxu0 0.0
  %616 = vmatpush1.xpose.msra.mxu0 %v607
  %617 = vmatprep.subr.mxu0 0.0
  %618 = vmatpush1.xpose.msra.mxu0 %v609
  %619 = vmatprep.subr.mxu0 0.0
  %620 = vmatpush1.xpose.msra.mxu0 0.0
  %621 = vmatprep.subr.mxu0 0.0
  %622 = vmatpush1.xpose.msra.mxu0 0.0
  %623 = vmatprep.subr.mxu0 0.0
  %624 = vmatpush1.xpose.msra.mxu0 0.0
  %625 = vmatprep.subr.mxu0 0.0
  %626 = vmatpush1.xpose.msra.mxu0 0.0
  %627 = vmatprep.subr.mxu0 0.0
  %628 = vmatpush1.xpose.msra.mxu0 0.0
  %629 = vmatprep.subr.mxu0 0.0
  %630 = vmatpush1.xpose.msra.mxu0 0.0
  %631 = vmatprep.subr.mxu0 0.0
  %632 = vmatpush1.xpose.msra.mxu0 0.0
  %633 = vmatprep.subr.mxu0 0.0
  %634 = vmatpush1.xpose.msra.mxu0 0.0
  %635 = vmatprep.subr.mxu0 0.0
  %636 = vmatpush1.xpose.msra.mxu0 0.0
  %637 = vmatprep.subr.mxu0 0.0
  %638 = vmatpush1.xpose.msra.mxu0 0.0
  %639 = vmatprep.subr.mxu0 0.0
  %640 = vmatpush1.xpose.msra.mxu0 0.0
  %641 = vmatprep.subr.mxu0 0.0
  %642 = vmatpush1.xpose.msra.mxu0 0.0
  %643 = vmatprep.subr.mxu0 0.0
  %644 = vmatpush1.xpose.msra.mxu0 0.0
  %645 = vmatprep.subr.mxu0 0.0
  %646 = vmatpush1.xpose.msra.mxu0 0.0
  %647 = vmatprep.subr.mxu0 0.0
  %648 = vmatpush1.xpose.msra.mxu0 0.0
  %649 = vmatprep.subr.mxu0 0.0
  %650 = vmatpush1.xpose.msra.mxu0 0.0
  %651 = vmatprep.subr.mxu0 0.0
  %652 = vmatpush1.xpose.msra.mxu0 0.0
  %653 = vmatprep.subr.mxu0 0.0
  %654 = vmatpush1.xpose.msra.mxu0 0.0
  %655 = vmatprep.subr.mxu0 0.0
  %656 = vmatpush1.xpose.msra.mxu0 0.0
  %657 = vmatprep.subr.mxu0 0.0
  %658 = vmatpush1.xpose.msra.mxu0 0.0
  %659 = vmatprep.subr.mxu0 0.0
  %660 = vmatpush1.xpose.msra.mxu0 0.0
  %661 = vmatprep.subr.mxu0 0.0
  %662 = vmatpush1.xpose.msra.mxu0 0.0
  %663 = vmatprep.subr.mxu0 0.0
  %664 = vmatpush1.xpose.msra.mxu0 0.0
  %665 = vmatprep.subr.mxu0 0.0
  %666 = vmatpush1.xpose.msra.mxu0 0.0
  %667 = vmatprep.subr.mxu0 0.0
  %668 = vmatpush1.xpose.msra.mxu0 0.0
  %669 = vmatprep.subr.mxu0 0.0
  %670 = vmatpush1.xpose.msra.mxu0 0.0
  %671 = vmatprep.subr.mxu0 0.0
  %672 = vmatpush1.xpose.msra.mxu0 0.0
  %673 = vmatprep.subr.mxu0 0.0
  %674 = vmatpush1.xpose.msra.mxu0 0.0
  %675 = vmatprep.mubr.f32.mxu0 0.0
  %676 = vmatmul.mubr.f32.gmra.mrb[0].mxu0 %v595
  %v677 = vpop.f32.mrb[0].mxu0
  %v678 = vadd.f32 %v116, %v677
  %v679 = vpop.f32.mrb[0].mxu0
  %680 = vmatprep.mubr.f32.mxu0 0.0
  %681 = vmatmul.mubr.f32.gmra.mrb[0].mxu0 %v597
  %v682 = vpop.f32.mrb[0].mxu0
  %v683 = vadd.f32 %v117, %v682
  %v684 = vpop.f32.mrb[0].mxu0
  %685 = vmatprep.mubr.f32.mxu0 0.0
  %686 = vmatmul.mubr.f32.gmra.mrb[0].mxu0 %v599
  %v687 = vpop.f32.mrb[0].mxu0
  %v688 = vadd.f32 %v118, %v687
  %v689 = vpop.f32.mrb[0].mxu0
  %690 = vmatprep.mubr.f32.mxu0 0.0
  %691 = vmatmul.mubr.f32.gmra.mrb[0].mxu0 %v601
  %v692 = vpop.f32.mrb[0].mxu0
  %v693 = vadd.f32 %v119, %v692
  %v694 = vpop.f32.mrb[0].mxu0
  %695 = vdwg.mxu0
  %v696 = vsel %vm422, %v678, -inf
  %697 = vmax.xlane.f32.xlu0 %v696
  %v698 = vpop.xlane.xlu0 %697
  %v699 = vsel %vm422, %v683, -inf
  %700 = vmax.xlane.f32.xlu0 %v699
  %v701 = vpop.xlane.xlu0 %700
  %v702 = vsel %vm422, %v688, -inf
  %703 = vmax.xlane.f32.xlu0 %v702
  %v704 = vpop.xlane.xlu0 %703
  %v705 = vsel %vm432, %v693, -inf
  %706 = vmax.xlane.f32.xlu0 %v705
  %v707 = vpop.xlane.xlu0 %706
  %v708 = vsub.f32 %v678, %v698
  %v709 = vsub.f32 %v683, %v701
  %v710 = vsub.f32 %v688, %v704
  %v711 = vsub.f32 %v693, %v707
  %v712 = vmul.f32 %v708, 1.442695
  %v713 = vpow.pop %v712
  %v714 = vmul.f32 %v709, 1.442695
  %v715 = vpow.pop %v714
  %v716 = vmul.f32 %v710, 1.442695
  %v717 = vpow.pop %v716
  %v718 = vmul.f32 %v711, 1.442695
  %v719 = vpow.pop %v718
  %v720 = vsel %vm422, %v713, 0.0
  %721 = vadd.xlane.f32.xlu0 %v720
  %v722 = vpop.xlane.xlu0 %721
  %v723 = vsel %vm422, %v715, 0.0
  %724 = vadd.xlane.f32.xlu0 %v723
  %v725 = vpop.xlane.xlu0 %724
  %v726 = vsel %vm422, %v717, 0.0
  %727 = vadd.xlane.f32.xlu0 %v726
  %v728 = vpop.xlane.xlu0 %727
  %v729 = vsel %vm432, %v719, 0.0
  %730 = vadd.xlane.f32.xlu0 %v729
  %v731 = vpop.xlane.xlu0 %730
  %v732 = vrcp.pop %v722
  %v733 = vrcp.pop %v725
  %v734 = vrcp.pop %v728
  %v735 = vrcp.pop %v731
  %v736 = vmul.f32 %v713, %v732
  %v737 = vmul.f32 %v715, %v733
  %v738 = vmul.f32 %v717, %v734
  %v739 = vmul.f32 %v719, %v735
  %740 = vrot.lane.b32.xlu0 %v290, 56
  %v741 = vpop.permute.xlu0 %740
  %742 = vrot.lane.b32.xlu0 %v295, 56
  %v743 = vpop.permute.xlu0 %742
  %744 = vrot.lane.b32.xlu0 %v300, 56
  %v745 = vpop.permute.xlu0 %744
  %746 = vrot.lane.b32.xlu0 %v305, 56
  %v747 = vpop.permute.xlu0 %746
  %v752 = vsel %vm422, %v736, 0
  %v755 = vsel %vm422, %v737, 0
  %v758 = vsel %vm422, %v738, 0
  %v761 = vsel %vm422, %v739, 0
  %v763 = vsel %vm491, %v747, 0
  %765 = vmatprep.subr.mxu0 0.0
  %766 = vmatpush1.msra.mxu0 %v741
  %767 = vmatprep.subr.mxu0 0.0
  %768 = vmatpush1.msra.mxu0 %v743
  %769 = vmatprep.subr.mxu0 0.0
  %770 = vmatpush1.msra.mxu0 %v745
  %771 = vmatprep.subr.mxu0 0.0
  %772 = vmatpush1.msra.mxu0 %v763
  %773 = vmatprep.subr.mxu0 0.0
  %774 = vmatpush1.msra.mxu0 0.0
  %775 = vmatprep.subr.mxu0 0.0
  %776 = vmatpush1.msra.mxu0 0.0
  %777 = vmatprep.subr.mxu0 0.0
  %778 = vmatpush1.msra.mxu0 0.0
  %779 = vmatprep.subr.mxu0 0.0
  %780 = vmatpush1.msra.mxu0 0.0
  %781 = vmatprep.subr.mxu0 0.0
  %782 = vmatpush1.msra.mxu0 0.0
  %783 = vmatprep.subr.mxu0 0.0
  %784 = vmatpush1.msra.mxu0 0.0
  %785 = vmatprep.subr.mxu0 0.0
  %786 = vmatpush1.msra.mxu0 0.0
  %787 = vmatprep.subr.mxu0 0.0
  %788 = vmatpush1.msra.mxu0 0.0
  %789 = vmatprep.subr.mxu0 0.0
  %790 = vmatpush1.msra.mxu0 0.0
  %791 = vmatprep.subr.mxu0 0.0
  %792 = vmatpush1.msra.mxu0 0.0
  %793 = vmatprep.subr.mxu0 0.0
  %794 = vmatpush1.msra.mxu0 0.0
  %795 = vmatprep.subr.mxu0 0.0
  %796 = vmatpush1.msra.mxu0 0.0
  %797 = vmatprep.subr.mxu0 0.0
  %798 = vmatpush1.msra.mxu0 0.0
  %799 = vmatprep.subr.mxu0 0.0
  %800 = vmatpush1.msra.mxu0 0.0
  %801 = vmatprep.subr.mxu0 0.0
  %802 = vmatpush1.msra.mxu0 0.0
  %803 = vmatprep.subr.mxu0 0.0
  %804 = vmatpush1.msra.mxu0 0.0
  %805 = vmatprep.subr.mxu0 0.0
  %806 = vmatpush1.msra.mxu0 0.0
  %807 = vmatprep.subr.mxu0 0.0
  %808 = vmatpush1.msra.mxu0 0.0
  %809 = vmatprep.subr.mxu0 0.0
  %810 = vmatpush1.msra.mxu0 0.0
  %811 = vmatprep.subr.mxu0 0.0
  %812 = vmatpush1.msra.mxu0 0.0
  %813 = vmatprep.subr.mxu0 0.0
  %814 = vmatpush1.msra.mxu0 0.0
  %815 = vmatprep.subr.mxu0 0.0
  %816 = vmatpush1.msra.mxu0 0.0
  %817 = vmatprep.subr.mxu0 0.0
  %818 = vmatpush1.msra.mxu0 0.0
  %819 = vmatprep.subr.mxu0 0.0
  %820 = vmatpush1.msra.mxu0 0.0
  %821 = vmatprep.subr.mxu0 0.0
  %822 = vmatpush1.msra.mxu0 0.0
  %823 = vmatprep.subr.mxu0 0.0
  %824 = vmatpush1.msra.mxu0 0.0
  %825 = vmatprep.subr.mxu0 0.0
  %826 = vmatpush1.msra.mxu0 0.0
  %827 = vmatprep.subr.mxu0 0.0
  %828 = vmatpush1.msra.mxu0 0.0
  %829 = vmatprep.mubr.f32.mxu0 0.0
  %830 = vmatmul.mubr.f32.gmra.mrb[0].mxu0 %v752
  %v831 = vpop.f32.mrb[0].mxu0
  %v832 = vadd.f32 0.0, %v831
  %v833 = vpop.f32.mrb[0].mxu0
  %834 = vmatprep.mubr.f32.mxu0 0.0
  %835 = vmatmul.mubr.f32.gmra.mrb[0].mxu0 %v755
  %v836 = vpop.f32.mrb[0].mxu0
  %v837 = vadd.f32 0.0, %v836
  %v838 = vpop.f32.mrb[0].mxu0
  %839 = vmatprep.mubr.f32.mxu0 0.0
  %840 = vmatmul.mubr.f32.gmra.mrb[0].mxu0 %v758
  %v841 = vpop.f32.mrb[0].mxu0
  %v842 = vadd.f32 0.0, %v841
  %v843 = vpop.f32.mrb[0].mxu0
  %844 = vmatprep.mubr.f32.mxu0 0.0
  %845 = vmatmul.mubr.f32.gmra.mrb[0].mxu0 %v761
  %v846 = vpop.f32.mrb[0].mxu0
  %v847 = vadd.f32 0.0, %v846
  %v848 = vpop.f32.mrb[0].mxu0
  %849 = vdwg.mxu0
  %v851 = vsel %vm320, %v832, 0
  %v854 = vsel %vm320, %v837, 0
  %v857 = vsel %vm320, %v842, 0
  %v860 = vsel %vm320, %v847, 0
  %862 = vmatprep.subr.mxu0 0.0
  %863 = vmatpush1.msra.mxu0 %v121
  %864 = vmatprep.subr.mxu0 0.0
  %865 = vmatpush1.msra.mxu0 0.0
  %866 = vmatprep.subr.mxu0 0.0
  %867 = vmatpush1.msra.mxu0 0.0
  %868 = vmatprep.subr.mxu0 0.0
  %869 = vmatpush1.msra.mxu0 0.0
  %870 = vmatprep.subr.mxu0 0.0
  %871 = vmatpush1.msra.mxu0 0.0
  %872 = vmatprep.subr.mxu0 0.0
  %873 = vmatpush1.msra.mxu0 0.0
  %874 = vmatprep.subr.mxu0 0.0
  %875 = vmatpush1.msra.mxu0 0.0
  %876 = vmatprep.subr.mxu0 0.0
  %877 = vmatpush1.msra.mxu0 0.0
  %878 = vmatprep.subr.mxu0 0.0
  %879 = vmatpush1.msra.mxu0 0.0
  %880 = vmatprep.subr.mxu0 0.0
  %881 = vmatpush1.msra.mxu0 0.0
  %882 = vmatprep.subr.mxu0 0.0
  %883 = vmatpush1.msra.mxu0 0.0
  %884 = vmatprep.subr.mxu0 0.0
  %885 = vmatpush1.msra.mxu0 0.0
  %886 = vmatprep.subr.mxu0 0.0
  %887 = vmatpush1.msra.mxu0 0.0
  %888 = vmatprep.subr.mxu0 0.0
  %889 = vmatpush1.msra.mxu0 0.0
  %890 = vmatprep.subr.mxu0 0.0
  %891 = vmatpush1.msra.mxu0 0.0
  %892 = vmatprep.subr.mxu0 0.0
  %893 = vmatpush1.msra.mxu0 0.0
  %894 = vmatprep.subr.mxu0 0.0
  %895 = vmatpush1.msra.mxu0 0.0
  %896 = vmatprep.subr.mxu0 0.0
  %897 = vmatpush1.msra.mxu0 0.0
  %898 = vmatprep.subr.mxu0 0.0
  %899 = vmatpush1.msra.mxu0 0.0
  %900 = vmatprep.subr.mxu0 0.0
  %901 = vmatpush1.msra.mxu0 0.0
  %902 = vmatprep.subr.mxu0 0.0
  %903 = vmatpush1.msra.mxu0 0.0
  %904 = vmatprep.subr.mxu0 0.0
  %905 = vmatpush1.msra.mxu0 0.0
  %906 = vmatprep.subr.mxu0 0.0
  %907 = vmatpush1.msra.mxu0 0.0
  %908 = vmatprep.subr.mxu0 0.0
  %909 = vmatpush1.msra.mxu0 0.0
  %910 = vmatprep.subr.mxu0 0.0
  %911 = vmatpush1.msra.mxu0 0.0
  %912 = vmatprep.subr.mxu0 0.0
  %913 = vmatpush1.msra.mxu0 0.0
  %914 = vmatprep.subr.mxu0 0.0
  %915 = vmatpush1.msra.mxu0 0.0
  %916 = vmatprep.subr.mxu0 0.0
  %917 = vmatpush1.msra.mxu0 0.0
  %918 = vmatprep.subr.mxu0 0.0
  %919 = vmatpush1.msra.mxu0 0.0
  %920 = vmatprep.subr.mxu0 0.0
  %921 = vmatpush1.msra.mxu0 0.0
  %922 = vmatprep.subr.mxu0 0.0
  %923 = vmatpush1.msra.mxu0 0.0
  %924 = vmatprep.subr.mxu0 0.0
  %925 = vmatpush1.msra.mxu0 0.0
  %926 = vmatprep.mubr.f32.mxu0 0.0
  %927 = vmatmul.mubr.f32.gmra.mrb[0].mxu0 %v851
  %v928 = vpop.f32.mrb[0].mxu0
  %v929 = vadd.f32 0.0, %v928
  %v930 = vpop.f32.mrb[0].mxu0
  %931 = vmatprep.mubr.f32.mxu0 0.0
  %932 = vmatmul.mubr.f32.gmra.mrb[0].mxu0 %v854
  %v933 = vpop.f32.mrb[0].mxu0
  %v934 = vadd.f32 0.0, %v933
  %v935 = vpop.f32.mrb[0].mxu0
  %936 = vmatprep.mubr.f32.mxu0 0.0
  %937 = vmatmul.mubr.f32.gmra.mrb[0].mxu0 %v857
  %v938 = vpop.f32.mrb[0].mxu0
  %v939 = vadd.f32 0.0, %v938
  %v940 = vpop.f32.mrb[0].mxu0
  %941 = vmatprep.mubr.f32.mxu0 0.0
  %942 = vmatmul.mubr.f32.gmra.mrb[0].mxu0 %v860
  %v943 = vpop.f32.mrb[0].mxu0
  %v944 = vadd.f32 0.0, %v943
  %v945 = vpop.f32.mrb[0].mxu0
  %946 = vdwg.mxu0
  %v948 = vsel %vm320, %v561, 0
  %v951 = vsel %vm320, %v566, 0
  %v954 = vsel %vm320, %v571, 0
  %v957 = vsel %vm320, %v576, 0
  %959 = vmatprep.subr.mxu0 0.0
  %960 = vmatpush1.msra.mxu0 %v120
  %961 = vmatprep.subr.mxu0 0.0
  %962 = vmatpush1.msra.mxu0 0.0
  %963 = vmatprep.subr.mxu0 0.0
  %964 = vmatpush1.msra.mxu0 0.0
  %965 = vmatprep.subr.mxu0 0.0
  %966 = vmatpush1.msra.mxu0 0.0
  %967 = vmatprep.subr.mxu0 0.0
  %968 = vmatpush1.msra.mxu0 0.0
  %969 = vmatprep.subr.mxu0 0.0
  %970 = vmatpush1.msra.mxu0 0.0
  %971 = vmatprep.subr.mxu0 0.0
  %972 = vmatpush1.msra.mxu0 0.0
  %973 = vmatprep.subr.mxu0 0.0
  %974 = vmatpush1.msra.mxu0 0.0
  %975 = vmatprep.subr.mxu0 0.0
  %976 = vmatpush1.msra.mxu0 0.0
  %977 = vmatprep.subr.mxu0 0.0
  %978 = vmatpush1.msra.mxu0 0.0
  %979 = vmatprep.subr.mxu0 0.0
  %980 = vmatpush1.msra.mxu0 0.0
  %981 = vmatprep.subr.mxu0 0.0
  %982 = vmatpush1.msra.mxu0 0.0
  %983 = vmatprep.subr.mxu0 0.0
  %984 = vmatpush1.msra.mxu0 0.0
  %985 = vmatprep.subr.mxu0 0.0
  %986 = vmatpush1.msra.mxu0 0.0
  %987 = vmatprep.subr.mxu0 0.0
  %988 = vmatpush1.msra.mxu0 0.0
  %989 = vmatprep.subr.mxu0 0.0
  %990 = vmatpush1.msra.mxu0 0.0
  %991 = vmatprep.subr.mxu0 0.0
  %992 = vmatpush1.msra.mxu0 0.0
  %993 = vmatprep.subr.mxu0 0.0
  %994 = vmatpush1.msra.mxu0 0.0
  %995 = vmatprep.subr.mxu0 0.0
  %996 = vmatpush1.msra.mxu0 0.0
  %997 = vmatprep.subr.mxu0 0.0
  %998 = vmatpush1.msra.mxu0 0.0
  %999 = vmatprep.subr.mxu0 0.0
  %1000 = vmatpush1.msra.mxu0 0.0
  %1001 = vmatprep.subr.mxu0 0.0
  %1002 = vmatpush1.msra.mxu0 0.0
  %1003 = vmatprep.subr.mxu0 0.0
  %1004 = vmatpush1.msra.mxu0 0.0
  %1005 = vmatprep.subr.mxu0 0.0
  %1006 = vmatpush1.msra.mxu0 0.0
  %1007 = vmatprep.subr.mxu0 0.0
  %1008 = vmatpush1.msra.mxu0 0.0
  %1009 = vmatprep.subr.mxu0 0.0
  %1010 = vmatpush1.msra.mxu0 0.0
  %1011 = vmatprep.subr.mxu0 0.0
  %1012 = vmatpush1.msra.mxu0 0.0
  %1013 = vmatprep.subr.mxu0 0.0
  %1014 = vmatpush1.msra.mxu0 0.0
  %1015 = vmatprep.subr.mxu0 0.0
  %1016 = vmatpush1.msra.mxu0 0.0
  %1017 = vmatprep.subr.mxu0 0.0
  %1018 = vmatpush1.msra.mxu0 0.0
  %1019 = vmatprep.subr.mxu0 0.0
  %1020 = vmatpush1.msra.mxu0 0.0
  %1021 = vmatprep.subr.mxu0 0.0
  %1022 = vmatpush1.msra.mxu0 0.0
  %1023 = vmatprep.mubr.f32.mxu0 0.0
  %1024 = vmatmul.mubr.f32.gmra.mrb[0].mxu0 %v948
  %v1025 = vpop.f32.mrb[0].mxu0
  %v1026 = vadd.f32 %v929, %v1025
  %v1027 = vpop.f32.mrb[0].mxu0
  %1028 = vmatprep.mubr.f32.mxu0 0.0
  %1029 = vmatmul.mubr.f32.gmra.mrb[0].mxu0 %v951
  %v1030 = vpop.f32.mrb[0].mxu0
  %v1031 = vadd.f32 %v934, %v1030
  %v1032 = vpop.f32.mrb[0].mxu0
  %1033 = vmatprep.mubr.f32.mxu0 0.0
  %1034 = vmatmul.mubr.f32.gmra.mrb[0].mxu0 %v954
  %v1035 = vpop.f32.mrb[0].mxu0
  %v1036 = vadd.f32 %v939, %v1035
  %v1037 = vpop.f32.mrb[0].mxu0
  %1038 = vmatprep.mubr.f32.mxu0 0.0
  %1039 = vmatmul.mubr.f32.gmra.mrb[0].mxu0 %v957
  %v1040 = vpop.f32.mrb[0].mxu0
  %v1041 = vadd.f32 %v944, %v1040
  %v1042 = vpop.f32.mrb[0].mxu0
  %1043 = vdwg.mxu0
  %1044 = vrot.lane.b32.xlu0 %v290, 112
  %v1045 = vpop.permute.xlu0 %1044
  %1046 = vrot.lane.b32.xlu0 %v295, 112
  %v1047 = vpop.permute.xlu0 %1046
  %1048 = vrot.lane.b32.xlu0 %v300, 112
  %v1049 = vpop.permute.xlu0 %1048
  %1050 = vrot.lane.b32.xlu0 %v305, 112
  %v1051 = vpop.permute.xlu0 %1050
  %1052 = vrot.lane.b32.xlu0 %v290, 80
  %v1053 = vpop.permute.xlu0 %1052
  %1054 = vrot.lane.b32.xlu0 %v295, 80
  %v1055 = vpop.permute.xlu0 %1054
  %1056 = vrot.lane.b32.xlu0 %v300, 80
  %v1057 = vpop.permute.xlu0 %1056
  %1058 = vrot.lane.b32.xlu0 %v305, 80
  %v1059 = vpop.permute.xlu0 %1058
  %v1060 = vsel %vm320, %v1045, 0
  %v1062 = vsel %vm320, %v1047, 0
  %v1064 = vsel %vm320, %v1049, 0
  %v1066 = vsel %vm320, %v1051, 0
  %v1068 = vsel %vm320, %v1053, 0
  %v1070 = vsel %vm320, %v1055, 0
  %v1072 = vsel %vm320, %v1057, 0
  %v1074 = vsel %vm320, %v1059, 0
  %1076 = vmatprep.subr.mxu0 0.0
  %1077 = vmatpush1.xpose.msra.mxu0 %v1068
  %1078 = vmatprep.subr.mxu0 0.0
  %1079 = vmatpush1.xpose.msra.mxu0 %v1070
  %1080 = vmatprep.subr.mxu0 0.0
  %1081 = vmatpush1.xpose.msra.mxu0 %v1072
  %1082 = vmatprep.subr.mxu0 0.0
  %1083 = vmatpush1.xpose.msra.mxu0 %v1074
  %1084 = vmatprep.subr.mxu0 0.0
  %1085 = vmatpush1.xpose.msra.mxu0 0.0
  %1086 = vmatprep.subr.mxu0 0.0
  %1087 = vmatpush1.xpose.msra.mxu0 0.0
  %1088 = vmatprep.subr.mxu0 0.0
  %1089 = vmatpush1.xpose.msra.mxu0 0.0
  %1090 = vmatprep.subr.mxu0 0.0
  %1091 = vmatpush1.xpose.msra.mxu0 0.0
  %1092 = vmatprep.subr.mxu0 0.0
  %1093 = vmatpush1.xpose.msra.mxu0 0.0
  %1094 = vmatprep.subr.mxu0 0.0
  %1095 = vmatpush1.xpose.msra.mxu0 0.0
  %1096 = vmatprep.subr.mxu0 0.0
  %1097 = vmatpush1.xpose.msra.mxu0 0.0
  %1098 = vmatprep.subr.mxu0 0.0
  %1099 = vmatpush1.xpose.msra.mxu0 0.0
  %1100 = vmatprep.subr.mxu0 0.0
  %1101 = vmatpush1.xpose.msra.mxu0 0.0
  %1102 = vmatprep.subr.mxu0 0.0
  %1103 = vmatpush1.xpose.msra.mxu0 0.0
  %1104 = vmatprep.subr.mxu0 0.0
  %1105 = vmatpush1.xpose.msra.mxu0 0.0
  %1106 = vmatprep.subr.mxu0 0.0
  %1107 = vmatpush1.xpose.msra.mxu0 0.0
  %1108 = vmatprep.subr.mxu0 0.0
  %1109 = vmatpush1.xpose.msra.mxu0 0.0
  %1110 = vmatprep.subr.mxu0 0.0
  %1111 = vmatpush1.xpose.msra.mxu0 0.0
  %1112 = vmatprep.subr.mxu0 0.0
  %1113 = vmatpush1.xpose.msra.mxu0 0.0
  %1114 = vmatprep.subr.mxu0 0.0
  %1115 = vmatpush1.xpose.msra.mxu0 0.0
  %1116 = vmatprep.subr.mxu0 0.0
  %1117 = vmatpush1.xpose.msra.mxu0 0.0
  %1118 = vmatprep.subr.mxu0 0.0
  %1119 = vmatpush1.xpose.msra.mxu0 0.0
  %1120 = vmatprep.subr.mxu0 0.0
  %1121 = vmatpush1.xpose.msra.mxu0 0.0
  %1122 = vmatprep.subr.mxu0 0.0
  %1123 = vmatpush1.xpose.msra.mxu0 0.0
  %1124 = vmatprep.subr.mxu0 0.0
  %1125 = vmatpush1.xpose.msra.mxu0 0.0
  %1126 = vmatprep.subr.mxu0 0.0
  %1127 = vmatpush1.xpose.msra.mxu0 0.0
  %1128 = vmatprep.subr.mxu0 0.0
  %1129 = vmatpush1.xpose.msra.mxu0 0.0
  %1130 = vmatprep.subr.mxu0 0.0
  %1131 = vmatpush1.xpose.msra.mxu0 0.0
  %1132 = vmatprep.subr.mxu0 0.0
  %1133 = vmatpush1.xpose.msra.mxu0 0.0
  %1134 = vmatprep.subr.mxu0 0.0
  %1135 = vmatpush1.xpose.msra.mxu0 0.0
  %1136 = vmatprep.subr.mxu0 0.0
  %1137 = vmatpush1.xpose.msra.mxu0 0.0
  %1138 = vmatprep.subr.mxu0 0.0
  %1139 = vmatpush1.xpose.msra.mxu0 0.0
  %1140 = vmatprep.mubr.f32.mxu0 0.0
  %1141 = vmatmul.mubr.f32.gmra.mrb[0].mxu0 %v1060
  %v1142 = vpop.f32.mrb[0].mxu0
  %v1143 = vadd.f32 %v116, %v1142
  %v1144 = vpop.f32.mrb[0].mxu0
  %1145 = vmatprep.mubr.f32.mxu0 0.0
  %1146 = vmatmul.mubr.f32.gmra.mrb[0].mxu0 %v1062
  %v1147 = vpop.f32.mrb[0].mxu0
  %v1148 = vadd.f32 %v117, %v1147
  %v1149 = vpop.f32.mrb[0].mxu0
  %1150 = vmatprep.mubr.f32.mxu0 0.0
  %1151 = vmatmul.mubr.f32.gmra.mrb[0].mxu0 %v1064
  %v1152 = vpop.f32.mrb[0].mxu0
  %v1153 = vadd.f32 %v118, %v1152
  %v1154 = vpop.f32.mrb[0].mxu0
  %1155 = vmatprep.mubr.f32.mxu0 0.0
  %1156 = vmatmul.mubr.f32.gmra.mrb[0].mxu0 %v1066
  %v1157 = vpop.f32.mrb[0].mxu0
  %v1158 = vadd.f32 %v119, %v1157
  %v1159 = vpop.f32.mrb[0].mxu0
  %1160 = vdwg.mxu0
  %v1161 = vsel %vm422, %v1143, -inf
  %1162 = vmax.xlane.f32.xlu0 %v1161
  %v1163 = vpop.xlane.xlu0 %1162
  %v1164 = vsel %vm422, %v1148, -inf
  %1165 = vmax.xlane.f32.xlu0 %v1164
  %v1166 = vpop.xlane.xlu0 %1165
  %v1167 = vsel %vm422, %v1153, -inf
  %1168 = vmax.xlane.f32.xlu0 %v1167
  %v1169 = vpop.xlane.xlu0 %1168
  %v1170 = vsel %vm432, %v1158, -inf
  %1171 = vmax.xlane.f32.xlu0 %v1170
  %v1172 = vpop.xlane.xlu0 %1171
  %v1173 = vsub.f32 %v1143, %v1163
  %v1174 = vsub.f32 %v1148, %v1166
  %v1175 = vsub.f32 %v1153, %v1169
  %v1176 = vsub.f32 %v1158, %v1172
  %v1177 = vmul.f32 %v1173, 1.442695
  %v1178 = vpow.pop %v1177
  %v1179 = vmul.f32 %v1174, 1.442695
  %v1180 = vpow.pop %v1179
  %v1181 = vmul.f32 %v1175, 1.442695
  %v1182 = vpow.pop %v1181
  %v1183 = vmul.f32 %v1176, 1.442695
  %v1184 = vpow.pop %v1183
  %v1185 = vsel %vm422, %v1178, 0.0
  %1186 = vadd.xlane.f32.xlu0 %v1185
  %v1187 = vpop.xlane.xlu0 %1186
  %v1188 = vsel %vm422, %v1180, 0.0
  %1189 = vadd.xlane.f32.xlu0 %v1188
  %v1190 = vpop.xlane.xlu0 %1189
  %v1191 = vsel %vm422, %v1182, 0.0
  %1192 = vadd.xlane.f32.xlu0 %v1191
  %v1193 = vpop.xlane.xlu0 %1192
  %v1194 = vsel %vm432, %v1184, 0.0
  %1195 = vadd.xlane.f32.xlu0 %v1194
  %v1196 = vpop.xlane.xlu0 %1195
  %v1197 = vrcp.pop %v1187
  %v1198 = vrcp.pop %v1190
  %v1199 = vrcp.pop %v1193
  %v1200 = vrcp.pop %v1196
  %v1201 = vmul.f32 %v1178, %v1197
  %v1202 = vmul.f32 %v1180, %v1198
  %v1203 = vmul.f32 %v1182, %v1199
  %v1204 = vmul.f32 %v1184, %v1200
  %1205 = vrot.lane.b32.xlu0 %v290, 48
  %v1206 = vpop.permute.xlu0 %1205
  %1207 = vrot.lane.b32.xlu0 %v295, 48
  %v1208 = vpop.permute.xlu0 %1207
  %1209 = vrot.lane.b32.xlu0 %v300, 48
  %v1210 = vpop.permute.xlu0 %1209
  %1211 = vrot.lane.b32.xlu0 %v305, 48
  %v1212 = vpop.permute.xlu0 %1211
  %v1217 = vsel %vm422, %v1201, 0
  %v1220 = vsel %vm422, %v1202, 0
  %v1223 = vsel %vm422, %v1203, 0
  %v1226 = vsel %vm422, %v1204, 0
  %v1228 = vsel %vm491, %v1212, 0
  %1230 = vmatprep.subr.mxu0 0.0
  %1231 = vmatpush1.msra.mxu0 %v1206
  %1232 = vmatprep.subr.mxu0 0.0
  %1233 = vmatpush1.msra.mxu0 %v1208
  %1234 = vmatprep.subr.mxu0 0.0
  %1235 = vmatpush1.msra.mxu0 %v1210
  %1236 = vmatprep.subr.mxu0 0.0
  %1237 = vmatpush1.msra.mxu0 %v1228
  %1238 = vmatprep.subr.mxu0 0.0
  %1239 = vmatpush1.msra.mxu0 0.0
  %1240 = vmatprep.subr.mxu0 0.0
  %1241 = vmatpush1.msra.mxu0 0.0
  %1242 = vmatprep.subr.mxu0 0.0
  %1243 = vmatpush1.msra.mxu0 0.0
  %1244 = vmatprep.subr.mxu0 0.0
  %1245 = vmatpush1.msra.mxu0 0.0
  %1246 = vmatprep.subr.mxu0 0.0
  %1247 = vmatpush1.msra.mxu0 0.0
  %1248 = vmatprep.subr.mxu0 0.0
  %1249 = vmatpush1.msra.mxu0 0.0
  %1250 = vmatprep.subr.mxu0 0.0
  %1251 = vmatpush1.msra.mxu0 0.0
  %1252 = vmatprep.subr.mxu0 0.0
  %1253 = vmatpush1.msra.mxu0 0.0
  %1254 = vmatprep.subr.mxu0 0.0
  %1255 = vmatpush1.msra.mxu0 0.0
  %1256 = vmatprep.subr.mxu0 0.0
  %1257 = vmatpush1.msra.mxu0 0.0
  %1258 = vmatprep.subr.mxu0 0.0
  %1259 = vmatpush1.msra.mxu0 0.0
  %1260 = vmatprep.subr.mxu0 0.0
  %1261 = vmatpush1.msra.mxu0 0.0
  %1262 = vmatprep.subr.mxu0 0.0
  %1263 = vmatpush1.msra.mxu0 0.0
  %1264 = vmatprep.subr.mxu0 0.0
  %1265 = vmatpush1.msra.mxu0 0.0
  %1266 = vmatprep.subr.mxu0 0.0
  %1267 = vmatpush1.msra.mxu0 0.0
  %1268 = vmatprep.subr.mxu0 0.0
  %1269 = vmatpush1.msra.mxu0 0.0
  %1270 = vmatprep.subr.mxu0 0.0
  %1271 = vmatpush1.msra.mxu0 0.0
  %1272 = vmatprep.subr.mxu0 0.0
  %1273 = vmatpush1.msra.mxu0 0.0
  %1274 = vmatprep.subr.mxu0 0.0
  %1275 = vmatpush1.msra.mxu0 0.0
  %1276 = vmatprep.subr.mxu0 0.0
  %1277 = vmatpush1.msra.mxu0 0.0
  %1278 = vmatprep.subr.mxu0 0.0
  %1279 = vmatpush1.msra.mxu0 0.0
  %1280 = vmatprep.subr.mxu0 0.0
  %1281 = vmatpush1.msra.mxu0 0.0
  %1282 = vmatprep.subr.mxu0 0.0
  %1283 = vmatpush1.msra.mxu0 0.0
  %1284 = vmatprep.subr.mxu0 0.0
  %1285 = vmatpush1.msra.mxu0 0.0
  %1286 = vmatprep.subr.mxu0 0.0
  %1287 = vmatpush1.msra.mxu0 0.0
  %1288 = vmatprep.subr.mxu0 0.0
  %1289 = vmatpush1.msra.mxu0 0.0
  %1290 = vmatprep.subr.mxu0 0.0
  %1291 = vmatpush1.msra.mxu0 0.0
  %1292 = vmatprep.subr.mxu0 0.0
  %1293 = vmatpush1.msra.mxu0 0.0
  %1294 = vmatprep.mubr.f32.mxu0 0.0
  %1295 = vmatmul.mubr.f32.gmra.mrb[0].mxu0 %v1217
  %v1296 = vpop.f32.mrb[0].mxu0
  %v1297 = vadd.f32 0.0, %v1296
  %v1298 = vpop.f32.mrb[0].mxu0
  %1299 = vmatprep.mubr.f32.mxu0 0.0
  %1300 = vmatmul.mubr.f32.gmra.mrb[0].mxu0 %v1220
  %v1301 = vpop.f32.mrb[0].mxu0
  %v1302 = vadd.f32 0.0, %v1301
  %v1303 = vpop.f32.mrb[0].mxu0
  %1304 = vmatprep.mubr.f32.mxu0 0.0
  %1305 = vmatmul.mubr.f32.gmra.mrb[0].mxu0 %v1223
  %v1306 = vpop.f32.mrb[0].mxu0
  %v1307 = vadd.f32 0.0, %v1306
  %v1308 = vpop.f32.mrb[0].mxu0
  %1309 = vmatprep.mubr.f32.mxu0 0.0
  %1310 = vmatmul.mubr.f32.gmra.mrb[0].mxu0 %v1226
  %v1311 = vpop.f32.mrb[0].mxu0
  %v1312 = vadd.f32 0.0, %v1311
  %v1313 = vpop.f32.mrb[0].mxu0
  %1314 = vdwg.mxu0
  %v1316 = vsel %vm320, %v1297, 0
  %v1319 = vsel %vm320, %v1302, 0
  %v1322 = vsel %vm320, %v1307, 0
  %v1325 = vsel %vm320, %v1312, 0
  %1327 = vmatprep.subr.mxu0 0.0
  %1328 = vmatpush1.msra.mxu0 %v122
  %1329 = vmatprep.subr.mxu0 0.0
  %1330 = vmatpush1.msra.mxu0 0.0
  %1331 = vmatprep.subr.mxu0 0.0
  %1332 = vmatpush1.msra.mxu0 0.0
  %1333 = vmatprep.subr.mxu0 0.0
  %1334 = vmatpush1.msra.mxu0 0.0
  %1335 = vmatprep.subr.mxu0 0.0
  %1336 = vmatpush1.msra.mxu0 0.0
  %1337 = vmatprep.subr.mxu0 0.0
  %1338 = vmatpush1.msra.mxu0 0.0
  %1339 = vmatprep.subr.mxu0 0.0
  %1340 = vmatpush1.msra.mxu0 0.0
  %1341 = vmatprep.subr.mxu0 0.0
  %1342 = vmatpush1.msra.mxu0 0.0
  %1343 = vmatprep.subr.mxu0 0.0
  %1344 = vmatpush1.msra.mxu0 0.0
  %1345 = vmatprep.subr.mxu0 0.0
  %1346 = vmatpush1.msra.mxu0 0.0
  %1347 = vmatprep.subr.mxu0 0.0
  %1348 = vmatpush1.msra.mxu0 0.0
  %1349 = vmatprep.subr.mxu0 0.0
  %1350 = vmatpush1.msra.mxu0 0.0
  %1351 = vmatprep.subr.mxu0 0.0
  %1352 = vmatpush1.msra.mxu0 0.0
  %1353 = vmatprep.subr.mxu0 0.0
  %1354 = vmatpush1.msra.mxu0 0.0
  %1355 = vmatprep.subr.mxu0 0.0
  %1356 = vmatpush1.msra.mxu0 0.0
  %1357 = vmatprep.subr.mxu0 0.0
  %1358 = vmatpush1.msra.mxu0 0.0
  %1359 = vmatprep.subr.mxu0 0.0
  %1360 = vmatpush1.msra.mxu0 0.0
  %1361 = vmatprep.subr.mxu0 0.0
  %1362 = vmatpush1.msra.mxu0 0.0
  %1363 = vmatprep.subr.mxu0 0.0
  %1364 = vmatpush1.msra.mxu0 0.0
  %1365 = vmatprep.subr.mxu0 0.0
  %1366 = vmatpush1.msra.mxu0 0.0
  %1367 = vmatprep.subr.mxu0 0.0
  %1368 = vmatpush1.msra.mxu0 0.0
  %1369 = vmatprep.subr.mxu0 0.0
  %1370 = vmatpush1.msra.mxu0 0.0
  %1371 = vmatprep.subr.mxu0 0.0
  %1372 = vmatpush1.msra.mxu0 0.0
  %1373 = vmatprep.subr.mxu0 0.0
  %1374 = vmatpush1.msra.mxu0 0.0
  %1375 = vmatprep.subr.mxu0 0.0
  %1376 = vmatpush1.msra.mxu0 0.0
  %1377 = vmatprep.subr.mxu0 0.0
  %1378 = vmatpush1.msra.mxu0 0.0
  %1379 = vmatprep.subr.mxu0 0.0
  %1380 = vmatpush1.msra.mxu0 0.0
  %1381 = vmatprep.subr.mxu0 0.0
  %1382 = vmatpush1.msra.mxu0 0.0
  %1383 = vmatprep.subr.mxu0 0.0
  %1384 = vmatpush1.msra.mxu0 0.0
  %1385 = vmatprep.subr.mxu0 0.0
  %1386 = vmatpush1.msra.mxu0 0.0
  %1387 = vmatprep.subr.mxu0 0.0
  %1388 = vmatpush1.msra.mxu0 0.0
  %1389 = vmatprep.subr.mxu0 0.0
  %1390 = vmatpush1.msra.mxu0 0.0
  %1391 = vmatprep.mubr.f32.mxu0 0.0
  %1392 = vmatmul.mubr.f32.gmra.mrb[0].mxu0 %v1316
  %v1393 = vpop.f32.mrb[0].mxu0
  %v1394 = vadd.f32 0.0, %v1393
  %v1395 = vpop.f32.mrb[0].mxu0
  %1396 = vmatprep.mubr.f32.mxu0 0.0
  %1397 = vmatmul.mubr.f32.gmra.mrb[0].mxu0 %v1319
  %v1398 = vpop.f32.mrb[0].mxu0
  %v1399 = vadd.f32 0.0, %v1398
  %v1400 = vpop.f32.mrb[0].mxu0
  %1401 = vmatprep.mubr.f32.mxu0 0.0
  %1402 = vmatmul.mubr.f32.gmra.mrb[0].mxu0 %v1322
  %v1403 = vpop.f32.mrb[0].mxu0
  %v1404 = vadd.f32 0.0, %v1403
  %v1405 = vpop.f32.mrb[0].mxu0
  %1406 = vmatprep.mubr.f32.mxu0 0.0
  %1407 = vmatmul.mubr.f32.gmra.mrb[0].mxu0 %v1325
  %v1408 = vpop.f32.mrb[0].mxu0
  %v1409 = vadd.f32 0.0, %v1408
  %v1410 = vpop.f32.mrb[0].mxu0
  %1411 = vdwg.mxu0
  %v1412 = vadd.f32 %v1026, %v1394
  %v1413 = vadd.f32 %v1031, %v1399
  %v1414 = vadd.f32 %v1036, %v1404
  %v1415 = vadd.f32 %v1041, %v1409
  %1416 = vrot.lane.b32.xlu0 %v290, 104
  %v1417 = vpop.permute.xlu0 %1416
  %1418 = vrot.lane.b32.xlu0 %v295, 104
  %v1419 = vpop.permute.xlu0 %1418
  %1420 = vrot.lane.b32.xlu0 %v300, 104
  %v1421 = vpop.permute.xlu0 %1420
  %1422 = vrot.lane.b32.xlu0 %v305, 104
  %v1423 = vpop.permute.xlu0 %1422
  %1424 = vrot.lane.b32.xlu0 %v290, 72
  %v1425 = vpop.permute.xlu0 %1424
  %1426 = vrot.lane.b32.xlu0 %v295, 72
  %v1427 = vpop.permute.xlu0 %1426
  %1428 = vrot.lane.b32.xlu0 %v300, 72
  %v1429 = vpop.permute.xlu0 %1428
  %1430 = vrot.lane.b32.xlu0 %v305, 72
  %v1431 = vpop.permute.xlu0 %1430
  %v1432 = vsel %vm320, %v1417, 0
  %v1434 = vsel %vm320, %v1419, 0
  %v1436 = vsel %vm320, %v1421, 0
  %v1438 = vsel %vm320, %v1423, 0
  %v1440 = vsel %vm320, %v1425, 0
  %v1442 = vsel %vm320, %v1427, 0
  %v1444 = vsel %vm320, %v1429, 0
  %v1446 = vsel %vm320, %v1431, 0
  %1448 = vmatprep.subr.mxu0 0.0
  %1449 = vmatpush1.xpose.msra.mxu0 %v1440
  %1450 = vmatprep.subr.mxu0 0.0
  %1451 = vmatpush1.xpose.msra.mxu0 %v1442
  %1452 = vmatprep.subr.mxu0 0.0
  %1453 = vmatpush1.xpose.msra.mxu0 %v1444
  %1454 = vmatprep.subr.mxu0 0.0
  %1455 = vmatpush1.xpose.msra.mxu0 %v1446
  %1456 = vmatprep.subr.mxu0 0.0
  %1457 = vmatpush1.xpose.msra.mxu0 0.0
  %1458 = vmatprep.subr.mxu0 0.0
  %1459 = vmatpush1.xpose.msra.mxu0 0.0
  %1460 = vmatprep.subr.mxu0 0.0
  %1461 = vmatpush1.xpose.msra.mxu0 0.0
  %1462 = vmatprep.subr.mxu0 0.0
  %1463 = vmatpush1.xpose.msra.mxu0 0.0
  %1464 = vmatprep.subr.mxu0 0.0
  %1465 = vmatpush1.xpose.msra.mxu0 0.0
  %1466 = vmatprep.subr.mxu0 0.0
  %1467 = vmatpush1.xpose.msra.mxu0 0.0
  %1468 = vmatprep.subr.mxu0 0.0
  %1469 = vmatpush1.xpose.msra.mxu0 0.0
  %1470 = vmatprep.subr.mxu0 0.0
  %1471 = vmatpush1.xpose.msra.mxu0 0.0
  %1472 = vmatprep.subr.mxu0 0.0
  %1473 = vmatpush1.xpose.msra.mxu0 0.0
  %1474 = vmatprep.subr.mxu0 0.0
  %1475 = vmatpush1.xpose.msra.mxu0 0.0
  %1476 = vmatprep.subr.mxu0 0.0
  %1477 = vmatpush1.xpose.msra.mxu0 0.0
  %1478 = vmatprep.subr.mxu0 0.0
  %1479 = vmatpush1.xpose.msra.mxu0 0.0
  %1480 = vmatprep.subr.mxu0 0.0
  %1481 = vmatpush1.xpose.msra.mxu0 0.0
  %1482 = vmatprep.subr.mxu0 0.0
  %1483 = vmatpush1.xpose.msra.mxu0 0.0
  %1484 = vmatprep.subr.mxu0 0.0
  %1485 = vmatpush1.xpose.msra.mxu0 0.0
  %1486 = vmatprep.subr.mxu0 0.0
  %1487 = vmatpush1.xpose.msra.mxu0 0.0
  %1488 = vmatprep.subr.mxu0 0.0
  %1489 = vmatpush1.xpose.msra.mxu0 0.0
  %1490 = vmatprep.subr.mxu0 0.0
  %1491 = vmatpush1.xpose.msra.mxu0 0.0
  %1492 = vmatprep.subr.mxu0 0.0
  %1493 = vmatpush1.xpose.msra.mxu0 0.0
  %1494 = vmatprep.subr.mxu0 0.0
  %1495 = vmatpush1.xpose.msra.mxu0 0.0
  %1496 = vmatprep.subr.mxu0 0.0
  %1497 = vmatpush1.xpose.msra.mxu0 0.0
  %1498 = vmatprep.subr.mxu0 0.0
  %1499 = vmatpush1.xpose.msra.mxu0 0.0
  %1500 = vmatprep.subr.mxu0 0.0
  %1501 = vmatpush1.xpose.msra.mxu0 0.0
  %1502 = vmatprep.subr.mxu0 0.0
  %1503 = vmatpush1.xpose.msra.mxu0 0.0
  %1504 = vmatprep.subr.mxu0 0.0
  %1505 = vmatpush1.xpose.msra.mxu0 0.0
  %1506 = vmatprep.subr.mxu0 0.0
  %1507 = vmatpush1.xpose.msra.mxu0 0.0
  %1508 = vmatprep.subr.mxu0 0.0
  %1509 = vmatpush1.xpose.msra.mxu0 0.0
  %1510 = vmatprep.subr.mxu0 0.0
  %1511 = vmatpush1.xpose.msra.mxu0 0.0
  %1512 = vmatprep.mubr.f32.mxu0 0.0
  %1513 = vmatmul.mubr.f32.gmra.mrb[0].mxu0 %v1432
  %v1514 = vpop.f32.mrb[0].mxu0
  %v1515 = vadd.f32 %v116, %v1514
  %v1516 = vpop.f32.mrb[0].mxu0
  %1517 = vmatprep.mubr.f32.mxu0 0.0
  %1518 = vmatmul.mubr.f32.gmra.mrb[0].mxu0 %v1434
  %v1519 = vpop.f32.mrb[0].mxu0
  %v1520 = vadd.f32 %v117, %v1519
  %v1521 = vpop.f32.mrb[0].mxu0
  %1522 = vmatprep.mubr.f32.mxu0 0.0
  %1523 = vmatmul.mubr.f32.gmra.mrb[0].mxu0 %v1436
  %v1524 = vpop.f32.mrb[0].mxu0
  %v1525 = vadd.f32 %v118, %v1524
  %v1526 = vpop.f32.mrb[0].mxu0
  %1527 = vmatprep.mubr.f32.mxu0 0.0
  %1528 = vmatmul.mubr.f32.gmra.mrb[0].mxu0 %v1438
  %v1529 = vpop.f32.mrb[0].mxu0
  %v1530 = vadd.f32 %v119, %v1529
  %v1531 = vpop.f32.mrb[0].mxu0
  %1532 = vdwg.mxu0
  %v1533 = vsel %vm422, %v1515, -inf
  %1534 = vmax.xlane.f32.xlu0 %v1533
  %v1535 = vpop.xlane.xlu0 %1534
  %v1536 = vsel %vm422, %v1520, -inf
  %1537 = vmax.xlane.f32.xlu0 %v1536
  %v1538 = vpop.xlane.xlu0 %1537
  %v1539 = vsel %vm422, %v1525, -inf
  %1540 = vmax.xlane.f32.xlu0 %v1539
  %v1541 = vpop.xlane.xlu0 %1540
  %v1542 = vsel %vm432, %v1530, -inf
  %1543 = vmax.xlane.f32.xlu0 %v1542
  %v1544 = vpop.xlane.xlu0 %1543
  %v1545 = vsub.f32 %v1515, %v1535
  %v1546 = vsub.f32 %v1520, %v1538
  %v1547 = vsub.f32 %v1525, %v1541
  %v1548 = vsub.f32 %v1530, %v1544
  %v1549 = vmul.f32 %v1545, 1.442695
  %v1550 = vpow.pop %v1549
  %v1551 = vmul.f32 %v1546, 1.442695
  %v1552 = vpow.pop %v1551
  %v1553 = vmul.f32 %v1547, 1.442695
  %v1554 = vpow.pop %v1553
  %v1555 = vmul.f32 %v1548, 1.442695
  %v1556 = vpow.pop %v1555
  %v1557 = vsel %vm422, %v1550, 0.0
  %1558 = vadd.xlane.f32.xlu0 %v1557
  %v1559 = vpop.xlane.xlu0 %1558
  %v1560 = vsel %vm422, %v1552, 0.0
  %1561 = vadd.xlane.f32.xlu0 %v1560
  %v1562 = vpop.xlane.xlu0 %1561
  %v1563 = vsel %vm422, %v1554, 0.0
  %1564 = vadd.xlane.f32.xlu0 %v1563
  %v1565 = vpop.xlane.xlu0 %1564
  %v1566 = vsel %vm432, %v1556, 0.0
  %1567 = vadd.xlane.f32.xlu0 %v1566
  %v1568 = vpop.xlane.xlu0 %1567
  %v1569 = vrcp.pop %v1559
  %v1570 = vrcp.pop %v1562
  %v1571 = vrcp.pop %v1565
  %v1572 = vrcp.pop %v1568
  %v1573 = vmul.f32 %v1550, %v1569
  %v1574 = vmul.f32 %v1552, %v1570
  %v1575 = vmul.f32 %v1554, %v1571
  %v1576 = vmul.f32 %v1556, %v1572
  %1577 = vrot.lane.b32.xlu0 %v290, 40
  %v1578 = vpop.permute.xlu0 %1577
  %1579 = vrot.lane.b32.xlu0 %v295, 40
  %v1580 = vpop.permute.xlu0 %1579
  %1581 = vrot.lane.b32.xlu0 %v300, 40
  %v1582 = vpop.permute.xlu0 %1581
  %1583 = vrot.lane.b32.xlu0 %v305, 40
  %v1584 = vpop.permute.xlu0 %1583
  %v1589 = vsel %vm422, %v1573, 0
  %v1592 = vsel %vm422, %v1574, 0
  %v1595 = vsel %vm422, %v1575, 0
  %v1598 = vsel %vm422, %v1576, 0
  %v1600 = vsel %vm491, %v1584, 0
  %1602 = vmatprep.subr.mxu0 0.0
  %1603 = vmatpush1.msra.mxu0 %v1578
  %1604 = vmatprep.subr.mxu0 0.0
  %1605 = vmatpush1.msra.mxu0 %v1580
  %1606 = vmatprep.subr.mxu0 0.0
  %1607 = vmatpush1.msra.mxu0 %v1582
  %1608 = vmatprep.subr.mxu0 0.0
  %1609 = vmatpush1.msra.mxu0 %v1600
  %1610 = vmatprep.subr.mxu0 0.0
  %1611 = vmatpush1.msra.mxu0 0.0
  %1612 = vmatprep.subr.mxu0 0.0
  %1613 = vmatpush1.msra.mxu0 0.0
  %1614 = vmatprep.subr.mxu0 0.0
  %1615 = vmatpush1.msra.mxu0 0.0
  %1616 = vmatprep.subr.mxu0 0.0
  %1617 = vmatpush1.msra.mxu0 0.0
  %1618 = vmatprep.subr.mxu0 0.0
  %1619 = vmatpush1.msra.mxu0 0.0
  %1620 = vmatprep.subr.mxu0 0.0
  %1621 = vmatpush1.msra.mxu0 0.0
  %1622 = vmatprep.subr.mxu0 0.0
  %1623 = vmatpush1.msra.mxu0 0.0
  %1624 = vmatprep.subr.mxu0 0.0
  %1625 = vmatpush1.msra.mxu0 0.0
  %1626 = vmatprep.subr.mxu0 0.0
  %1627 = vmatpush1.msra.mxu0 0.0
  %1628 = vmatprep.subr.mxu0 0.0
  %1629 = vmatpush1.msra.mxu0 0.0
  %1630 = vmatprep.subr.mxu0 0.0
  %1631 = vmatpush1.msra.mxu0 0.0
  %1632 = vmatprep.subr.mxu0 0.0
  %1633 = vmatpush1.msra.mxu0 0.0
  %1634 = vmatprep.subr.mxu0 0.0
  %1635 = vmatpush1.msra.mxu0 0.0
  %1636 = vmatprep.subr.mxu0 0.0
  %1637 = vmatpush1.msra.mxu0 0.0
  %1638 = vmatprep.subr.mxu0 0.0
  %1639 = vmatpush1.msra.mxu0 0.0
  %1640 = vmatprep.subr.mxu0 0.0
  %1641 = vmatpush1.msra.mxu0 0.0
  %1642 = vmatprep.subr.mxu0 0.0
  %1643 = vmatpush1.msra.mxu0 0.0
  %1644 = vmatprep.subr.mxu0 0.0
  %1645 = vmatpush1.msra.mxu0 0.0
  %1646 = vmatprep.subr.mxu0 0.0
  %1647 = vmatpush1.msra.mxu0 0.0
  %1648 = vmatprep.subr.mxu0 0.0
  %1649 = vmatpush1.msra.mxu0 0.0
  %1650 = vmatprep.subr.mxu0 0.0
  %1651 = vmatpush1.msra.mxu0 0.0
  %1652 = vmatprep.subr.mxu0 0.0
  %1653 = vmatpush1.msra.mxu0 0.0
  %1654 = vmatprep.subr.mxu0 0.0
  %1655 = vmatpush1.msra.mxu0 0.0
  %1656 = vmatprep.subr.mxu0 0.0
  %1657 = vmatpush1.msra.mxu0 0.0
  %1658 = vmatprep.subr.mxu0 0.0
  %1659 = vmatpush1.msra.mxu0 0.0
  %1660 = vmatprep.subr.mxu0 0.0
  %1661 = vmatpush1.msra.mxu0 0.0
  %1662 = vmatprep.subr.mxu0 0.0
  %1663 = vmatpush1.msra.mxu0 0.0
  %1664 = vmatprep.subr.mxu0 0.0
  %1665 = vmatpush1.msra.mxu0 0.0
  %1666 = vmatprep.mubr.f32.mxu0 0.0
  %1667 = vmatmul.mubr.f32.gmra.mrb[0].mxu0 %v1589
  %v1668 = vpop.f32.mrb[0].mxu0
  %v1669 = vadd.f32 0.0, %v1668
  %v1670 = vpop.f32.mrb[0].mxu0
  %1671 = vmatprep.mubr.f32.mxu0 0.0
  %1672 = vmatmul.mubr.f32.gmra.mrb[0].mxu0 %v1592
  %v1673 = vpop.f32.mrb[0].mxu0
  %v1674 = vadd.f32 0.0, %v1673
  %v1675 = vpop.f32.mrb[0].mxu0
  %1676 = vmatprep.mubr.f32.mxu0 0.0
  %1677 = vmatmul.mubr.f32.gmra.mrb[0].mxu0 %v1595
  %v1678 = vpop.f32.mrb[0].mxu0
  %v1679 = vadd.f32 0.0, %v1678
  %v1680 = vpop.f32.mrb[0].mxu0
  %1681 = vmatprep.mubr.f32.mxu0 0.0
  %1682 = vmatmul.mubr.f32.gmra.mrb[0].mxu0 %v1598
  %v1683 = vpop.f32.mrb[0].mxu0
  %v1684 = vadd.f32 0.0, %v1683
  %v1685 = vpop.f32.mrb[0].mxu0
  %1686 = vdwg.mxu0
  %v1688 = vsel %vm320, %v1669, 0
  %v1691 = vsel %vm320, %v1674, 0
  %v1694 = vsel %vm320, %v1679, 0
  %v1697 = vsel %vm320, %v1684, 0
  %1699 = vmatprep.subr.mxu0 0.0
  %1700 = vmatpush1.msra.mxu0 %v123
  %1701 = vmatprep.subr.mxu0 0.0
  %1702 = vmatpush1.msra.mxu0 0.0
  %1703 = vmatprep.subr.mxu0 0.0
  %1704 = vmatpush1.msra.mxu0 0.0
  %1705 = vmatprep.subr.mxu0 0.0
  %1706 = vmatpush1.msra.mxu0 0.0
  %1707 = vmatprep.subr.mxu0 0.0
  %1708 = vmatpush1.msra.mxu0 0.0
  %1709 = vmatprep.subr.mxu0 0.0
  %1710 = vmatpush1.msra.mxu0 0.0
  %1711 = vmatprep.subr.mxu0 0.0
  %1712 = vmatpush1.msra.mxu0 0.0
  %1713 = vmatprep.subr.mxu0 0.0
  %1714 = vmatpush1.msra.mxu0 0.0
  %1715 = vmatprep.subr.mxu0 0.0
  %1716 = vmatpush1.msra.mxu0 0.0
  %1717 = vmatprep.subr.mxu0 0.0
  %1718 = vmatpush1.msra.mxu0 0.0
  %1719 = vmatprep.subr.mxu0 0.0
  %1720 = vmatpush1.msra.mxu0 0.0
  %1721 = vmatprep.subr.mxu0 0.0
  %1722 = vmatpush1.msra.mxu0 0.0
  %1723 = vmatprep.subr.mxu0 0.0
  %1724 = vmatpush1.msra.mxu0 0.0
  %1725 = vmatprep.subr.mxu0 0.0
  %1726 = vmatpush1.msra.mxu0 0.0
  %1727 = vmatprep.subr.mxu0 0.0
  %1728 = vmatpush1.msra.mxu0 0.0
  %1729 = vmatprep.subr.mxu0 0.0
  %1730 = vmatpush1.msra.mxu0 0.0
  %1731 = vmatprep.subr.mxu0 0.0
  %1732 = vmatpush1.msra.mxu0 0.0
  %1733 = vmatprep.subr.mxu0 0.0
  %1734 = vmatpush1.msra.mxu0 0.0
  %1735 = vmatprep.subr.mxu0 0.0
  %1736 = vmatpush1.msra.mxu0 0.0
  %1737 = vmatprep.subr.mxu0 0.0
  %1738 = vmatpush1.msra.mxu0 0.0
  %1739 = vmatprep.subr.mxu0 0.0
  %1740 = vmatpush1.msra.mxu0 0.0
  %1741 = vmatprep.subr.mxu0 0.0
  %1742 = vmatpush1.msra.mxu0 0.0
  %1743 = vmatprep.subr.mxu0 0.0
  %1744 = vmatpush1.msra.mxu0 0.0
  %1745 = vmatprep.subr.mxu0 0.0
  %1746 = vmatpush1.msra.mxu0 0.0
  %1747 = vmatprep.subr.mxu0 0.0
  %1748 = vmatpush1.msra.mxu0 0.0
  %1749 = vmatprep.subr.mxu0 0.0
  %1750 = vmatpush1.msra.mxu0 0.0
  %1751 = vmatprep.subr.mxu0 0.0
  %1752 = vmatpush1.msra.mxu0 0.0
  %1753 = vmatprep.subr.mxu0 0.0
  %1754 = vmatpush1.msra.mxu0 0.0
  %1755 = vmatprep.subr.mxu0 0.0
  %1756 = vmatpush1.msra.mxu0 0.0
  %1757 = vmatprep.subr.mxu0 0.0
  %1758 = vmatpush1.msra.mxu0 0.0
  %1759 = vmatprep.subr.mxu0 0.0
  %1760 = vmatpush1.msra.mxu0 0.0
  %1761 = vmatprep.subr.mxu0 0.0
  %1762 = vmatpush1.msra.mxu0 0.0
  %1763 = vmatprep.mubr.f32.mxu0 0.0
  %1764 = vmatmul.mubr.f32.gmra.mrb[0].mxu0 %v1688
  %v1765 = vpop.f32.mrb[0].mxu0
  %v1766 = vadd.f32 0.0, %v1765
  %v1767 = vpop.f32.mrb[0].mxu0
  %1768 = vmatprep.mubr.f32.mxu0 0.0
  %1769 = vmatmul.mubr.f32.gmra.mrb[0].mxu0 %v1691
  %v1770 = vpop.f32.mrb[0].mxu0
  %v1771 = vadd.f32 0.0, %v1770
  %v1772 = vpop.f32.mrb[0].mxu0
  %1773 = vmatprep.mubr.f32.mxu0 0.0
  %1774 = vmatmul.mubr.f32.gmra.mrb[0].mxu0 %v1694
  %v1775 = vpop.f32.mrb[0].mxu0
  %v1776 = vadd.f32 0.0, %v1775
  %v1777 = vpop.f32.mrb[0].mxu0
  %1778 = vmatprep.mubr.f32.mxu0 0.0
  %1779 = vmatmul.mubr.f32.gmra.mrb[0].mxu0 %v1697
  %v1780 = vpop.f32.mrb[0].mxu0
  %v1781 = vadd.f32 0.0, %v1780
  %v1782 = vpop.f32.mrb[0].mxu0
  %1783 = vdwg.mxu0
  %v1784 = vadd.f32 %v1412, %v1766
  %v1785 = vadd.f32 %v1413, %v1771
  %v1786 = vadd.f32 %v1414, %v1776
  %v1787 = vadd.f32 %v1415, %v1781
  %v1788 = vadd.f32 %v112, %v1784
  %v1789 = vadd.f32 %v113, %v1785
  %v1790 = vadd.f32 %v114, %v1786
  %v1791 = vadd.f32 %v115, %v1787
  %v1792 = vld [vmem:[%s2 + $0x6] sm:$0x1]
  %v1793 = vlaneseq
  %v1794 = vshrl.u32 %v1793, 7
  %v1795 = vsub.s32 0, %v1794
  %v1796 = vrot.slane %v1792, %v1795
  %v1797 = vadd.f32 %v1788, %v1796
  %v1798 = vadd.f32 %v1789, %v1796
  %v1799 = vadd.f32 %v1790, %v1796
  %v1800 = vadd.f32 %v1791, %v1796
  %v1801 = vld [vmem:[%s2 + $0x4] sm:$0x1]
  %v1802 = vld [vmem:[%s2 + $0x5] sm:$0x1]
  %v1803 = vsel %vm38, %v1797, 0.0
  %1804 = vadd.xlane.f32.xlu0 %v1803
  %v1805 = vpop.xlane.xlu0 %1804
  %v1806 = vsel %vm38, %v1798, 0.0
  %1807 = vadd.xlane.f32.xlu0 %v1806
  %v1808 = vpop.xlane.xlu0 %1807
  %v1809 = vsel %vm38, %v1799, 0.0
  %1810 = vadd.xlane.f32.xlu0 %v1809
  %v1811 = vpop.xlane.xlu0 %1810
  %v1812 = vsel %vm48, %v1800, 0.0
  %1813 = vadd.xlane.f32.xlu0 %v1812
  %v1814 = vpop.xlane.xlu0 %1813
  %v1815 = vmul.f32 %v1797, %v1797
  %v1816 = vmul.f32 %v1798, %v1798
  %v1817 = vmul.f32 %v1799, %v1799
  %v1818 = vmul.f32 %v1800, %v1800
  %v1819 = vsel %vm38, %v1815, 0.0
  %1820 = vadd.xlane.f32.xlu0 %v1819
  %v1821 = vpop.xlane.xlu0 %1820
  %v1822 = vsel %vm38, %v1816, 0.0
  %1823 = vadd.xlane.f32.xlu0 %v1822
  %v1824 = vpop.xlane.xlu0 %1823
  %v1825 = vsel %vm38, %v1817, 0.0
  %1826 = vadd.xlane.f32.xlu0 %v1825
  %v1827 = vpop.xlane.xlu0 %1826
  %v1828 = vsel %vm48, %v1818, 0.0
  %1829 = vadd.xlane.f32.xlu0 %v1828
  %v1830 = vpop.xlane.xlu0 %1829
  %v1831 = vmul.f32 %v1805, 0.03125
  %v1832 = vmul.f32 %v1808, 0.03125
  %v1833 = vmul.f32 %v1811, 0.03125
  %v1834 = vmul.f32 %v1814, 0.03125
  %v1835 = vmul.f32 %v1821, 0.03125
  %v1836 = vmul.f32 %v1824, 0.03125
  %v1837 = vmul.f32 %v1827, 0.03125
  %v1838 = vmul.f32 %v1830, 0.03125
  %v1839 = vmul.f32 %v1831, %v1831
  %v1840 = vmul.f32 %v1832, %v1832
  %v1841 = vmul.f32 %v1833, %v1833
  %v1842 = vmul.f32 %v1834, %v1834
  %v1843 = vsub.f32 %v1835, %v1839
  %v1844 = vsub.f32 %v1836, %v1840
  %v1845 = vsub.f32 %v1837, %v1841
  %v1846 = vsub.f32 %v1838, %v1842
  %v1847 = vsub.f32 %v1797, %v1831
  %v1848 = vsub.f32 %v1798, %v1832
  %v1849 = vsub.f32 %v1799, %v1833
  %v1850 = vsub.f32 %v1800, %v1834
  %v1851 = vadd.f32 %v1843, 1e-05
  %v1852 = vadd.f32 %v1844, 1e-05
  %v1853 = vadd.f32 %v1845, 1e-05
  %v1854 = vadd.f32 %v1846, 1e-05
  %v1855 = vrsqrt.pop %v1851
  %v1856 = vrsqrt.pop %v1852
  %v1857 = vrsqrt.pop %v1853
  %v1858 = vrsqrt.pop %v1854
  %v1859 = vmul.f32 %v1847, %v1855
  %v1860 = vmul.f32 %v1848, %v1856
  %v1861 = vmul.f32 %v1849, %v1857
  %v1862 = vmul.f32 %v1850, %v1858
  %v1863 = vlaneseq
  %v1864 = vshrl.u32 %v1863, 7
  %v1865 = vsub.s32 0, %v1864
  %v1866 = vrot.slane %v1801, %v1865
  %v1867 = vmul.f32 %v1859, %v1866
  %v1868 = vmul.f32 %v1860, %v1866
  %v1869 = vmul.f32 %v1861, %v1866
  %v1870 = vmul.f32 %v1862, %v1866
  %v1871 = vlaneseq
  %v1872 = vshrl.u32 %v1871, 7
  %v1873 = vsub.s32 0, %v1872
  %v1874 = vrot.slane %v1802, %v1873
  %v1875 = vadd.f32 %v1867, %v1874
  %v1876 = vadd.f32 %v1868, %v1874
  %v1877 = vadd.f32 %v1869, %v1874
  %v1878 = vadd.f32 %v1870, %v1874
  %v1879 = vld [vmem:[%s7] sm:$0xff]
  %v1880 = vld [vmem:[%s7 + $0x8] sm:$0xff]
  %v1881 = vld [vmem:[%s7 + $0x10] sm:$0xff]
  %v1882 = vld [vmem:[%s7 + $0x18] sm:$0xff]
  %v1883 = vld [vmem:[%s4] sm:$0x1]
  %v1884 = vlaneseq
  %v1885 = vshrl.u32 %v1884, 7
  %v1886 = vsub.s32 0, %v1885
  %v1887 = vrot.slane %v1883, %v1886
  %v1889 = vsel %vm38, %v1875, 0
  %v1892 = vsel %vm38, %v1876, 0
  %v1895 = vsel %vm38, %v1877, 0
  %v1898 = vsel %vm38, %v1878, 0
  %1900 = vmatprep.subr.mxu0 0.0
  %1901 = vmatpush1.msra.mxu0 %v1879
  %1902 = vmatprep.subr.mxu0 0.0
  %1903 = vmatpush1.msra.mxu0 %v1880
  %1904 = vmatprep.subr.mxu0 0.0
  %1905 = vmatpush1.msra.mxu0 %v1881
  %1906 = vmatprep.subr.mxu0 0.0
  %1907 = vmatpush1.msra.mxu0 %v1882
  %1908 = vmatprep.subr.mxu0 0.0
  %1909 = vmatpush1.msra.mxu0 0.0
  %1910 = vmatprep.subr.mxu0 0.0
  %1911 = vmatpush1.msra.mxu0 0.0
  %1912 = vmatprep.subr.mxu0 0.0
  %1913 = vmatpush1.msra.mxu0 0.0
  %1914 = vmatprep.subr.mxu0 0.0
  %1915 = vmatpush1.msra.mxu0 0.0
  %1916 = vmatprep.subr.mxu0 0.0
  %1917 = vmatpush1.msra.mxu0 0.0
  %1918 = vmatprep.subr.mxu0 0.0
  %1919 = vmatpush1.msra.mxu0 0.0
  %1920 = vmatprep.subr.mxu0 0.0
  %1921 = vmatpush1.msra.mxu0 0.0
  %1922 = vmatprep.subr.mxu0 0.0
  %1923 = vmatpush1.msra.mxu0 0.0
  %1924 = vmatprep.subr.mxu0 0.0
  %1925 = vmatpush1.msra.mxu0 0.0
  %1926 = vmatprep.subr.mxu0 0.0
  %1927 = vmatpush1.msra.mxu0 0.0
  %1928 = vmatprep.subr.mxu0 0.0
  %1929 = vmatpush1.msra.mxu0 0.0
  %1930 = vmatprep.subr.mxu0 0.0
  %1931 = vmatpush1.msra.mxu0 0.0
  %1932 = vmatprep.subr.mxu0 0.0
  %1933 = vmatpush1.msra.mxu0 0.0
  %1934 = vmatprep.subr.mxu0 0.0
  %1935 = vmatpush1.msra.mxu0 0.0
  %1936 = vmatprep.subr.mxu0 0.0
  %1937 = vmatpush1.msra.mxu0 0.0
  %1938 = vmatprep.subr.mxu0 0.0
  %1939 = vmatpush1.msra.mxu0 0.0
  %1940 = vmatprep.subr.mxu0 0.0
  %1941 = vmatpush1.msra.mxu0 0.0
  %1942 = vmatprep.subr.mxu0 0.0
  %1943 = vmatpush1.msra.mxu0 0.0
  %1944 = vmatprep.subr.mxu0 0.0
  %1945 = vmatpush1.msra.mxu0 0.0
  %1946 = vmatprep.subr.mxu0 0.0
  %1947 = vmatpush1.msra.mxu0 0.0
  %1948 = vmatprep.subr.mxu0 0.0
  %1949 = vmatpush1.msra.mxu0 0.0
  %1950 = vmatprep.subr.mxu0 0.0
  %1951 = vmatpush1.msra.mxu0 0.0
  %1952 = vmatprep.subr.mxu0 0.0
  %1953 = vmatpush1.msra.mxu0 0.0
  %1954 = vmatprep.subr.mxu0 0.0
  %1955 = vmatpush1.msra.mxu0 0.0
  %1956 = vmatprep.subr.mxu0 0.0
  %1957 = vmatpush1.msra.mxu0 0.0
  %1958 = vmatprep.subr.mxu0 0.0
  %1959 = vmatpush1.msra.mxu0 0.0
  %1960 = vmatprep.subr.mxu0 0.0
  %1961 = vmatpush1.msra.mxu0 0.0
  %1962 = vmatprep.subr.mxu0 0.0
  %1963 = vmatpush1.msra.mxu0 0.0
  %1964 = vmatprep.mubr.f32.mxu0 0.0
  %1965 = vmatmul.mubr.f32.gmra.mrb[0].mxu0 %v1889
  %v1966 = vpop.f32.mrb[0].mxu0
  %v1967 = vadd.f32 %v1887, %v1966
  %v1968 = vpop.f32.mrb[0].mxu0
  %1969 = vmatprep.mubr.f32.mxu0 0.0
  %1970 = vmatmul.mubr.f32.gmra.mrb[0].mxu0 %v1892
  %v1971 = vpop.f32.mrb[0].mxu0
  %v1972 = vadd.f32 %v1887, %v1971
  %v1973 = vpop.f32.mrb[0].mxu0
  %1974 = vmatprep.mubr.f32.mxu0 0.0
  %1975 = vmatmul.mubr.f32.gmra.mrb[0].mxu0 %v1895
  %v1976 = vpop.f32.mrb[0].mxu0
  %v1977 = vadd.f32 %v1887, %v1976
  %v1978 = vpop.f32.mrb[0].mxu0
  %1979 = vmatprep.mubr.f32.mxu0 0.0
  %1980 = vmatmul.mubr.f32.gmra.mrb[0].mxu0 %v1898
  %v1981 = vpop.f32.mrb[0].mxu0
  %v1982 = vadd.f32 %v1887, %v1981
  %v1983 = vpop.f32.mrb[0].mxu0
  %1984 = vdwg.mxu0
  %v1985 = vmul.f32 %v1967, %v1967
  %v1986 = vmul.f32 %v1972, %v1972
  %v1987 = vmul.f32 %v1977, %v1977
  %v1988 = vmul.f32 %v1982, %v1982
  %v1989 = vmul.f32 %v1967, %v1985
  %v1990 = vmul.f32 %v1972, %v1986
  %v1991 = vmul.f32 %v1977, %v1987
  %v1992 = vmul.f32 %v1982, %v1988
  %v1993 = vmul.f32 %v1989, 0.044715
  %v1994 = vmul.f32 %v1990, 0.044715
  %v1995 = vmul.f32 %v1991, 0.044715
  %v1996 = vmul.f32 %v1992, 0.044715
  %v1997 = vadd.f32 %v1967, %v1993
  %v1998 = vadd.f32 %v1972, %v1994
  %v1999 = vadd.f32 %v1977, %v1995
  %v2000 = vadd.f32 %v1982, %v1996
  %v2001 = vmul.f32 %v1997, 0.7978846
  %v2002 = vmul.f32 %v1998, 0.7978846
  %v2003 = vmul.f32 %v1999, 0.7978846
  %v2004 = vmul.f32 %v2000, 0.7978846
  %v2005 = vtanh.pop %v2001
  %v2006 = vtanh.pop %v2002
  %v2007 = vtanh.pop %v2003
  %v2008 = vtanh.pop %v2004
  %v2009 = vadd.f32 %v2005, 1.0
  %v2010 = vadd.f32 %v2006, 1.0
  %v2011 = vadd.f32 %v2007, 1.0
  %v2012 = vadd.f32 %v2008, 1.0
  %v2013 = vmul.f32 %v2009, 0.5
  %v2014 = vmul.f32 %v2010, 0.5
  %v2015 = vmul.f32 %v2011, 0.5
  %v2016 = vmul.f32 %v2012, 0.5
  %v2017 = vmul.f32 %v1967, %v2013
  %v2018 = vmul.f32 %v1972, %v2014
  %v2019 = vmul.f32 %v1977, %v2015
  %v2020 = vmul.f32 %v1982, %v2016
  %v2021 = vld [vmem:[%s8] sm:$0xff]
  %v2022 = vld [vmem:[%s8 + $0x8] sm:$0xff]
  %v2023 = vld [vmem:[%s8 + $0x10] sm:$0xff]
  %v2024 = vld [vmem:[%s8 + $0x18] sm:$0xff]
  %v2025 = vld [vmem:[%s8 + $0x20] sm:$0xff]
  %v2026 = vld [vmem:[%s8 + $0x28] sm:$0xff]
  %v2027 = vld [vmem:[%s8 + $0x30] sm:$0xff]
  %v2028 = vld [vmem:[%s8 + $0x38] sm:$0xff]
  %v2029 = vld [vmem:[%s8 + $0x40] sm:$0xff]
  %v2030 = vld [vmem:[%s8 + $0x48] sm:$0xff]
  %v2031 = vld [vmem:[%s8 + $0x50] sm:$0xff]
  %v2032 = vld [vmem:[%s8 + $0x58] sm:$0xff]
  %v2033 = vld [vmem:[%s8 + $0x60] sm:$0xff]
  %v2034 = vld [vmem:[%s8 + $0x68] sm:$0xff]
  %v2035 = vld [vmem:[%s8 + $0x70] sm:$0xff]
  %v2036 = vld [vmem:[%s8 + $0x78] sm:$0xff]
  %2037 = vmatprep.subr.mxu0 0.0
  %2038 = vmatpush1.msra.mxu0 %v2021
  %2039 = vmatprep.subr.mxu0 0.0
  %2040 = vmatpush1.msra.mxu0 %v2022
  %2041 = vmatprep.subr.mxu0 0.0
  %2042 = vmatpush1.msra.mxu0 %v2023
  %2043 = vmatprep.subr.mxu0 0.0
  %2044 = vmatpush1.msra.mxu0 %v2024
  %2045 = vmatprep.subr.mxu0 0.0
  %2046 = vmatpush1.msra.mxu0 %v2025
  %2047 = vmatprep.subr.mxu0 0.0
  %2048 = vmatpush1.msra.mxu0 %v2026
  %2049 = vmatprep.subr.mxu0 0.0
  %2050 = vmatpush1.msra.mxu0 %v2027
  %2051 = vmatprep.subr.mxu0 0.0
  %2052 = vmatpush1.msra.mxu0 %v2028
  %2053 = vmatprep.subr.mxu0 0.0
  %2054 = vmatpush1.msra.mxu0 %v2029
  %2055 = vmatprep.subr.mxu0 0.0
  %2056 = vmatpush1.msra.mxu0 %v2030
  %2057 = vmatprep.subr.mxu0 0.0
  %2058 = vmatpush1.msra.mxu0 %v2031
  %2059 = vmatprep.subr.mxu0 0.0
  %2060 = vmatpush1.msra.mxu0 %v2032
  %2061 = vmatprep.subr.mxu0 0.0
  %2062 = vmatpush1.msra.mxu0 %v2033
  %2063 = vmatprep.subr.mxu0 0.0
  %2064 = vmatpush1.msra.mxu0 %v2034
  %2065 = vmatprep.subr.mxu0 0.0
  %2066 = vmatpush1.msra.mxu0 %v2035
  %2067 = vmatprep.subr.mxu0 0.0
  %2068 = vmatpush1.msra.mxu0 %v2036
  %2069 = vmatprep.subr.mxu0 0.0
  %2070 = vmatpush1.msra.mxu0 0.0
  %2071 = vmatprep.subr.mxu0 0.0
  %2072 = vmatpush1.msra.mxu0 0.0
  %2073 = vmatprep.subr.mxu0 0.0
  %2074 = vmatpush1.msra.mxu0 0.0
  %2075 = vmatprep.subr.mxu0 0.0
  %2076 = vmatpush1.msra.mxu0 0.0
  %2077 = vmatprep.subr.mxu0 0.0
  %2078 = vmatpush1.msra.mxu0 0.0
  %2079 = vmatprep.subr.mxu0 0.0
  %2080 = vmatpush1.msra.mxu0 0.0
  %2081 = vmatprep.subr.mxu0 0.0
  %2082 = vmatpush1.msra.mxu0 0.0
  %2083 = vmatprep.subr.mxu0 0.0
  %2084 = vmatpush1.msra.mxu0 0.0
  %2085 = vmatprep.subr.mxu0 0.0
  %2086 = vmatpush1.msra.mxu0 0.0
  %2087 = vmatprep.subr.mxu0 0.0
  %2088 = vmatpush1.msra.mxu0 0.0
  %2089 = vmatprep.subr.mxu0 0.0
  %2090 = vmatpush1.msra.mxu0 0.0
  %2091 = vmatprep.subr.mxu0 0.0
  %2092 = vmatpush1.msra.mxu0 0.0
  %2093 = vmatprep.subr.mxu0 0.0
  %2094 = vmatpush1.msra.mxu0 0.0
  %2095 = vmatprep.subr.mxu0 0.0
  %2096 = vmatpush1.msra.mxu0 0.0
  %2097 = vmatprep.subr.mxu0 0.0
  %2098 = vmatpush1.msra.mxu0 0.0
  %2099 = vmatprep.subr.mxu0 0.0
  %2100 = vmatpush1.msra.mxu0 0.0
  %2101 = vmatprep.mubr.f32.mxu0 0.0
  %2102 = vmatmul.mubr.f32.gmra.mrb[0].mxu0 %v2017
  %v2103 = vpop.f32.mrb[0].mxu0
  %v2104 = vadd.f32 0.0, %v2103
  %v2105 = vpop.f32.mrb[0].mxu0
  %2106 = vmatprep.mubr.f32.mxu0 0.0
  %2107 = vmatmul.mubr.f32.gmra.mrb[0].mxu0 %v2018
  %v2108 = vpop.f32.mrb[0].mxu0
  %v2109 = vadd.f32 0.0, %v2108
  %v2110 = vpop.f32.mrb[0].mxu0
  %2111 = vmatprep.mubr.f32.mxu0 0.0
  %2112 = vmatmul.mubr.f32.gmra.mrb[0].mxu0 %v2019
  %v2113 = vpop.f32.mrb[0].mxu0
  %v2114 = vadd.f32 0.0, %v2113
  %v2115 = vpop.f32.mrb[0].mxu0
  %2116 = vmatprep.mubr.f32.mxu0 0.0
  %2117 = vmatmul.mubr.f32.gmra.mrb[0].mxu0 %v2020
  %v2118 = vpop.f32.mrb[0].mxu0
  %v2119 = vadd.f32 0.0, %v2118
  %v2120 = vpop.f32.mrb[0].mxu0
  %2121 = vdwg.mxu0
  %v2122 = vadd.f32 %v1797, %v2104
  %v2123 = vadd.f32 %v1798, %v2109
  %v2124 = vadd.f32 %v1799, %v2114
  %v2125 = vadd.f32 %v1800, %v2119
  %v2126 = vld [vmem:[%s2 + $0x7] sm:$0x1]
  %v2127 = vlaneseq
  %v2128 = vshrl.u32 %v2127, 7
  %v2129 = vsub.s32 0, %v2128
  %v2130 = vrot.slane %v2126, %v2129
  %v2131 = vadd.f32 %v2122, %v2130
  %v2132 = vadd.f32 %v2123, %v2130
  %v2133 = vadd.f32 %v2124, %v2130
  %v2134 = vadd.f32 %v2125, %v2130
  %s2135 = scalar_lea.vmem %s6, 32
  %v2136 = vld [vmem:[%s2135] sm:$0xff]
  %v2137 = vld [vmem:[%s2135 + $0x8] sm:$0xff]
  %v2138 = vld [vmem:[%s2135 + $0x10] sm:$0xff]
  %v2139 = vld [vmem:[%s2135 + $0x18] sm:$0xff]
  %v2140 = vld [vmem:[%s2 + $0x8] sm:$0x1]
  %v2141 = vld [vmem:[%s2 + $0x9] sm:$0x1]
  %v2142 = vsel %vm38, %v2131, 0.0
  %2143 = vadd.xlane.f32.xlu0 %v2142
  %v2144 = vpop.xlane.xlu0 %2143
  %v2145 = vsel %vm38, %v2132, 0.0
  %2146 = vadd.xlane.f32.xlu0 %v2145
  %v2147 = vpop.xlane.xlu0 %2146
  %v2148 = vsel %vm38, %v2133, 0.0
  %2149 = vadd.xlane.f32.xlu0 %v2148
  %v2150 = vpop.xlane.xlu0 %2149
  %v2151 = vsel %vm48, %v2134, 0.0
  %2152 = vadd.xlane.f32.xlu0 %v2151
  %v2153 = vpop.xlane.xlu0 %2152
  %v2154 = vmul.f32 %v2131, %v2131
  %v2155 = vmul.f32 %v2132, %v2132
  %v2156 = vmul.f32 %v2133, %v2133
  %v2157 = vmul.f32 %v2134, %v2134
  %v2158 = vsel %vm38, %v2154, 0.0
  %2159 = vadd.xlane.f32.xlu0 %v2158
  %v2160 = vpop.xlane.xlu0 %2159
  %v2161 = vsel %vm38, %v2155, 0.0
  %2162 = vadd.xlane.f32.xlu0 %v2161
  %v2163 = vpop.xlane.xlu0 %2162
  %v2164 = vsel %vm38, %v2156, 0.0
  %2165 = vadd.xlane.f32.xlu0 %v2164
  %v2166 = vpop.xlane.xlu0 %2165
  %v2167 = vsel %vm48, %v2157, 0.0
  %2168 = vadd.xlane.f32.xlu0 %v2167
  %v2169 = vpop.xlane.xlu0 %2168
  %v2170 = vmul.f32 %v2144, 0.03125
  %v2171 = vmul.f32 %v2147, 0.03125
  %v2172 = vmul.f32 %v2150, 0.03125
  %v2173 = vmul.f32 %v2153, 0.03125
  %v2174 = vmul.f32 %v2160, 0.03125
  %v2175 = vmul.f32 %v2163, 0.03125
  %v2176 = vmul.f32 %v2166, 0.03125
  %v2177 = vmul.f32 %v2169, 0.03125
  %v2178 = vmul.f32 %v2170, %v2170
  %v2179 = vmul.f32 %v2171, %v2171
  %v2180 = vmul.f32 %v2172, %v2172
  %v2181 = vmul.f32 %v2173, %v2173
  %v2182 = vsub.f32 %v2174, %v2178
  %v2183 = vsub.f32 %v2175, %v2179
  %v2184 = vsub.f32 %v2176, %v2180
  %v2185 = vsub.f32 %v2177, %v2181
  %v2186 = vsub.f32 %v2131, %v2170
  %v2187 = vsub.f32 %v2132, %v2171
  %v2188 = vsub.f32 %v2133, %v2172
  %v2189 = vsub.f32 %v2134, %v2173
  %v2190 = vadd.f32 %v2182, 1e-05
  %v2191 = vadd.f32 %v2183, 1e-05
  %v2192 = vadd.f32 %v2184, 1e-05
  %v2193 = vadd.f32 %v2185, 1e-05
  %v2194 = vrsqrt.pop %v2190
  %v2195 = vrsqrt.pop %v2191
  %v2196 = vrsqrt.pop %v2192
  %v2197 = vrsqrt.pop %v2193
  %v2198 = vmul.f32 %v2186, %v2194
  %v2199 = vmul.f32 %v2187, %v2195
  %v2200 = vmul.f32 %v2188, %v2196
  %v2201 = vmul.f32 %v2189, %v2197
  %v2202 = vlaneseq
  %v2203 = vshrl.u32 %v2202, 7
  %v2204 = vsub.s32 0, %v2203
  %v2205 = vrot.slane %v2140, %v2204
  %v2206 = vmul.f32 %v2198, %v2205
  %v2207 = vmul.f32 %v2199, %v2205
  %v2208 = vmul.f32 %v2200, %v2205
  %v2209 = vmul.f32 %v2201, %v2205
  %v2210 = vlaneseq
  %v2211 = vshrl.u32 %v2210, 7
  %v2212 = vsub.s32 0, %v2211
  %v2213 = vrot.slane %v2141, %v2212
  %v2214 = vadd.f32 %v2206, %v2213
  %v2215 = vadd.f32 %v2207, %v2213
  %v2216 = vadd.f32 %v2208, %v2213
  %v2217 = vadd.f32 %v2209, %v2213
  %s2218 = scalar_lea.vmem %s5, 32
  %v2219 = vld [vmem:[%s2218] sm:$0xff]
  %v2220 = vld [vmem:[%s2218 + $0x8] sm:$0xff]
  %v2221 = vld [vmem:[%s2218 + $0x10] sm:$0xff]
  %v2222 = vld [vmem:[%s2218 + $0x18] sm:$0xff]
  %v2223 = vld [vmem:[%s3 + $0x1] sm:$0x1]
  %v2224 = vlaneseq
  %v2225 = vshrl.u32 %v2224, 7
  %v2226 = vsub.s32 0, %v2225
  %v2227 = vrot.slane %v2223, %v2226
  %v2229 = vsel %vm38, %v2214, 0
  %v2232 = vsel %vm38, %v2215, 0
  %v2235 = vsel %vm38, %v2216, 0
  %v2238 = vsel %vm38, %v2217, 0
  %2240 = vmatprep.subr.mxu0 0.0
  %2241 = vmatpush1.msra.mxu0 %v2219
  %2242 = vmatprep.subr.mxu0 0.0
  %2243 = vmatpush1.msra.mxu0 %v2220
  %2244 = vmatprep.subr.mxu0 0.0
  %2245 = vmatpush1.msra.mxu0 %v2221
  %2246 = vmatprep.subr.mxu0 0.0
  %2247 = vmatpush1.msra.mxu0 %v2222
  %2248 = vmatprep.subr.mxu0 0.0
  %2249 = vmatpush1.msra.mxu0 0.0
  %2250 = vmatprep.subr.mxu0 0.0
  %2251 = vmatpush1.msra.mxu0 0.0
  %2252 = vmatprep.subr.mxu0 0.0
  %2253 = vmatpush1.msra.mxu0 0.0
  %2254 = vmatprep.subr.mxu0 0.0
  %2255 = vmatpush1.msra.mxu0 0.0
  %2256 = vmatprep.subr.mxu0 0.0
  %2257 = vmatpush1.msra.mxu0 0.0
  %2258 = vmatprep.subr.mxu0 0.0
  %2259 = vmatpush1.msra.mxu0 0.0
  %2260 = vmatprep.subr.mxu0 0.0
  %2261 = vmatpush1.msra.mxu0 0.0
  %2262 = vmatprep.subr.mxu0 0.0
  %2263 = vmatpush1.msra.mxu0 0.0
  %2264 = vmatprep.subr.mxu0 0.0
  %2265 = vmatpush1.msra.mxu0 0.0
  %2266 = vmatprep.subr.mxu0 0.0
  %2267 = vmatpush1.msra.mxu0 0.0
  %2268 = vmatprep.subr.mxu0 0.0
  %2269 = vmatpush1.msra.mxu0 0.0
  %2270 = vmatprep.subr.mxu0 0.0
  %2271 = vmatpush1.msra.mxu0 0.0
  %2272 = vmatprep.subr.mxu0 0.0
  %2273 = vmatpush1.msra.mxu0 0.0
  %2274 = vmatprep.subr.mxu0 0.0
  %2275 = vmatpush1.msra.mxu0 0.0
  %2276 = vmatprep.subr.mxu0 0.0
  %2277 = vmatpush1.msra.mxu0 0.0
  %2278 = vmatprep.subr.mxu0 0.0
  %2279 = vmatpush1.msra.mxu0 0.0
  %2280 = vmatprep.subr.mxu0 0.0
  %2281 = vmatpush1.msra.mxu0 0.0
  %2282 = vmatprep.subr.mxu0 0.0
  %2283 = vmatpush1.msra.mxu0 0.0
  %2284 = vmatprep.subr.mxu0 0.0
  %2285 = vmatpush1.msra.mxu0 0.0
  %2286 = vmatprep.subr.mxu0 0.0
  %2287 = vmatpush1.msra.mxu0 0.0
  %2288 = vmatprep.subr.mxu0 0.0
  %2289 = vmatpush1.msra.mxu0 0.0
  %2290 = vmatprep.subr.mxu0 0.0
  %2291 = vmatpush1.msra.mxu0 0.0
  %2292 = vmatprep.subr.mxu0 0.0
  %2293 = vmatpush1.msra.mxu0 0.0
  %2294 = vmatprep.subr.mxu0 0.0
  %2295 = vmatpush1.msra.mxu0 0.0
  %2296 = vmatprep.subr.mxu0 0.0
  %2297 = vmatpush1.msra.mxu0 0.0
  %2298 = vmatprep.subr.mxu0 0.0
  %2299 = vmatpush1.msra.mxu0 0.0
  %2300 = vmatprep.subr.mxu0 0.0
  %2301 = vmatpush1.msra.mxu0 0.0
  %2302 = vmatprep.subr.mxu0 0.0
  %2303 = vmatpush1.msra.mxu0 0.0
  %2304 = vmatprep.mubr.f32.mxu0 0.0
  %2305 = vmatmul.mubr.f32.gmra.mrb[0].mxu0 %v2229
  %v2306 = vpop.f32.mrb[0].mxu0
  %v2307 = vadd.f32 %v2227, %v2306
  %v2308 = vpop.f32.mrb[0].mxu0
  %2309 = vmatprep.mubr.f32.mxu0 0.0
  %2310 = vmatmul.mubr.f32.gmra.mrb[0].mxu0 %v2232
  %v2311 = vpop.f32.mrb[0].mxu0
  %v2312 = vadd.f32 %v2227, %v2311
  %v2313 = vpop.f32.mrb[0].mxu0
  %2314 = vmatprep.mubr.f32.mxu0 0.0
  %2315 = vmatmul.mubr.f32.gmra.mrb[0].mxu0 %v2235
  %v2316 = vpop.f32.mrb[0].mxu0
  %v2317 = vadd.f32 %v2227, %v2316
  %v2318 = vpop.f32.mrb[0].mxu0
  %2319 = vmatprep.mubr.f32.mxu0 0.0
  %2320 = vmatmul.mubr.f32.gmra.mrb[0].mxu0 %v2238
  %v2321 = vpop.f32.mrb[0].mxu0
  %v2322 = vadd.f32 %v2227, %v2321
  %v2323 = vpop.f32.mrb[0].mxu0
  %2324 = vdwg.mxu0
  %2329 = vrot.lane.b32.xlu0 %v2307, 96
  %v2330 = vpop.permute.xlu0 %2329
  %2331 = vrot.lane.b32.xlu0 %v2312, 96
  %v2332 = vpop.permute.xlu0 %2331
  %2333 = vrot.lane.b32.xlu0 %v2317, 96
  %v2334 = vpop.permute.xlu0 %2333
  %2335 = vrot.lane.b32.xlu0 %v2322, 96
  %v2336 = vpop.permute.xlu0 %2335
  %v2337 = vsel %vm320, %v2307, 0
  %v2339 = vsel %vm320, %v2312, 0
  %v2341 = vsel %vm320, %v2317, 0
  %v2343 = vsel %vm320, %v2322, 0
  %v2345 = vsel %vm320, %v2330, 0
  %v2347 = vsel %vm320, %v2332, 0
  %v2349 = vsel %vm320, %v2334, 0
  %v2351 = vsel %vm320, %v2336, 0
  %2353 = vmatprep.subr.mxu0 0.0
  %2354 = vmatpush1.xpose.msra.mxu0 %v2345
  %2355 = vmatprep.subr.mxu0 0.0
  %2356 = vmatpush1.xpose.msra.mxu0 %v2347
  %2357 = vmatprep.subr.mxu0 0.0
  %2358 = vmatpush1.xpose.msra.mxu0 %v2349
  %2359 = vmatprep.subr.mxu0 0.0
  %2360 = vmatpush1.xpose.msra.mxu0 %v2351
  %2361 = vmatprep.subr.mxu0 0.0
  %2362 = vmatpush1.xpose.msra.mxu0 0.0
  %2363 = vmatprep.subr.mxu0 0.0
  %2364 = vmatpush1.xpose.msra.mxu0 0.0
  %2365 = vmatprep.subr.mxu0 0.0
  %2366 = vmatpush1.xpose.msra.mxu0 0.0
  %2367 = vmatprep.subr.mxu0 0.0
  %2368 = vmatpush1.xpose.msra.mxu0 0.0
  %2369 = vmatprep.subr.mxu0 0.0
  %2370 = vmatpush1.xpose.msra.mxu0 0.0
  %2371 = vmatprep.subr.mxu0 0.0
  %2372 = vmatpush1.xpose.msra.mxu0 0.0
  %2373 = vmatprep.subr.mxu0 0.0
  %2374 = vmatpush1.xpose.msra.mxu0 0.0
  %2375 = vmatprep.subr.mxu0 0.0
  %2376 = vmatpush1.xpose.msra.mxu0 0.0
  %2377 = vmatprep.subr.mxu0 0.0
  %2378 = vmatpush1.xpose.msra.mxu0 0.0
  %2379 = vmatprep.subr.mxu0 0.0
  %2380 = vmatpush1.xpose.msra.mxu0 0.0
  %2381 = vmatprep.subr.mxu0 0.0
  %2382 = vmatpush1.xpose.msra.mxu0 0.0
  %2383 = vmatprep.subr.mxu0 0.0
  %2384 = vmatpush1.xpose.msra.mxu0 0.0
  %2385 = vmatprep.subr.mxu0 0.0
  %2386 = vmatpush1.xpose.msra.mxu0 0.0
  %2387 = vmatprep.subr.mxu0 0.0
  %2388 = vmatpush1.xpose.msra.mxu0 0.0
  %2389 = vmatprep.subr.mxu0 0.0
  %2390 = vmatpush1.xpose.msra.mxu0 0.0
  %2391 = vmatprep.subr.mxu0 0.0
  %2392 = vmatpush1.xpose.msra.mxu0 0.0
  %2393 = vmatprep.subr.mxu0 0.0
  %2394 = vmatpush1.xpose.msra.mxu0 0.0
  %2395 = vmatprep.subr.mxu0 0.0
  %2396 = vmatpush1.xpose.msra.mxu0 0.0
  %2397 = vmatprep.subr.mxu0 0.0
  %2398 = vmatpush1.xpose.msra.mxu0 0.0
  %2399 = vmatprep.subr.mxu0 0.0
  %2400 = vmatpush1.xpose.msra.mxu0 0.0
  %2401 = vmatprep.subr.mxu0 0.0
  %2402 = vmatpush1.xpose.msra.mxu0 0.0
  %2403 = vmatprep.subr.mxu0 0.0
  %2404 = vmatpush1.xpose.msra.mxu0 0.0
  %2405 = vmatprep.subr.mxu0 0.0
  %2406 = vmatpush1.xpose.msra.mxu0 0.0
  %2407 = vmatprep.subr.mxu0 0.0
  %2408 = vmatpush1.xpose.msra.mxu0 0.0
  %2409 = vmatprep.subr.mxu0 0.0
  %2410 = vmatpush1.xpose.msra.mxu0 0.0
  %2411 = vmatprep.subr.mxu0 0.0
  %2412 = vmatpush1.xpose.msra.mxu0 0.0
  %2413 = vmatprep.subr.mxu0 0.0
  %2414 = vmatpush1.xpose.msra.mxu0 0.0
  %2415 = vmatprep.subr.mxu0 0.0
  %2416 = vmatpush1.xpose.msra.mxu0 0.0
  %2417 = vmatprep.mubr.f32.mxu0 0.0
  %2418 = vmatmul.mubr.f32.gmra.mrb[0].mxu0 %v2337
  %v2419 = vpop.f32.mrb[0].mxu0
  %v2420 = vadd.f32 %v116, %v2419
  %v2421 = vpop.f32.mrb[0].mxu0
  %2422 = vmatprep.mubr.f32.mxu0 0.0
  %2423 = vmatmul.mubr.f32.gmra.mrb[0].mxu0 %v2339
  %v2424 = vpop.f32.mrb[0].mxu0
  %v2425 = vadd.f32 %v117, %v2424
  %v2426 = vpop.f32.mrb[0].mxu0
  %2427 = vmatprep.mubr.f32.mxu0 0.0
  %2428 = vmatmul.mubr.f32.gmra.mrb[0].mxu0 %v2341
  %v2429 = vpop.f32.mrb[0].mxu0
  %v2430 = vadd.f32 %v118, %v2429
  %v2431 = vpop.f32.mrb[0].mxu0
  %2432 = vmatprep.mubr.f32.mxu0 0.0
  %2433 = vmatmul.mubr.f32.gmra.mrb[0].mxu0 %v2343
  %v2434 = vpop.f32.mrb[0].mxu0
  %v2435 = vadd.f32 %v119, %v2434
  %v2436 = vpop.f32.mrb[0].mxu0
  %2437 = vdwg.mxu0
  %v2438 = vsel %vm422, %v2420, -inf
  %2439 = vmax.xlane.f32.xlu0 %v2438
  %v2440 = vpop.xlane.xlu0 %2439
  %v2441 = vsel %vm422, %v2425, -inf
  %2442 = vmax.xlane.f32.xlu0 %v2441
  %v2443 = vpop.xlane.xlu0 %2442
  %v2444 = vsel %vm422, %v2430, -inf
  %2445 = vmax.xlane.f32.xlu0 %v2444
  %v2446 = vpop.xlane.xlu0 %2445
  %v2447 = vsel %vm432, %v2435, -inf
  %2448 = vmax.xlane.f32.xlu0 %v2447
  %v2449 = vpop.xlane.xlu0 %2448
  %v2450 = vsub.f32 %v2420, %v2440
  %v2451 = vsub.f32 %v2425, %v2443
  %v2452 = vsub.f32 %v2430, %v2446
  %v2453 = vsub.f32 %v2435, %v2449
  %v2454 = vmul.f32 %v2450, 1.442695
  %v2455 = vpow.pop %v2454
  %v2456 = vmul.f32 %v2451, 1.442695
  %v2457 = vpow.pop %v2456
  %v2458 = vmul.f32 %v2452, 1.442695
  %v2459 = vpow.pop %v2458
  %v2460 = vmul.f32 %v2453, 1.442695
  %v2461 = vpow.pop %v2460
  %v2462 = vsel %vm422, %v2455, 0.0
  %2463 = vadd.xlane.f32.xlu0 %v2462
  %v2464 = vpop.xlane.xlu0 %2463
  %v2465 = vsel %vm422, %v2457, 0.0
  %2466 = vadd.xlane.f32.xlu0 %v2465
  %v2467 = vpop.xlane.xlu0 %2466
  %v2468 = vsel %vm422, %v2459, 0.0
  %2469 = vadd.xlane.f32.xlu0 %v2468
  %v2470 = vpop.xlane.xlu0 %2469
  %v2471 = vsel %vm432, %v2461, 0.0
  %2472 = vadd.xlane.f32.xlu0 %v2471
  %v2473 = vpop.xlane.xlu0 %2472
  %v2474 = vrcp.pop %v2464
  %v2475 = vrcp.pop %v2467
  %v2476 = vrcp.pop %v2470
  %v2477 = vrcp.pop %v2473
  %v2478 = vmul.f32 %v2455, %v2474
  %v2479 = vmul.f32 %v2457, %v2475
  %v2480 = vmul.f32 %v2459, %v2476
  %v2481 = vmul.f32 %v2461, %v2477
  %2482 = vrot.lane.b32.xlu0 %v2307, 64
  %v2483 = vpop.permute.xlu0 %2482
  %2484 = vrot.lane.b32.xlu0 %v2312, 64
  %v2485 = vpop.permute.xlu0 %2484
  %2486 = vrot.lane.b32.xlu0 %v2317, 64
  %v2487 = vpop.permute.xlu0 %2486
  %2488 = vrot.lane.b32.xlu0 %v2322, 64
  %v2489 = vpop.permute.xlu0 %2488
  %v2494 = vsel %vm422, %v2478, 0
  %v2497 = vsel %vm422, %v2479, 0
  %v2500 = vsel %vm422, %v2480, 0
  %v2503 = vsel %vm422, %v2481, 0
  %v2505 = vsel %vm491, %v2489, 0
  %2507 = vmatprep.subr.mxu0 0.0
  %2508 = vmatpush1.msra.mxu0 %v2483
  %2509 = vmatprep.subr.mxu0 0.0
  %2510 = vmatpush1.msra.mxu0 %v2485
  %2511 = vmatprep.subr.mxu0 0.0
  %2512 = vmatpush1.msra.mxu0 %v2487
  %2513 = vmatprep.subr.mxu0 0.0
  %2514 = vmatpush1.msra.mxu0 %v2505
  %2515 = vmatprep.subr.mxu0 0.0
  %2516 = vmatpush1.msra.mxu0 0.0
  %2517 = vmatprep.subr.mxu0 0.0
  %2518 = vmatpush1.msra.mxu0 0.0
  %2519 = vmatprep.subr.mxu0 0.0
  %2520 = vmatpush1.msra.mxu0 0.0
  %2521 = vmatprep.subr.mxu0 0.0
  %2522 = vmatpush1.msra.mxu0 0.0
  %2523 = vmatprep.subr.mxu0 0.0
  %2524 = vmatpush1.msra.mxu0 0.0
  %2525 = vmatprep.subr.mxu0 0.0
  %2526 = vmatpush1.msra.mxu0 0.0
  %2527 = vmatprep.subr.mxu0 0.0
  %2528 = vmatpush1.msra.mxu0 0.0
  %2529 = vmatprep.subr.mxu0 0.0
  %2530 = vmatpush1.msra.mxu0 0.0
  %2531 = vmatprep.subr.mxu0 0.0
  %2532 = vmatpush1.msra.mxu0 0.0
  %2533 = vmatprep.subr.mxu0 0.0
  %2534 = vmatpush1.msra.mxu0 0.0
  %2535 = vmatprep.subr.mxu0 0.0
  %2536 = vmatpush1.msra.mxu0 0.0
  %2537 = vmatprep.subr.mxu0 0.0
  %2538 = vmatpush1.msra.mxu0 0.0
  %2539 = vmatprep.subr.mxu0 0.0
  %2540 = vmatpush1.msra.mxu0 0.0
  %2541 = vmatprep.subr.mxu0 0.0
  %2542 = vmatpush1.msra.mxu0 0.0
  %2543 = vmatprep.subr.mxu0 0.0
  %2544 = vmatpush1.msra.mxu0 0.0
  %2545 = vmatprep.subr.mxu0 0.0
  %2546 = vmatpush1.msra.mxu0 0.0
  %2547 = vmatprep.subr.mxu0 0.0
  %2548 = vmatpush1.msra.mxu0 0.0
  %2549 = vmatprep.subr.mxu0 0.0
  %2550 = vmatpush1.msra.mxu0 0.0
  %2551 = vmatprep.subr.mxu0 0.0
  %2552 = vmatpush1.msra.mxu0 0.0
  %2553 = vmatprep.subr.mxu0 0.0
  %2554 = vmatpush1.msra.mxu0 0.0
  %2555 = vmatprep.subr.mxu0 0.0
  %2556 = vmatpush1.msra.mxu0 0.0
  %2557 = vmatprep.subr.mxu0 0.0
  %2558 = vmatpush1.msra.mxu0 0.0
  %2559 = vmatprep.subr.mxu0 0.0
  %2560 = vmatpush1.msra.mxu0 0.0
  %2561 = vmatprep.subr.mxu0 0.0
  %2562 = vmatpush1.msra.mxu0 0.0
  %2563 = vmatprep.subr.mxu0 0.0
  %2564 = vmatpush1.msra.mxu0 0.0
  %2565 = vmatprep.subr.mxu0 0.0
  %2566 = vmatpush1.msra.mxu0 0.0
  %2567 = vmatprep.subr.mxu0 0.0
  %2568 = vmatpush1.msra.mxu0 0.0
  %2569 = vmatprep.subr.mxu0 0.0
  %2570 = vmatpush1.msra.mxu0 0.0
  %2571 = vmatprep.mubr.f32.mxu0 0.0
  %2572 = vmatmul.mubr.f32.gmra.mrb[0].mxu0 %v2494
  %v2573 = vpop.f32.mrb[0].mxu0
  %v2574 = vadd.f32 0.0, %v2573
  %v2575 = vpop.f32.mrb[0].mxu0
  %2576 = vmatprep.mubr.f32.mxu0 0.0
  %2577 = vmatmul.mubr.f32.gmra.mrb[0].mxu0 %v2497
  %v2578 = vpop.f32.mrb[0].mxu0
  %v2579 = vadd.f32 0.0, %v2578
  %v2580 = vpop.f32.mrb[0].mxu0
  %2581 = vmatprep.mubr.f32.mxu0 0.0
  %2582 = vmatmul.mubr.f32.gmra.mrb[0].mxu0 %v2500
  %v2583 = vpop.f32.mrb[0].mxu0
  %v2584 = vadd.f32 0.0, %v2583
  %v2585 = vpop.f32.mrb[0].mxu0
  %2586 = vmatprep.mubr.f32.mxu0 0.0
  %2587 = vmatmul.mubr.f32.gmra.mrb[0].mxu0 %v2503
  %v2588 = vpop.f32.mrb[0].mxu0
  %v2589 = vadd.f32 0.0, %v2588
  %v2590 = vpop.f32.mrb[0].mxu0
  %2591 = vdwg.mxu0
  %2592 = vrot.lane.b32.xlu0 %v2307, 120
  %v2593 = vpop.permute.xlu0 %2592
  %2594 = vrot.lane.b32.xlu0 %v2312, 120
  %v2595 = vpop.permute.xlu0 %2594
  %2596 = vrot.lane.b32.xlu0 %v2317, 120
  %v2597 = vpop.permute.xlu0 %2596
  %2598 = vrot.lane.b32.xlu0 %v2322, 120
  %v2599 = vpop.permute.xlu0 %2598
  %2600 = vrot.lane.b32.xlu0 %v2307, 88
  %v2601 = vpop.permute.xlu0 %2600
  %2602 = vrot.lane.b32.xlu0 %v2312, 88
  %v2603 = vpop.permute.xlu0 %2602
  %2604 = vrot.lane.b32.xlu0 %v2317, 88
  %v2605 = vpop.permute.xlu0 %2604
  %2606 = vrot.lane.b32.xlu0 %v2322, 88
  %v2607 = vpop.permute.xlu0 %2606
  %v2608 = vsel %vm320, %v2593, 0
  %v2610 = vsel %vm320, %v2595, 0
  %v2612 = vsel %vm320, %v2597, 0
  %v2614 = vsel %vm320, %v2599, 0
  %v2616 = vsel %vm320, %v2601, 0
  %v2618 = vsel %vm320, %v2603, 0
  %v2620 = vsel %vm320, %v2605, 0
  %v2622 = vsel %vm320, %v2607, 0
  %2624 = vmatprep.subr.mxu0 0.0
  %2625 = vmatpush1.xpose.msra.mxu0 %v2616
  %2626 = vmatprep.subr.mxu0 0.0
  %2627 = vmatpush1.xpose.msra.mxu0 %v2618
  %2628 = vmatprep.subr.mxu0 0.0
  %2629 = vmatpush1.xpose.msra.mxu0 %v2620
  %2630 = vmatprep.subr.mxu0 0.0
  %2631 = vmatpush1.xpose.msra.mxu0 %v2622
  %2632 = vmatprep.subr.mxu0 0.0
  %2633 = vmatpush1.xpose.msra.mxu0 0.0
  %2634 = vmatprep.subr.mxu0 0.0
  %2635 = vmatpush1.xpose.msra.mxu0 0.0
  %2636 = vmatprep.subr.mxu0 0.0
  %2637 = vmatpush1.xpose.msra.mxu0 0.0
  %2638 = vmatprep.subr.mxu0 0.0
  %2639 = vmatpush1.xpose.msra.mxu0 0.0
  %2640 = vmatprep.subr.mxu0 0.0
  %2641 = vmatpush1.xpose.msra.mxu0 0.0
  %2642 = vmatprep.subr.mxu0 0.0
  %2643 = vmatpush1.xpose.msra.mxu0 0.0
  %2644 = vmatprep.subr.mxu0 0.0
  %2645 = vmatpush1.xpose.msra.mxu0 0.0
  %2646 = vmatprep.subr.mxu0 0.0
  %2647 = vmatpush1.xpose.msra.mxu0 0.0
  %2648 = vmatprep.subr.mxu0 0.0
  %2649 = vmatpush1.xpose.msra.mxu0 0.0
  %2650 = vmatprep.subr.mxu0 0.0
  %2651 = vmatpush1.xpose.msra.mxu0 0.0
  %2652 = vmatprep.subr.mxu0 0.0
  %2653 = vmatpush1.xpose.msra.mxu0 0.0
  %2654 = vmatprep.subr.mxu0 0.0
  %2655 = vmatpush1.xpose.msra.mxu0 0.0
  %2656 = vmatprep.subr.mxu0 0.0
  %2657 = vmatpush1.xpose.msra.mxu0 0.0
  %2658 = vmatprep.subr.mxu0 0.0
  %2659 = vmatpush1.xpose.msra.mxu0 0.0
  %2660 = vmatprep.subr.mxu0 0.0
  %2661 = vmatpush1.xpose.msra.mxu0 0.0
  %2662 = vmatprep.subr.mxu0 0.0
  %2663 = vmatpush1.xpose.msra.mxu0 0.0
  %2664 = vmatprep.subr.mxu0 0.0
  %2665 = vmatpush1.xpose.msra.mxu0 0.0
  %2666 = vmatprep.subr.mxu0 0.0
  %2667 = vmatpush1.xpose.msra.mxu0 0.0
  %2668 = vmatprep.subr.mxu0 0.0
  %2669 = vmatpush1.xpose.msra.mxu0 0.0
  %2670 = vmatprep.subr.mxu0 0.0
  %2671 = vmatpush1.xpose.msra.mxu0 0.0
  %2672 = vmatprep.subr.mxu0 0.0
  %2673 = vmatpush1.xpose.msra.mxu0 0.0
  %2674 = vmatprep.subr.mxu0 0.0
  %2675 = vmatpush1.xpose.msra.mxu0 0.0
  %2676 = vmatprep.subr.mxu0 0.0
  %2677 = vmatpush1.xpose.msra.mxu0 0.0
  %2678 = vmatprep.subr.mxu0 0.0
  %2679 = vmatpush1.xpose.msra.mxu0 0.0
  %2680 = vmatprep.subr.mxu0 0.0
  %2681 = vmatpush1.xpose.msra.mxu0 0.0
  %2682 = vmatprep.subr.mxu0 0.0
  %2683 = vmatpush1.xpose.msra.mxu0 0.0
  %2684 = vmatprep.subr.mxu0 0.0
  %2685 = vmatpush1.xpose.msra.mxu0 0.0
  %2686 = vmatprep.subr.mxu0 0.0
  %2687 = vmatpush1.xpose.msra.mxu0 0.0
  %2688 = vmatprep.mubr.f32.mxu0 0.0
  %2689 = vmatmul.mubr.f32.gmra.mrb[0].mxu0 %v2608
  %v2690 = vpop.f32.mrb[0].mxu0
  %v2691 = vadd.f32 %v116, %v2690
  %v2692 = vpop.f32.mrb[0].mxu0
  %2693 = vmatprep.mubr.f32.mxu0 0.0
  %2694 = vmatmul.mubr.f32.gmra.mrb[0].mxu0 %v2610
  %v2695 = vpop.f32.mrb[0].mxu0
  %v2696 = vadd.f32 %v117, %v2695
  %v2697 = vpop.f32.mrb[0].mxu0
  %2698 = vmatprep.mubr.f32.mxu0 0.0
  %2699 = vmatmul.mubr.f32.gmra.mrb[0].mxu0 %v2612
  %v2700 = vpop.f32.mrb[0].mxu0
  %v2701 = vadd.f32 %v118, %v2700
  %v2702 = vpop.f32.mrb[0].mxu0
  %2703 = vmatprep.mubr.f32.mxu0 0.0
  %2704 = vmatmul.mubr.f32.gmra.mrb[0].mxu0 %v2614
  %v2705 = vpop.f32.mrb[0].mxu0
  %v2706 = vadd.f32 %v119, %v2705
  %v2707 = vpop.f32.mrb[0].mxu0
  %2708 = vdwg.mxu0
  %v2709 = vsel %vm422, %v2691, -inf
  %2710 = vmax.xlane.f32.xlu0 %v2709
  %v2711 = vpop.xlane.xlu0 %2710
  %v2712 = vsel %vm422, %v2696, -inf
  %2713 = vmax.xlane.f32.xlu0 %v2712
  %v2714 = vpop.xlane.xlu0 %2713
  %v2715 = vsel %vm422, %v2701, -inf
  %2716 = vmax.xlane.f32.xlu0 %v2715
  %v2717 = vpop.xlane.xlu0 %2716
  %v2718 = vsel %vm432, %v2706, -inf
  %2719 = vmax.xlane.f32.xlu0 %v2718
  %v2720 = vpop.xlane.xlu0 %2719
  %v2721 = vsub.f32 %v2691, %v2711
  %v2722 = vsub.f32 %v2696, %v2714
  %v2723 = vsub.f32 %v2701, %v2717
  %v2724 = vsub.f32 %v2706, %v2720
  %v2725 = vmul.f32 %v2721, 1.442695
  %v2726 = vpow.pop %v2725
  %v2727 = vmul.f32 %v2722, 1.442695
  %v2728 = vpow.pop %v2727
  %v2729 = vmul.f32 %v2723, 1.442695
  %v2730 = vpow.pop %v2729
  %v2731 = vmul.f32 %v2724, 1.442695
  %v2732 = vpow.pop %v2731
  %v2733 = vsel %vm422, %v2726, 0.0
  %2734 = vadd.xlane.f32.xlu0 %v2733
  %v2735 = vpop.xlane.xlu0 %2734
  %v2736 = vsel %vm422, %v2728, 0.0
  %2737 = vadd.xlane.f32.xlu0 %v2736
  %v2738 = vpop.xlane.xlu0 %2737
  %v2739 = vsel %vm422, %v2730, 0.0
  %2740 = vadd.xlane.f32.xlu0 %v2739
  %v2741 = vpop.xlane.xlu0 %2740
  %v2742 = vsel %vm432, %v2732, 0.0
  %2743 = vadd.xlane.f32.xlu0 %v2742
  %v2744 = vpop.xlane.xlu0 %2743
  %v2745 = vrcp.pop %v2735
  %v2746 = vrcp.pop %v2738
  %v2747 = vrcp.pop %v2741
  %v2748 = vrcp.pop %v2744
  %v2749 = vmul.f32 %v2726, %v2745
  %v2750 = vmul.f32 %v2728, %v2746
  %v2751 = vmul.f32 %v2730, %v2747
  %v2752 = vmul.f32 %v2732, %v2748
  %2753 = vrot.lane.b32.xlu0 %v2307, 56
  %v2754 = vpop.permute.xlu0 %2753
  %2755 = vrot.lane.b32.xlu0 %v2312, 56
  %v2756 = vpop.permute.xlu0 %2755
  %2757 = vrot.lane.b32.xlu0 %v2317, 56
  %v2758 = vpop.permute.xlu0 %2757
  %2759 = vrot.lane.b32.xlu0 %v2322, 56
  %v2760 = vpop.permute.xlu0 %2759
  %v2765 = vsel %vm422, %v2749, 0
  %v2768 = vsel %vm422, %v2750, 0
  %v2771 = vsel %vm422, %v2751, 0
  %v2774 = vsel %vm422, %v2752, 0
  %v2776 = vsel %vm491, %v2760, 0
  %2778 = vmatprep.subr.mxu0 0.0
  %2779 = vmatpush1.msra.mxu0 %v2754
  %2780 = vmatprep.subr.mxu0 0.0
  %2781 = vmatpush1.msra.mxu0 %v2756
  %2782 = vmatprep.subr.mxu0 0.0
  %2783 = vmatpush1.msra.mxu0 %v2758
  %2784 = vmatprep.subr.mxu0 0.0
  %2785 = vmatpush1.msra.mxu0 %v2776
  %2786 = vmatprep.subr.mxu0 0.0
  %2787 = vmatpush1.msra.mxu0 0.0
  %2788 = vmatprep.subr.mxu0 0.0
  %2789 = vmatpush1.msra.mxu0 0.0
  %2790 = vmatprep.subr.mxu0 0.0
  %2791 = vmatpush1.msra.mxu0 0.0
  %2792 = vmatprep.subr.mxu0 0.0
  %2793 = vmatpush1.msra.mxu0 0.0
  %2794 = vmatprep.subr.mxu0 0.0
  %2795 = vmatpush1.msra.mxu0 0.0
  %2796 = vmatprep.subr.mxu0 0.0
  %2797 = vmatpush1.msra.mxu0 0.0
  %2798 = vmatprep.subr.mxu0 0.0
  %2799 = vmatpush1.msra.mxu0 0.0
  %2800 = vmatprep.subr.mxu0 0.0
  %2801 = vmatpush1.msra.mxu0 0.0
  %2802 = vmatprep.subr.mxu0 0.0
  %2803 = vmatpush1.msra.mxu0 0.0
  %2804 = vmatprep.subr.mxu0 0.0
  %2805 = vmatpush1.msra.mxu0 0.0
  %2806 = vmatprep.subr.mxu0 0.0
  %2807 = vmatpush1.msra.mxu0 0.0
  %2808 = vmatprep.subr.mxu0 0.0
  %2809 = vmatpush1.msra.mxu0 0.0
  %2810 = vmatprep.subr.mxu0 0.0
  %2811 = vmatpush1.msra.mxu0 0.0
  %2812 = vmatprep.subr.mxu0 0.0
  %2813 = vmatpush1.msra.mxu0 0.0
  %2814 = vmatprep.subr.mxu0 0.0
  %2815 = vmatpush1.msra.mxu0 0.0
  %2816 = vmatprep.subr.mxu0 0.0
  %2817 = vmatpush1.msra.mxu0 0.0
  %2818 = vmatprep.subr.mxu0 0.0
  %2819 = vmatpush1.msra.mxu0 0.0
  %2820 = vmatprep.subr.mxu0 0.0
  %2821 = vmatpush1.msra.mxu0 0.0
  %2822 = vmatprep.subr.mxu0 0.0
  %2823 = vmatpush1.msra.mxu0 0.0
  %2824 = vmatprep.subr.mxu0 0.0
  %2825 = vmatpush1.msra.mxu0 0.0
  %2826 = vmatprep.subr.mxu0 0.0
  %2827 = vmatpush1.msra.mxu0 0.0
  %2828 = vmatprep.subr.mxu0 0.0
  %2829 = vmatpush1.msra.mxu0 0.0
  %2830 = vmatprep.subr.mxu0 0.0
  %2831 = vmatpush1.msra.mxu0 0.0
  %2832 = vmatprep.subr.mxu0 0.0
  %2833 = vmatpush1.msra.mxu0 0.0
  %2834 = vmatprep.subr.mxu0 0.0
  %2835 = vmatpush1.msra.mxu0 0.0
  %2836 = vmatprep.subr.mxu0 0.0
  %2837 = vmatpush1.msra.mxu0 0.0
  %2838 = vmatprep.subr.mxu0 0.0
  %2839 = vmatpush1.msra.mxu0 0.0
  %2840 = vmatprep.subr.mxu0 0.0
  %2841 = vmatpush1.msra.mxu0 0.0
  %2842 = vmatprep.mubr.f32.mxu0 0.0
  %2843 = vmatmul.mubr.f32.gmra.mrb[0].mxu0 %v2765
  %v2844 = vpop.f32.mrb[0].mxu0
  %v2845 = vadd.f32 0.0, %v2844
  %v2846 = vpop.f32.mrb[0].mxu0
  %2847 = vmatprep.mubr.f32.mxu0 0.0
  %2848 = vmatmul.mubr.f32.gmra.mrb[0].mxu0 %v2768
  %v2849 = vpop.f32.mrb[0].mxu0
  %v2850 = vadd.f32 0.0, %v2849
  %v2851 = vpop.f32.mrb[0].mxu0
  %2852 = vmatprep.mubr.f32.mxu0 0.0
  %2853 = vmatmul.mubr.f32.gmra.mrb[0].mxu0 %v2771
  %v2854 = vpop.f32.mrb[0].mxu0
  %v2855 = vadd.f32 0.0, %v2854
  %v2856 = vpop.f32.mrb[0].mxu0
  %2857 = vmatprep.mubr.f32.mxu0 0.0
  %2858 = vmatmul.mubr.f32.gmra.mrb[0].mxu0 %v2774
  %v2859 = vpop.f32.mrb[0].mxu0
  %v2860 = vadd.f32 0.0, %v2859
  %v2861 = vpop.f32.mrb[0].mxu0
  %2862 = vdwg.mxu0
  %v2864 = vsel %vm320, %v2845, 0
  %v2867 = vsel %vm320, %v2850, 0
  %v2870 = vsel %vm320, %v2855, 0
  %v2873 = vsel %vm320, %v2860, 0
  %2875 = vmatprep.subr.mxu0 0.0
  %2876 = vmatpush1.msra.mxu0 %v2137
  %2877 = vmatprep.subr.mxu0 0.0
  %2878 = vmatpush1.msra.mxu0 0.0
  %2879 = vmatprep.subr.mxu0 0.0
  %2880 = vmatpush1.msra.mxu0 0.0
  %2881 = vmatprep.subr.mxu0 0.0
  %2882 = vmatpush1.msra.mxu0 0.0
  %2883 = vmatprep.subr.mxu0 0.0
  %2884 = vmatpush1.msra.mxu0 0.0
  %2885 = vmatprep.subr.mxu0 0.0
  %2886 = vmatpush1.msra.mxu0 0.0
  %2887 = vmatprep.subr.mxu0 0.0
  %2888 = vmatpush1.msra.mxu0 0.0
  %2889 = vmatprep.subr.mxu0 0.0
  %2890 = vmatpush1.msra.mxu0 0.0
  %2891 = vmatprep.subr.mxu0 0.0
  %2892 = vmatpush1.msra.mxu0 0.0
  %2893 = vmatprep.subr.mxu0 0.0
  %2894 = vmatpush1.msra.mxu0 0.0
  %2895 = vmatprep.subr.mxu0 0.0
  %2896 = vmatpush1.msra.mxu0 0.0
  %2897 = vmatprep.subr.mxu0 0.0
  %2898 = vmatpush1.msra.mxu0 0.0
  %2899 = vmatprep.subr.mxu0 0.0
  %2900 = vmatpush1.msra.mxu0 0.0
  %2901 = vmatprep.subr.mxu0 0.0
  %2902 = vmatpush1.msra.mxu0 0.0
  %2903 = vmatprep.subr.mxu0 0.0
  %2904 = vmatpush1.msra.mxu0 0.0
  %2905 = vmatprep.subr.mxu0 0.0
  %2906 = vmatpush1.msra.mxu0 0.0
  %2907 = vmatprep.subr.mxu0 0.0
  %2908 = vmatpush1.msra.mxu0 0.0
  %2909 = vmatprep.subr.mxu0 0.0
  %2910 = vmatpush1.msra.mxu0 0.0
  %2911 = vmatprep.subr.mxu0 0.0
  %2912 = vmatpush1.msra.mxu0 0.0
  %2913 = vmatprep.subr.mxu0 0.0
  %2914 = vmatpush1.msra.mxu0 0.0
  %2915 = vmatprep.subr.mxu0 0.0
  %2916 = vmatpush1.msra.mxu0 0.0
  %2917 = vmatprep.subr.mxu0 0.0
  %2918 = vmatpush1.msra.mxu0 0.0
  %2919 = vmatprep.subr.mxu0 0.0
  %2920 = vmatpush1.msra.mxu0 0.0
  %2921 = vmatprep.subr.mxu0 0.0
  %2922 = vmatpush1.msra.mxu0 0.0
  %2923 = vmatprep.subr.mxu0 0.0
  %2924 = vmatpush1.msra.mxu0 0.0
  %2925 = vmatprep.subr.mxu0 0.0
  %2926 = vmatpush1.msra.mxu0 0.0
  %2927 = vmatprep.subr.mxu0 0.0
  %2928 = vmatpush1.msra.mxu0 0.0
  %2929 = vmatprep.subr.mxu0 0.0
  %2930 = vmatpush1.msra.mxu0 0.0
  %2931 = vmatprep.subr.mxu0 0.0
  %2932 = vmatpush1.msra.mxu0 0.0
  %2933 = vmatprep.subr.mxu0 0.0
  %2934 = vmatpush1.msra.mxu0 0.0
  %2935 = vmatprep.subr.mxu0 0.0
  %2936 = vmatpush1.msra.mxu0 0.0
  %2937 = vmatprep.subr.mxu0 0.0
  %2938 = vmatpush1.msra.mxu0 0.0
  %2939 = vmatprep.mubr.f32.mxu0 0.0
  %2940 = vmatmul.mubr.f32.gmra.mrb[0].mxu0 %v2864
  %v2941 = vpop.f32.mrb[0].mxu0
  %v2942 = vadd.f32 0.0, %v2941
  %v2943 = vpop.f32.mrb[0].mxu0
  %2944 = vmatprep.mubr.f32.mxu0 0.0
  %2945 = vmatmul.mubr.f32.gmra.mrb[0].mxu0 %v2867
  %v2946 = vpop.f32.mrb[0].mxu0
  %v2947 = vadd.f32 0.0, %v2946
  %v2948 = vpop.f32.mrb[0].mxu0
  %2949 = vmatprep.mubr.f32.mxu0 0.0
  %2950 = vmatmul.mubr.f32.gmra.mrb[0].mxu0 %v2870
  %v2951 = vpop.f32.mrb[0].mxu0
  %v2952 = vadd.f32 0.0, %v2951
  %v2953 = vpop.f32.mrb[0].mxu0
  %2954 = vmatprep.mubr.f32.mxu0 0.0
  %2955 = vmatmul.mubr.f32.gmra.mrb[0].mxu0 %v2873
  %v2956 = vpop.f32.mrb[0].mxu0
  %v2957 = vadd.f32 0.0, %v2956
  %v2958 = vpop.f32.mrb[0].mxu0
  %2959 = vdwg.mxu0
  %v2961 = vsel %vm320, %v2574, 0
  %v2964 = vsel %vm320, %v2579, 0
  %v2967 = vsel %vm320, %v2584, 0
  %v2970 = vsel %vm320, %v2589, 0
  %2972 = vmatprep.subr.mxu0 0.0
  %2973 = vmatpush1.msra.mxu0 %v2136
  %2974 = vmatprep.subr.mxu0 0.0
  %2975 = vmatpush1.msra.mxu0 0.0
  %2976 = vmatprep.subr.mxu0 0.0
  %2977 = vmatpush1.msra.mxu0 0.0
  %2978 = vmatprep.subr.mxu0 0.0
  %2979 = vmatpush1.msra.mxu0 0.0
  %2980 = vmatprep.subr.mxu0 0.0
  %2981 = vmatpush1.msra.mxu0 0.0
  %2982 = vmatprep.subr.mxu0 0.0
  %2983 = vmatpush1.msra.mxu0 0.0
  %2984 = vmatprep.subr.mxu0 0.0
  %2985 = vmatpush1.msra.mxu0 0.0
  %2986 = vmatprep.subr.mxu0 0.0
  %2987 = vmatpush1.msra.mxu0 0.0
  %2988 = vmatprep.subr.mxu0 0.0
  %2989 = vmatpush1.msra.mxu0 0.0
  %2990 = vmatprep.subr.mxu0 0.0
  %2991 = vmatpush1.msra.mxu0 0.0
  %2992 = vmatprep.subr.mxu0 0.0
  %2993 = vmatpush1.msra.mxu0 0.0
  %2994 = vmatprep.subr.mxu0 0.0
  %2995 = vmatpush1.msra.mxu0 0.0
  %2996 = vmatprep.subr.mxu0 0.0
  %2997 = vmatpush1.msra.mxu0 0.0
  %2998 = vmatprep.subr.mxu0 0.0
  %2999 = vmatpush1.msra.mxu0 0.0
  %3000 = vmatprep.subr.mxu0 0.0
  %3001 = vmatpush1.msra.mxu0 0.0
  %3002 = vmatprep.subr.mxu0 0.0
  %3003 = vmatpush1.msra.mxu0 0.0
  %3004 = vmatprep.subr.mxu0 0.0
  %3005 = vmatpush1.msra.mxu0 0.0
  %3006 = vmatprep.subr.mxu0 0.0
  %3007 = vmatpush1.msra.mxu0 0.0
  %3008 = vmatprep.subr.mxu0 0.0
  %3009 = vmatpush1.msra.mxu0 0.0
  %3010 = vmatprep.subr.mxu0 0.0
  %3011 = vmatpush1.msra.mxu0 0.0
  %3012 = vmatprep.subr.mxu0 0.0
  %3013 = vmatpush1.msra.mxu0 0.0
  %3014 = vmatprep.subr.mxu0 0.0
  %3015 = vmatpush1.msra.mxu0 0.0
  %3016 = vmatprep.subr.mxu0 0.0
  %3017 = vmatpush1.msra.mxu0 0.0
  %3018 = vmatprep.subr.mxu0 0.0
  %3019 = vmatpush1.msra.mxu0 0.0
  %3020 = vmatprep.subr.mxu0 0.0
  %3021 = vmatpush1.msra.mxu0 0.0
  %3022 = vmatprep.subr.mxu0 0.0
  %3023 = vmatpush1.msra.mxu0 0.0
  %3024 = vmatprep.subr.mxu0 0.0
  %3025 = vmatpush1.msra.mxu0 0.0
  %3026 = vmatprep.subr.mxu0 0.0
  %3027 = vmatpush1.msra.mxu0 0.0
  %3028 = vmatprep.subr.mxu0 0.0
  %3029 = vmatpush1.msra.mxu0 0.0
  %3030 = vmatprep.subr.mxu0 0.0
  %3031 = vmatpush1.msra.mxu0 0.0
  %3032 = vmatprep.subr.mxu0 0.0
  %3033 = vmatpush1.msra.mxu0 0.0
  %3034 = vmatprep.subr.mxu0 0.0
  %3035 = vmatpush1.msra.mxu0 0.0
  %3036 = vmatprep.mubr.f32.mxu0 0.0
  %3037 = vmatmul.mubr.f32.gmra.mrb[0].mxu0 %v2961
  %v3038 = vpop.f32.mrb[0].mxu0
  %v3039 = vadd.f32 %v2942, %v3038
  %v3040 = vpop.f32.mrb[0].mxu0
  %3041 = vmatprep.mubr.f32.mxu0 0.0
  %3042 = vmatmul.mubr.f32.gmra.mrb[0].mxu0 %v2964
  %v3043 = vpop.f32.mrb[0].mxu0
  %v3044 = vadd.f32 %v2947, %v3043
  %v3045 = vpop.f32.mrb[0].mxu0
  %3046 = vmatprep.mubr.f32.mxu0 0.0
  %3047 = vmatmul.mubr.f32.gmra.mrb[0].mxu0 %v2967
  %v3048 = vpop.f32.mrb[0].mxu0
  %v3049 = vadd.f32 %v2952, %v3048
  %v3050 = vpop.f32.mrb[0].mxu0
  %3051 = vmatprep.mubr.f32.mxu0 0.0
  %3052 = vmatmul.mubr.f32.gmra.mrb[0].mxu0 %v2970
  %v3053 = vpop.f32.mrb[0].mxu0
  %v3054 = vadd.f32 %v2957, %v3053
  %v3055 = vpop.f32.mrb[0].mxu0
  %3056 = vdwg.mxu0
  %3057 = vrot.lane.b32.xlu0 %v2307, 112
  %v3058 = vpop.permute.xlu0 %3057
  %3059 = vrot.lane.b32.xlu0 %v2312, 112
  %v3060 = vpop.permute.xlu0 %3059
  %3061 = vrot.lane.b32.xlu0 %v2317, 112
  %v3062 = vpop.permute.xlu0 %3061
  %3063 = vrot.lane.b32.xlu0 %v2322, 112
  %v3064 = vpop.permute.xlu0 %3063
  %3065 = vrot.lane.b32.xlu0 %v2307, 80
  %v3066 = vpop.permute.xlu0 %3065
  %3067 = vrot.lane.b32.xlu0 %v2312, 80
  %v3068 = vpop.permute.xlu0 %3067
  %3069 = vrot.lane.b32.xlu0 %v2317, 80
  %v3070 = vpop.permute.xlu0 %3069
  %3071 = vrot.lane.b32.xlu0 %v2322, 80
  %v3072 = vpop.permute.xlu0 %3071
  %v3073 = vsel %vm320, %v3058, 0
  %v3075 = vsel %vm320, %v3060, 0
  %v3077 = vsel %vm320, %v3062, 0
  %v3079 = vsel %vm320, %v3064, 0
  %v3081 = vsel %vm320, %v3066, 0
  %v3083 = vsel %vm320, %v3068, 0
  %v3085 = vsel %vm320, %v3070, 0
  %v3087 = vsel %vm320, %v3072, 0
  %3089 = vmatprep.subr.mxu0 0.0
  %3090 = vmatpush1.xpose.msra.mxu0 %v3081
  %3091 = vmatprep.subr.mxu0 0.0
  %3092 = vmatpush1.xpose.msra.mxu0 %v3083
  %3093 = vmatprep.subr.mxu0 0.0
  %3094 = vmatpush1.xpose.msra.mxu0 %v3085
  %3095 = vmatprep.subr.mxu0 0.0
  %3096 = vmatpush1.xpose.msra.mxu0 %v3087
  %3097 = vmatprep.subr.mxu0 0.0
  %3098 = vmatpush1.xpose.msra.mxu0 0.0
  %3099 = vmatprep.subr.mxu0 0.0
  %3100 = vmatpush1.xpose.msra.mxu0 0.0
  %3101 = vmatprep.subr.mxu0 0.0
  %3102 = vmatpush1.xpose.msra.mxu0 0.0
  %3103 = vmatprep.subr.mxu0 0.0
  %3104 = vmatpush1.xpose.msra.mxu0 0.0
  %3105 = vmatprep.subr.mxu0 0.0
  %3106 = vmatpush1.xpose.msra.mxu0 0.0
  %3107 = vmatprep.subr.mxu0 0.0
  %3108 = vmatpush1.xpose.msra.mxu0 0.0
  %3109 = vmatprep.subr.mxu0 0.0
  %3110 = vmatpush1.xpose.msra.mxu0 0.0
  %3111 = vmatprep.subr.mxu0 0.0
  %3112 = vmatpush1.xpose.msra.mxu0 0.0
  %3113 = vmatprep.subr.mxu0 0.0
  %3114 = vmatpush1.xpose.msra.mxu0 0.0
  %3115 = vmatprep.subr.mxu0 0.0
  %3116 = vmatpush1.xpose.msra.mxu0 0.0
  %3117 = vmatprep.subr.mxu0 0.0
  %3118 = vmatpush1.xpose.msra.mxu0 0.0
  %3119 = vmatprep.subr.mxu0 0.0
  %3120 = vmatpush1.xpose.msra.mxu0 0.0
  %3121 = vmatprep.subr.mxu0 0.0
  %3122 = vmatpush1.xpose.msra.mxu0 0.0
  %3123 = vmatprep.subr.mxu0 0.0
  %3124 = vmatpush1.xpose.msra.mxu0 0.0
  %3125 = vmatprep.subr.mxu0 0.0
  %3126 = vmatpush1.xpose.msra.mxu0 0.0
  %3127 = vmatprep.subr.mxu0 0.0
  %3128 = vmatpush1.xpose.msra.mxu0 0.0
  %3129 = vmatprep.subr.mxu0 0.0
  %3130 = vmatpush1.xpose.msra.mxu0 0.0
  %3131 = vmatprep.subr.mxu0 0.0
  %3132 = vmatpush1.xpose.msra.mxu0 0.0
  %3133 = vmatprep.subr.mxu0 0.0
  %3134 = vmatpush1.xpose.msra.mxu0 0.0
  %3135 = vmatprep.subr.mxu0 0.0
  %3136 = vmatpush1.xpose.msra.mxu0 0.0
  %3137 = vmatprep.subr.mxu0 0.0
  %3138 = vmatpush1.xpose.msra.mxu0 0.0
  %3139 = vmatprep.subr.mxu0 0.0
  %3140 = vmatpush1.xpose.msra.mxu0 0.0
  %3141 = vmatprep.subr.mxu0 0.0
  %3142 = vmatpush1.xpose.msra.mxu0 0.0
  %3143 = vmatprep.subr.mxu0 0.0
  %3144 = vmatpush1.xpose.msra.mxu0 0.0
  %3145 = vmatprep.subr.mxu0 0.0
  %3146 = vmatpush1.xpose.msra.mxu0 0.0
  %3147 = vmatprep.subr.mxu0 0.0
  %3148 = vmatpush1.xpose.msra.mxu0 0.0
  %3149 = vmatprep.subr.mxu0 0.0
  %3150 = vmatpush1.xpose.msra.mxu0 0.0
  %3151 = vmatprep.subr.mxu0 0.0
  %3152 = vmatpush1.xpose.msra.mxu0 0.0
  %3153 = vmatprep.mubr.f32.mxu0 0.0
  %3154 = vmatmul.mubr.f32.gmra.mrb[0].mxu0 %v3073
  %v3155 = vpop.f32.mrb[0].mxu0
  %v3156 = vadd.f32 %v116, %v3155
  %v3157 = vpop.f32.mrb[0].mxu0
  %3158 = vmatprep.mubr.f32.mxu0 0.0
  %3159 = vmatmul.mubr.f32.gmra.mrb[0].mxu0 %v3075
  %v3160 = vpop.f32.mrb[0].mxu0
  %v3161 = vadd.f32 %v117, %v3160
  %v3162 = vpop.f32.mrb[0].mxu0
  %3163 = vmatprep.mubr.f32.mxu0 0.0
  %3164 = vmatmul.mubr.f32.gmra.mrb[0].mxu0 %v3077
  %v3165 = vpop.f32.mrb[0].mxu0
  %v3166 = vadd.f32 %v118, %v3165
  %v3167 = vpop.f32.mrb[0].mxu0
  %3168 = vmatprep.mubr.f32.mxu0 0.0
  %3169 = vmatmul.mubr.f32.gmra.mrb[0].mxu0 %v3079
  %v3170 = vpop.f32.mrb[0].mxu0
  %v3171 = vadd.f32 %v119, %v3170
  %v3172 = vpop.f32.mrb[0].mxu0
  %3173 = vdwg.mxu0
  %v3174 = vsel %vm422, %v3156, -inf
  %3175 = vmax.xlane.f32.xlu0 %v3174
  %v3176 = vpop.xlane.xlu0 %3175
  %v3177 = vsel %vm422, %v3161, -inf
  %3178 = vmax.xlane.f32.xlu0 %v3177
  %v3179 = vpop.xlane.xlu0 %3178
  %v3180 = vsel %vm422, %v3166, -inf
  %3181 = vmax.xlane.f32.xlu0 %v3180
  %v3182 = vpop.xlane.xlu0 %3181
  %v3183 = vsel %vm432, %v3171, -inf
  %3184 = vmax.xlane.f32.xlu0 %v3183
  %v3185 = vpop.xlane.xlu0 %3184
  %v3186 = vsub.f32 %v3156, %v3176
  %v3187 = vsub.f32 %v3161, %v3179
  %v3188 = vsub.f32 %v3166, %v3182
  %v3189 = vsub.f32 %v3171, %v3185
  %v3190 = vmul.f32 %v3186, 1.442695
  %v3191 = vpow.pop %v3190
  %v3192 = vmul.f32 %v3187, 1.442695
  %v3193 = vpow.pop %v3192
  %v3194 = vmul.f32 %v3188, 1.442695
  %v3195 = vpow.pop %v3194
  %v3196 = vmul.f32 %v3189, 1.442695
  %v3197 = vpow.pop %v3196
  %v3198 = vsel %vm422, %v3191, 0.0
  %3199 = vadd.xlane.f32.xlu0 %v3198
  %v3200 = vpop.xlane.xlu0 %3199
  %v3201 = vsel %vm422, %v3193, 0.0
  %3202 = vadd.xlane.f32.xlu0 %v3201
  %v3203 = vpop.xlane.xlu0 %3202
  %v3204 = vsel %vm422, %v3195, 0.0
  %3205 = vadd.xlane.f32.xlu0 %v3204
  %v3206 = vpop.xlane.xlu0 %3205
  %v3207 = vsel %vm432, %v3197, 0.0
  %3208 = vadd.xlane.f32.xlu0 %v3207
  %v3209 = vpop.xlane.xlu0 %3208
  %v3210 = vrcp.pop %v3200
  %v3211 = vrcp.pop %v3203
  %v3212 = vrcp.pop %v3206
  %v3213 = vrcp.pop %v3209
  %v3214 = vmul.f32 %v3191, %v3210
  %v3215 = vmul.f32 %v3193, %v3211
  %v3216 = vmul.f32 %v3195, %v3212
  %v3217 = vmul.f32 %v3197, %v3213
  %3218 = vrot.lane.b32.xlu0 %v2307, 48
  %v3219 = vpop.permute.xlu0 %3218
  %3220 = vrot.lane.b32.xlu0 %v2312, 48
  %v3221 = vpop.permute.xlu0 %3220
  %3222 = vrot.lane.b32.xlu0 %v2317, 48
  %v3223 = vpop.permute.xlu0 %3222
  %3224 = vrot.lane.b32.xlu0 %v2322, 48
  %v3225 = vpop.permute.xlu0 %3224
  %v3230 = vsel %vm422, %v3214, 0
  %v3233 = vsel %vm422, %v3215, 0
  %v3236 = vsel %vm422, %v3216, 0
  %v3239 = vsel %vm422, %v3217, 0
  %v3241 = vsel %vm491, %v3225, 0
  %3243 = vmatprep.subr.mxu0 0.0
  %3244 = vmatpush1.msra.mxu0 %v3219
  %3245 = vmatprep.subr.mxu0 0.0
  %3246 = vmatpush1.msra.mxu0 %v3221
  %3247 = vmatprep.subr.mxu0 0.0
  %3248 = vmatpush1.msra.mxu0 %v3223
  %3249 = vmatprep.subr.mxu0 0.0
  %3250 = vmatpush1.msra.mxu0 %v3241
  %3251 = vmatprep.subr.mxu0 0.0
  %3252 = vmatpush1.msra.mxu0 0.0
  %3253 = vmatprep.subr.mxu0 0.0
  %3254 = vmatpush1.msra.mxu0 0.0
  %3255 = vmatprep.subr.mxu0 0.0
  %3256 = vmatpush1.msra.mxu0 0.0
  %3257 = vmatprep.subr.mxu0 0.0
  %3258 = vmatpush1.msra.mxu0 0.0
  %3259 = vmatprep.subr.mxu0 0.0
  %3260 = vmatpush1.msra.mxu0 0.0
  %3261 = vmatprep.subr.mxu0 0.0
  %3262 = vmatpush1.msra.mxu0 0.0
  %3263 = vmatprep.subr.mxu0 0.0
  %3264 = vmatpush1.msra.mxu0 0.0
  %3265 = vmatprep.subr.mxu0 0.0
  %3266 = vmatpush1.msra.mxu0 0.0
  %3267 = vmatprep.subr.mxu0 0.0
  %3268 = vmatpush1.msra.mxu0 0.0
  %3269 = vmatprep.subr.mxu0 0.0
  %3270 = vmatpush1.msra.mxu0 0.0
  %3271 = vmatprep.subr.mxu0 0.0
  %3272 = vmatpush1.msra.mxu0 0.0
  %3273 = vmatprep.subr.mxu0 0.0
  %3274 = vmatpush1.msra.mxu0 0.0
  %3275 = vmatprep.subr.mxu0 0.0
  %3276 = vmatpush1.msra.mxu0 0.0
  %3277 = vmatprep.subr.mxu0 0.0
  %3278 = vmatpush1.msra.mxu0 0.0
  %3279 = vmatprep.subr.mxu0 0.0
  %3280 = vmatpush1.msra.mxu0 0.0
  %3281 = vmatprep.subr.mxu0 0.0
  %3282 = vmatpush1.msra.mxu0 0.0
  %3283 = vmatprep.subr.mxu0 0.0
  %3284 = vmatpush1.msra.mxu0 0.0
  %3285 = vmatprep.subr.mxu0 0.0
  %3286 = vmatpush1.msra.mxu0 0.0
  %3287 = vmatprep.subr.mxu0 0.0
  %3288 = vmatpush1.msra.mxu0 0.0
  %3289 = vmatprep.subr.mxu0 0.0
  %3290 = vmatpush1.msra.mxu0 0.0
  %3291 = vmatprep.subr.mxu0 0.0
  %3292 = vmatpush1.msra.mxu0 0.0
  %3293 = vmatprep.subr.mxu0 0.0
  %3294 = vmatpush1.msra.mxu0 0.0
  %3295 = vmatprep.subr.mxu0 0.0
  %3296 = vmatpush1.msra.mxu0 0.0
  %3297 = vmatprep.subr.mxu0 0.0
  %3298 = vmatpush1.msra.mxu0 0.0
  %3299 = vmatprep.subr.mxu0 0.0
  %3300 = vmatpush1.msra.mxu0 0.0
  %3301 = vmatprep.subr.mxu0 0.0
  %3302 = vmatpush1.msra.mxu0 0.0
  %3303 = vmatprep.subr.mxu0 0.0
  %3304 = vmatpush1.msra.mxu0 0.0
  %3305 = vmatprep.subr.mxu0 0.0
  %3306 = vmatpush1.msra.mxu0 0.0
  %3307 = vmatprep.mubr.f32.mxu0 0.0
  %3308 = vmatmul.mubr.f32.gmra.mrb[0].mxu0 %v3230
  %v3309 = vpop.f32.mrb[0].mxu0
  %v3310 = vadd.f32 0.0, %v3309
  %v3311 = vpop.f32.mrb[0].mxu0
  %3312 = vmatprep.mubr.f32.mxu0 0.0
  %3313 = vmatmul.mubr.f32.gmra.mrb[0].mxu0 %v3233
  %v3314 = vpop.f32.mrb[0].mxu0
  %v3315 = vadd.f32 0.0, %v3314
  %v3316 = vpop.f32.mrb[0].mxu0
  %3317 = vmatprep.mubr.f32.mxu0 0.0
  %3318 = vmatmul.mubr.f32.gmra.mrb[0].mxu0 %v3236
  %v3319 = vpop.f32.mrb[0].mxu0
  %v3320 = vadd.f32 0.0, %v3319
  %v3321 = vpop.f32.mrb[0].mxu0
  %3322 = vmatprep.mubr.f32.mxu0 0.0
  %3323 = vmatmul.mubr.f32.gmra.mrb[0].mxu0 %v3239
  %v3324 = vpop.f32.mrb[0].mxu0
  %v3325 = vadd.f32 0.0, %v3324
  %v3326 = vpop.f32.mrb[0].mxu0
  %3327 = vdwg.mxu0
  %v3329 = vsel %vm320, %v3310, 0
  %v3332 = vsel %vm320, %v3315, 0
  %v3335 = vsel %vm320, %v3320, 0
  %v3338 = vsel %vm320, %v3325, 0
  %3340 = vmatprep.subr.mxu0 0.0
  %3341 = vmatpush1.msra.mxu0 %v2138
  %3342 = vmatprep.subr.mxu0 0.0
  %3343 = vmatpush1.msra.mxu0 0.0
  %3344 = vmatprep.subr.mxu0 0.0
  %3345 = vmatpush1.msra.mxu0 0.0
  %3346 = vmatprep.subr.mxu0 0.0
  %3347 = vmatpush1.msra.mxu0 0.0
  %3348 = vmatprep.subr.mxu0 0.0
  %3349 = vmatpush1.msra.mxu0 0.0
  %3350 = vmatprep.subr.mxu0 0.0
  %3351 = vmatpush1.msra.mxu0 0.0
  %3352 = vmatprep.subr.mxu0 0.0
  %3353 = vmatpush1.msra.mxu0 0.0
  %3354 = vmatprep.subr.mxu0 0.0
  %3355 = vmatpush1.msra.mxu0 0.0
  %3356 = vmatprep.subr.mxu0 0.0
  %3357 = vmatpush1.msra.mxu0 0.0
  %3358 = vmatprep.subr.mxu0 0.0
  %3359 = vmatpush1.msra.mxu0 0.0
  %3360 = vmatprep.subr.mxu0 0.0
  %3361 = vmatpush1.msra.mxu0 0.0
  %3362 = vmatprep.subr.mxu0 0.0
  %3363 = vmatpush1.msra.mxu0 0.0
  %3364 = vmatprep.subr.mxu0 0.0
  %3365 = vmatpush1.msra.mxu0 0.0
  %3366 = vmatprep.subr.mxu0 0.0
  %3367 = vmatpush1.msra.mxu0 0.0
  %3368 = vmatprep.subr.mxu0 0.0
  %3369 = vmatpush1.msra.mxu0 0.0
  %3370 = vmatprep.subr.mxu0 0.0
  %3371 = vmatpush1.msra.mxu0 0.0
  %3372 = vmatprep.subr.mxu0 0.0
  %3373 = vmatpush1.msra.mxu0 0.0
  %3374 = vmatprep.subr.mxu0 0.0
  %3375 = vmatpush1.msra.mxu0 0.0
  %3376 = vmatprep.subr.mxu0 0.0
  %3377 = vmatpush1.msra.mxu0 0.0
  %3378 = vmatprep.subr.mxu0 0.0
  %3379 = vmatpush1.msra.mxu0 0.0
  %3380 = vmatprep.subr.mxu0 0.0
  %3381 = vmatpush1.msra.mxu0 0.0
  %3382 = vmatprep.subr.mxu0 0.0
  %3383 = vmatpush1.msra.mxu0 0.0
  %3384 = vmatprep.subr.mxu0 0.0
  %3385 = vmatpush1.msra.mxu0 0.0
  %3386 = vmatprep.subr.mxu0 0.0
  %3387 = vmatpush1.msra.mxu0 0.0
  %3388 = vmatprep.subr.mxu0 0.0
  %3389 = vmatpush1.msra.mxu0 0.0
  %3390 = vmatprep.subr.mxu0 0.0
  %3391 = vmatpush1.msra.mxu0 0.0
  %3392 = vmatprep.subr.mxu0 0.0
  %3393 = vmatpush1.msra.mxu0 0.0
  %3394 = vmatprep.subr.mxu0 0.0
  %3395 = vmatpush1.msra.mxu0 0.0
  %3396 = vmatprep.subr.mxu0 0.0
  %3397 = vmatpush1.msra.mxu0 0.0
  %3398 = vmatprep.subr.mxu0 0.0
  %3399 = vmatpush1.msra.mxu0 0.0
  %3400 = vmatprep.subr.mxu0 0.0
  %3401 = vmatpush1.msra.mxu0 0.0
  %3402 = vmatprep.subr.mxu0 0.0
  %3403 = vmatpush1.msra.mxu0 0.0
  %3404 = vmatprep.mubr.f32.mxu0 0.0
  %3405 = vmatmul.mubr.f32.gmra.mrb[0].mxu0 %v3329
  %v3406 = vpop.f32.mrb[0].mxu0
  %v3407 = vadd.f32 0.0, %v3406
  %v3408 = vpop.f32.mrb[0].mxu0
  %3409 = vmatprep.mubr.f32.mxu0 0.0
  %3410 = vmatmul.mubr.f32.gmra.mrb[0].mxu0 %v3332
  %v3411 = vpop.f32.mrb[0].mxu0
  %v3412 = vadd.f32 0.0, %v3411
  %v3413 = vpop.f32.mrb[0].mxu0
  %3414 = vmatprep.mubr.f32.mxu0 0.0
  %3415 = vmatmul.mubr.f32.gmra.mrb[0].mxu0 %v3335
  %v3416 = vpop.f32.mrb[0].mxu0
  %v3417 = vadd.f32 0.0, %v3416
  %v3418 = vpop.f32.mrb[0].mxu0
  %3419 = vmatprep.mubr.f32.mxu0 0.0
  %3420 = vmatmul.mubr.f32.gmra.mrb[0].mxu0 %v3338
  %v3421 = vpop.f32.mrb[0].mxu0
  %v3422 = vadd.f32 0.0, %v3421
  %v3423 = vpop.f32.mrb[0].mxu0
  %3424 = vdwg.mxu0
  %v3425 = vadd.f32 %v3039, %v3407
  %v3426 = vadd.f32 %v3044, %v3412
  %v3427 = vadd.f32 %v3049, %v3417
  %v3428 = vadd.f32 %v3054, %v3422
  %3429 = vrot.lane.b32.xlu0 %v2307, 104
  %v3430 = vpop.permute.xlu0 %3429
  %3431 = vrot.lane.b32.xlu0 %v2312, 104
  %v3432 = vpop.permute.xlu0 %3431
  %3433 = vrot.lane.b32.xlu0 %v2317, 104
  %v3434 = vpop.permute.xlu0 %3433
  %3435 = vrot.lane.b32.xlu0 %v2322, 104
  %v3436 = vpop.permute.xlu0 %3435
  %3437 = vrot.lane.b32.xlu0 %v2307, 72
  %v3438 = vpop.permute.xlu0 %3437
  %3439 = vrot.lane.b32.xlu0 %v2312, 72
  %v3440 = vpop.permute.xlu0 %3439
  %3441 = vrot.lane.b32.xlu0 %v2317, 72
  %v3442 = vpop.permute.xlu0 %3441
  %3443 = vrot.lane.b32.xlu0 %v2322, 72
  %v3444 = vpop.permute.xlu0 %3443
  %v3445 = vsel %vm320, %v3430, 0
  %v3447 = vsel %vm320, %v3432, 0
  %v3449 = vsel %vm320, %v3434, 0
  %v3451 = vsel %vm320, %v3436, 0
  %v3453 = vsel %vm320, %v3438, 0
  %v3455 = vsel %vm320, %v3440, 0
  %v3457 = vsel %vm320, %v3442, 0
  %v3459 = vsel %vm320, %v3444, 0
  %3461 = vmatprep.subr.mxu0 0.0
  %3462 = vmatpush1.xpose.msra.mxu0 %v3453
  %3463 = vmatprep.subr.mxu0 0.0
  %3464 = vmatpush1.xpose.msra.mxu0 %v3455
  %3465 = vmatprep.subr.mxu0 0.0
  %3466 = vmatpush1.xpose.msra.mxu0 %v3457
  %3467 = vmatprep.subr.mxu0 0.0
  %3468 = vmatpush1.xpose.msra.mxu0 %v3459
  %3469 = vmatprep.subr.mxu0 0.0
  %3470 = vmatpush1.xpose.msra.mxu0 0.0
  %3471 = vmatprep.subr.mxu0 0.0
  %3472 = vmatpush1.xpose.msra.mxu0 0.0
  %3473 = vmatprep.subr.mxu0 0.0
  %3474 = vmatpush1.xpose.msra.mxu0 0.0
  %3475 = vmatprep.subr.mxu0 0.0
  %3476 = vmatpush1.xpose.msra.mxu0 0.0
  %3477 = vmatprep.subr.mxu0 0.0
  %3478 = vmatpush1.xpose.msra.mxu0 0.0
  %3479 = vmatprep.subr.mxu0 0.0
  %3480 = vmatpush1.xpose.msra.mxu0 0.0
  %3481 = vmatprep.subr.mxu0 0.0
  %3482 = vmatpush1.xpose.msra.mxu0 0.0
  %3483 = vmatprep.subr.mxu0 0.0
  %3484 = vmatpush1.xpose.msra.mxu0 0.0
  %3485 = vmatprep.subr.mxu0 0.0
  %3486 = vmatpush1.xpose.msra.mxu0 0.0
  %3487 = vmatprep.subr.mxu0 0.0
  %3488 = vmatpush1.xpose.msra.mxu0 0.0
  %3489 = vmatprep.subr.mxu0 0.0
  %3490 = vmatpush1.xpose.msra.mxu0 0.0
  %3491 = vmatprep.subr.mxu0 0.0
  %3492 = vmatpush1.xpose.msra.mxu0 0.0
  %3493 = vmatprep.subr.mxu0 0.0
  %3494 = vmatpush1.xpose.msra.mxu0 0.0
  %3495 = vmatprep.subr.mxu0 0.0
  %3496 = vmatpush1.xpose.msra.mxu0 0.0
  %3497 = vmatprep.subr.mxu0 0.0
  %3498 = vmatpush1.xpose.msra.mxu0 0.0
  %3499 = vmatprep.subr.mxu0 0.0
  %3500 = vmatpush1.xpose.msra.mxu0 0.0
  %3501 = vmatprep.subr.mxu0 0.0
  %3502 = vmatpush1.xpose.msra.mxu0 0.0
  %3503 = vmatprep.subr.mxu0 0.0
  %3504 = vmatpush1.xpose.msra.mxu0 0.0
  %3505 = vmatprep.subr.mxu0 0.0
  %3506 = vmatpush1.xpose.msra.mxu0 0.0
  %3507 = vmatprep.subr.mxu0 0.0
  %3508 = vmatpush1.xpose.msra.mxu0 0.0
  %3509 = vmatprep.subr.mxu0 0.0
  %3510 = vmatpush1.xpose.msra.mxu0 0.0
  %3511 = vmatprep.subr.mxu0 0.0
  %3512 = vmatpush1.xpose.msra.mxu0 0.0
  %3513 = vmatprep.subr.mxu0 0.0
  %3514 = vmatpush1.xpose.msra.mxu0 0.0
  %3515 = vmatprep.subr.mxu0 0.0
  %3516 = vmatpush1.xpose.msra.mxu0 0.0
  %3517 = vmatprep.subr.mxu0 0.0
  %3518 = vmatpush1.xpose.msra.mxu0 0.0
  %3519 = vmatprep.subr.mxu0 0.0
  %3520 = vmatpush1.xpose.msra.mxu0 0.0
  %3521 = vmatprep.subr.mxu0 0.0
  %3522 = vmatpush1.xpose.msra.mxu0 0.0
  %3523 = vmatprep.subr.mxu0 0.0
  %3524 = vmatpush1.xpose.msra.mxu0 0.0
  %3525 = vmatprep.mubr.f32.mxu0 0.0
  %3526 = vmatmul.mubr.f32.gmra.mrb[0].mxu0 %v3445
  %v3527 = vpop.f32.mrb[0].mxu0
  %v3528 = vadd.f32 %v116, %v3527
  %v3529 = vpop.f32.mrb[0].mxu0
  %3530 = vmatprep.mubr.f32.mxu0 0.0
  %3531 = vmatmul.mubr.f32.gmra.mrb[0].mxu0 %v3447
  %v3532 = vpop.f32.mrb[0].mxu0
  %v3533 = vadd.f32 %v117, %v3532
  %v3534 = vpop.f32.mrb[0].mxu0
  %3535 = vmatprep.mubr.f32.mxu0 0.0
  %3536 = vmatmul.mubr.f32.gmra.mrb[0].mxu0 %v3449
  %v3537 = vpop.f32.mrb[0].mxu0
  %v3538 = vadd.f32 %v118, %v3537
  %v3539 = vpop.f32.mrb[0].mxu0
  %3540 = vmatprep.mubr.f32.mxu0 0.0
  %3541 = vmatmul.mubr.f32.gmra.mrb[0].mxu0 %v3451
  %v3542 = vpop.f32.mrb[0].mxu0
  %v3543 = vadd.f32 %v119, %v3542
  %v3544 = vpop.f32.mrb[0].mxu0
  %3545 = vdwg.mxu0
  %v3546 = vsel %vm422, %v3528, -inf
  %3547 = vmax.xlane.f32.xlu0 %v3546
  %v3548 = vpop.xlane.xlu0 %3547
  %v3549 = vsel %vm422, %v3533, -inf
  %3550 = vmax.xlane.f32.xlu0 %v3549
  %v3551 = vpop.xlane.xlu0 %3550
  %v3552 = vsel %vm422, %v3538, -inf
  %3553 = vmax.xlane.f32.xlu0 %v3552
  %v3554 = vpop.xlane.xlu0 %3553
  %v3555 = vsel %vm432, %v3543, -inf
  %3556 = vmax.xlane.f32.xlu0 %v3555
  %v3557 = vpop.xlane.xlu0 %3556
  %v3558 = vsub.f32 %v3528, %v3548
  %v3559 = vsub.f32 %v3533, %v3551
  %v3560 = vsub.f32 %v3538, %v3554
  %v3561 = vsub.f32 %v3543, %v3557
  %v3562 = vmul.f32 %v3558, 1.442695
  %v3563 = vpow.pop %v3562
  %v3564 = vmul.f32 %v3559, 1.442695
  %v3565 = vpow.pop %v3564
  %v3566 = vmul.f32 %v3560, 1.442695
  %v3567 = vpow.pop %v3566
  %v3568 = vmul.f32 %v3561, 1.442695
  %v3569 = vpow.pop %v3568
  %v3570 = vsel %vm422, %v3563, 0.0
  %3571 = vadd.xlane.f32.xlu0 %v3570
  %v3572 = vpop.xlane.xlu0 %3571
  %v3573 = vsel %vm422, %v3565, 0.0
  %3574 = vadd.xlane.f32.xlu0 %v3573
  %v3575 = vpop.xlane.xlu0 %3574
  %v3576 = vsel %vm422, %v3567, 0.0
  %3577 = vadd.xlane.f32.xlu0 %v3576
  %v3578 = vpop.xlane.xlu0 %3577
  %v3579 = vsel %vm432, %v3569, 0.0
  %3580 = vadd.xlane.f32.xlu0 %v3579
  %v3581 = vpop.xlane.xlu0 %3580
  %v3582 = vrcp.pop %v3572
  %v3583 = vrcp.pop %v3575
  %v3584 = vrcp.pop %v3578
  %v3585 = vrcp.pop %v3581
  %v3586 = vmul.f32 %v3563, %v3582
  %v3587 = vmul.f32 %v3565, %v3583
  %v3588 = vmul.f32 %v3567, %v3584
  %v3589 = vmul.f32 %v3569, %v3585
  %3590 = vrot.lane.b32.xlu0 %v2307, 40
  %v3591 = vpop.permute.xlu0 %3590
  %3592 = vrot.lane.b32.xlu0 %v2312, 40
  %v3593 = vpop.permute.xlu0 %3592
  %3594 = vrot.lane.b32.xlu0 %v2317, 40
  %v3595 = vpop.permute.xlu0 %3594
  %3596 = vrot.lane.b32.xlu0 %v2322, 40
  %v3597 = vpop.permute.xlu0 %3596
  %v3602 = vsel %vm422, %v3586, 0
  %v3605 = vsel %vm422, %v3587, 0
  %v3608 = vsel %vm422, %v3588, 0
  %v3611 = vsel %vm422, %v3589, 0
  %v3613 = vsel %vm491, %v3597, 0
  %3615 = vmatprep.subr.mxu0 0.0
  %3616 = vmatpush1.msra.mxu0 %v3591
  %3617 = vmatprep.subr.mxu0 0.0
  %3618 = vmatpush1.msra.mxu0 %v3593
  %3619 = vmatprep.subr.mxu0 0.0
  %3620 = vmatpush1.msra.mxu0 %v3595
  %3621 = vmatprep.subr.mxu0 0.0
  %3622 = vmatpush1.msra.mxu0 %v3613
  %3623 = vmatprep.subr.mxu0 0.0
  %3624 = vmatpush1.msra.mxu0 0.0
  %3625 = vmatprep.subr.mxu0 0.0
  %3626 = vmatpush1.msra.mxu0 0.0
  %3627 = vmatprep.subr.mxu0 0.0
  %3628 = vmatpush1.msra.mxu0 0.0
  %3629 = vmatprep.subr.mxu0 0.0
  %3630 = vmatpush1.msra.mxu0 0.0
  %3631 = vmatprep.subr.mxu0 0.0
  %3632 = vmatpush1.msra.mxu0 0.0
  %3633 = vmatprep.subr.mxu0 0.0
  %3634 = vmatpush1.msra.mxu0 0.0
  %3635 = vmatprep.subr.mxu0 0.0
  %3636 = vmatpush1.msra.mxu0 0.0
  %3637 = vmatprep.subr.mxu0 0.0
  %3638 = vmatpush1.msra.mxu0 0.0
  %3639 = vmatprep.subr.mxu0 0.0
  %3640 = vmatpush1.msra.mxu0 0.0
  %3641 = vmatprep.subr.mxu0 0.0
  %3642 = vmatpush1.msra.mxu0 0.0
  %3643 = vmatprep.subr.mxu0 0.0
  %3644 = vmatpush1.msra.mxu0 0.0
  %3645 = vmatprep.subr.mxu0 0.0
  %3646 = vmatpush1.msra.mxu0 0.0
  %3647 = vmatprep.subr.mxu0 0.0
  %3648 = vmatpush1.msra.mxu0 0.0
  %3649 = vmatprep.subr.mxu0 0.0
  %3650 = vmatpush1.msra.mxu0 0.0
  %3651 = vmatprep.subr.mxu0 0.0
  %3652 = vmatpush1.msra.mxu0 0.0
  %3653 = vmatprep.subr.mxu0 0.0
  %3654 = vmatpush1.msra.mxu0 0.0
  %3655 = vmatprep.subr.mxu0 0.0
  %3656 = vmatpush1.msra.mxu0 0.0
  %3657 = vmatprep.subr.mxu0 0.0
  %3658 = vmatpush1.msra.mxu0 0.0
  %3659 = vmatprep.subr.mxu0 0.0
  %3660 = vmatpush1.msra.mxu0 0.0
  %3661 = vmatprep.subr.mxu0 0.0
  %3662 = vmatpush1.msra.mxu0 0.0
  %3663 = vmatprep.subr.mxu0 0.0
  %3664 = vmatpush1.msra.mxu0 0.0
  %3665 = vmatprep.subr.mxu0 0.0
  %3666 = vmatpush1.msra.mxu0 0.0
  %3667 = vmatprep.subr.mxu0 0.0
  %3668 = vmatpush1.msra.mxu0 0.0
  %3669 = vmatprep.subr.mxu0 0.0
  %3670 = vmatpush1.msra.mxu0 0.0
  %3671 = vmatprep.subr.mxu0 0.0
  %3672 = vmatpush1.msra.mxu0 0.0
  %3673 = vmatprep.subr.mxu0 0.0
  %3674 = vmatpush1.msra.mxu0 0.0
  %3675 = vmatprep.subr.mxu0 0.0
  %3676 = vmatpush1.msra.mxu0 0.0
  %3677 = vmatprep.subr.mxu0 0.0
  %3678 = vmatpush1.msra.mxu0 0.0
  %3679 = vmatprep.mubr.f32.mxu0 0.0
  %3680 = vmatmul.mubr.f32.gmra.mrb[0].mxu0 %v3602
  %v3681 = vpop.f32.mrb[0].mxu0
  %v3682 = vadd.f32 0.0, %v3681
  %v3683 = vpop.f32.mrb[0].mxu0
  %3684 = vmatprep.mubr.f32.mxu0 0.0
  %3685 = vmatmul.mubr.f32.gmra.mrb[0].mxu0 %v3605
  %v3686 = vpop.f32.mrb[0].mxu0
  %v3687 = vadd.f32 0.0, %v3686
  %v3688 = vpop.f32.mrb[0].mxu0
  %3689 = vmatprep.mubr.f32.mxu0 0.0
  %3690 = vmatmul.mubr.f32.gmra.mrb[0].mxu0 %v3608
  %v3691 = vpop.f32.mrb[0].mxu0
  %v3692 = vadd.f32 0.0, %v3691
  %v3693 = vpop.f32.mrb[0].mxu0
  %3694 = vmatprep.mubr.f32.mxu0 0.0
  %3695 = vmatmul.mubr.f32.gmra.mrb[0].mxu0 %v3611
  %v3696 = vpop.f32.mrb[0].mxu0
  %v3697 = vadd.f32 0.0, %v3696
  %v3698 = vpop.f32.mrb[0].mxu0
  %3699 = vdwg.mxu0
  %v3701 = vsel %vm320, %v3682, 0
  %v3704 = vsel %vm320, %v3687, 0
  %v3707 = vsel %vm320, %v3692, 0
  %v3710 = vsel %vm320, %v3697, 0
  %3712 = vmatprep.subr.mxu0 0.0
  %3713 = vmatpush1.msra.mxu0 %v2139
  %3714 = vmatprep.subr.mxu0 0.0
  %3715 = vmatpush1.msra.mxu0 0.0
  %3716 = vmatprep.subr.mxu0 0.0
  %3717 = vmatpush1.msra.mxu0 0.0
  %3718 = vmatprep.subr.mxu0 0.0
  %3719 = vmatpush1.msra.mxu0 0.0
  %3720 = vmatprep.subr.mxu0 0.0
  %3721 = vmatpush1.msra.mxu0 0.0
  %3722 = vmatprep.subr.mxu0 0.0
  %3723 = vmatpush1.msra.mxu0 0.0
  %3724 = vmatprep.subr.mxu0 0.0
  %3725 = vmatpush1.msra.mxu0 0.0
  %3726 = vmatprep.subr.mxu0 0.0
  %3727 = vmatpush1.msra.mxu0 0.0
  %3728 = vmatprep.subr.mxu0 0.0
  %3729 = vmatpush1.msra.mxu0 0.0
  %3730 = vmatprep.subr.mxu0 0.0
  %3731 = vmatpush1.msra.mxu0 0.0
  %3732 = vmatprep.subr.mxu0 0.0
  %3733 = vmatpush1.msra.mxu0 0.0
  %3734 = vmatprep.subr.mxu0 0.0
  %3735 = vmatpush1.msra.mxu0 0.0
  %3736 = vmatprep.subr.mxu0 0.0
  %3737 = vmatpush1.msra.mxu0 0.0
  %3738 = vmatprep.subr.mxu0 0.0
  %3739 = vmatpush1.msra.mxu0 0.0
  %3740 = vmatprep.subr.mxu0 0.0
  %3741 = vmatpush1.msra.mxu0 0.0
  %3742 = vmatprep.subr.mxu0 0.0
  %3743 = vmatpush1.msra.mxu0 0.0
  %3744 = vmatprep.subr.mxu0 0.0
  %3745 = vmatpush1.msra.mxu0 0.0
  %3746 = vmatprep.subr.mxu0 0.0
  %3747 = vmatpush1.msra.mxu0 0.0
  %3748 = vmatprep.subr.mxu0 0.0
  %3749 = vmatpush1.msra.mxu0 0.0
  %3750 = vmatprep.subr.mxu0 0.0
  %3751 = vmatpush1.msra.mxu0 0.0
  %3752 = vmatprep.subr.mxu0 0.0
  %3753 = vmatpush1.msra.mxu0 0.0
  %3754 = vmatprep.subr.mxu0 0.0
  %3755 = vmatpush1.msra.mxu0 0.0
  %3756 = vmatprep.subr.mxu0 0.0
  %3757 = vmatpush1.msra.mxu0 0.0
  %3758 = vmatprep.subr.mxu0 0.0
  %3759 = vmatpush1.msra.mxu0 0.0
  %3760 = vmatprep.subr.mxu0 0.0
  %3761 = vmatpush1.msra.mxu0 0.0
  %3762 = vmatprep.subr.mxu0 0.0
  %3763 = vmatpush1.msra.mxu0 0.0
  %3764 = vmatprep.subr.mxu0 0.0
  %3765 = vmatpush1.msra.mxu0 0.0
  %3766 = vmatprep.subr.mxu0 0.0
  %3767 = vmatpush1.msra.mxu0 0.0
  %3768 = vmatprep.subr.mxu0 0.0
  %3769 = vmatpush1.msra.mxu0 0.0
  %3770 = vmatprep.subr.mxu0 0.0
  %3771 = vmatpush1.msra.mxu0 0.0
  %3772 = vmatprep.subr.mxu0 0.0
  %3773 = vmatpush1.msra.mxu0 0.0
  %3774 = vmatprep.subr.mxu0 0.0
  %3775 = vmatpush1.msra.mxu0 0.0
  %3776 = vmatprep.mubr.f32.mxu0 0.0
  %3777 = vmatmul.mubr.f32.gmra.mrb[0].mxu0 %v3701
  %v3778 = vpop.f32.mrb[0].mxu0
  %v3779 = vadd.f32 0.0, %v3778
  %v3780 = vpop.f32.mrb[0].mxu0
  %3781 = vmatprep.mubr.f32.mxu0 0.0
  %3782 = vmatmul.mubr.f32.gmra.mrb[0].mxu0 %v3704
  %v3783 = vpop.f32.mrb[0].mxu0
  %v3784 = vadd.f32 0.0, %v3783
  %v3785 = vpop.f32.mrb[0].mxu0
  %3786 = vmatprep.mubr.f32.mxu0 0.0
  %3787 = vmatmul.mubr.f32.gmra.mrb[0].mxu0 %v3707
  %v3788 = vpop.f32.mrb[0].mxu0
  %v3789 = vadd.f32 0.0, %v3788
  %v3790 = vpop.f32.mrb[0].mxu0
  %3791 = vmatprep.mubr.f32.mxu0 0.0
  %3792 = vmatmul.mubr.f32.gmra.mrb[0].mxu0 %v3710
  %v3793 = vpop.f32.mrb[0].mxu0
  %v3794 = vadd.f32 0.0, %v3793
  %v3795 = vpop.f32.mrb[0].mxu0
  %3796 = vdwg.mxu0
  %v3797 = vadd.f32 %v3425, %v3779
  %v3798 = vadd.f32 %v3426, %v3784
  %v3799 = vadd.f32 %v3427, %v3789
  %v3800 = vadd.f32 %v3428, %v3794
  %v3801 = vadd.f32 %v2131, %v3797
  %v3802 = vadd.f32 %v2132, %v3798
  %v3803 = vadd.f32 %v2133, %v3799
  %v3804 = vadd.f32 %v2134, %v3800
  %v3805 = vld [vmem:[%s2 + $0xc] sm:$0x1]
  %v3806 = vlaneseq
  %v3807 = vshrl.u32 %v3806, 7
  %v3808 = vsub.s32 0, %v3807
  %v3809 = vrot.slane %v3805, %v3808
  %v3810 = vadd.f32 %v3801, %v3809
  %v3811 = vadd.f32 %v3802, %v3809
  %v3812 = vadd.f32 %v3803, %v3809
  %v3813 = vadd.f32 %v3804, %v3809
  %v3814 = vld [vmem:[%s2 + $0xa] sm:$0x1]
  %v3815 = vld [vmem:[%s2 + $0xb] sm:$0x1]
  %v3816 = vsel %vm38, %v3810, 0.0
  %3817 = vadd.xlane.f32.xlu0 %v3816
  %v3818 = vpop.xlane.xlu0 %3817
  %v3819 = vsel %vm38, %v3811, 0.0
  %3820 = vadd.xlane.f32.xlu0 %v3819
  %v3821 = vpop.xlane.xlu0 %3820
  %v3822 = vsel %vm38, %v3812, 0.0
  %3823 = vadd.xlane.f32.xlu0 %v3822
  %v3824 = vpop.xlane.xlu0 %3823
  %v3825 = vsel %vm48, %v3813, 0.0
  %3826 = vadd.xlane.f32.xlu0 %v3825
  %v3827 = vpop.xlane.xlu0 %3826
  %v3828 = vmul.f32 %v3810, %v3810
  %v3829 = vmul.f32 %v3811, %v3811
  %v3830 = vmul.f32 %v3812, %v3812
  %v3831 = vmul.f32 %v3813, %v3813
  %v3832 = vsel %vm38, %v3828, 0.0
  %3833 = vadd.xlane.f32.xlu0 %v3832
  %v3834 = vpop.xlane.xlu0 %3833
  %v3835 = vsel %vm38, %v3829, 0.0
  %3836 = vadd.xlane.f32.xlu0 %v3835
  %v3837 = vpop.xlane.xlu0 %3836
  %v3838 = vsel %vm38, %v3830, 0.0
  %3839 = vadd.xlane.f32.xlu0 %v3838
  %v3840 = vpop.xlane.xlu0 %3839
  %v3841 = vsel %vm48, %v3831, 0.0
  %3842 = vadd.xlane.f32.xlu0 %v3841
  %v3843 = vpop.xlane.xlu0 %3842
  %v3844 = vmul.f32 %v3818, 0.03125
  %v3845 = vmul.f32 %v3821, 0.03125
  %v3846 = vmul.f32 %v3824, 0.03125
  %v3847 = vmul.f32 %v3827, 0.03125
  %v3848 = vmul.f32 %v3834, 0.03125
  %v3849 = vmul.f32 %v3837, 0.03125
  %v3850 = vmul.f32 %v3840, 0.03125
  %v3851 = vmul.f32 %v3843, 0.03125
  %v3852 = vmul.f32 %v3844, %v3844
  %v3853 = vmul.f32 %v3845, %v3845
  %v3854 = vmul.f32 %v3846, %v3846
  %v3855 = vmul.f32 %v3847, %v3847
  %v3856 = vsub.f32 %v3848, %v3852
  %v3857 = vsub.f32 %v3849, %v3853
  %v3858 = vsub.f32 %v3850, %v3854
  %v3859 = vsub.f32 %v3851, %v3855
  %v3860 = vsub.f32 %v3810, %v3844
  %v3861 = vsub.f32 %v3811, %v3845
  %v3862 = vsub.f32 %v3812, %v3846
  %v3863 = vsub.f32 %v3813, %v3847
  %v3864 = vadd.f32 %v3856, 1e-05
  %v3865 = vadd.f32 %v3857, 1e-05
  %v3866 = vadd.f32 %v3858, 1e-05
  %v3867 = vadd.f32 %v3859, 1e-05
  %v3868 = vrsqrt.pop %v3864
  %v3869 = vrsqrt.pop %v3865
  %v3870 = vrsqrt.pop %v3866
  %v3871 = vrsqrt.pop %v3867
  %v3872 = vmul.f32 %v3860, %v3868
  %v3873 = vmul.f32 %v3861, %v3869
  %v3874 = vmul.f32 %v3862, %v3870
  %v3875 = vmul.f32 %v3863, %v3871
  %v3876 = vlaneseq
  %v3877 = vshrl.u32 %v3876, 7
  %v3878 = vsub.s32 0, %v3877
  %v3879 = vrot.slane %v3814, %v3878
  %v3880 = vmul.f32 %v3872, %v3879
  %v3881 = vmul.f32 %v3873, %v3879
  %v3882 = vmul.f32 %v3874, %v3879
  %v3883 = vmul.f32 %v3875, %v3879
  %v3884 = vlaneseq
  %v3885 = vshrl.u32 %v3884, 7
  %v3886 = vsub.s32 0, %v3885
  %v3887 = vrot.slane %v3815, %v3886
  %v3888 = vadd.f32 %v3880, %v3887
  %v3889 = vadd.f32 %v3881, %v3887
  %v3890 = vadd.f32 %v3882, %v3887
  %v3891 = vadd.f32 %v3883, %v3887
  %s3892 = scalar_lea.vmem %s7, 32
  %v3893 = vld [vmem:[%s3892] sm:$0xff]
  %v3894 = vld [vmem:[%s3892 + $0x8] sm:$0xff]
  %v3895 = vld [vmem:[%s3892 + $0x10] sm:$0xff]
  %v3896 = vld [vmem:[%s3892 + $0x18] sm:$0xff]
  %v3897 = vld [vmem:[%s4 + $0x1] sm:$0x1]
  %v3898 = vlaneseq
  %v3899 = vshrl.u32 %v3898, 7
  %v3900 = vsub.s32 0, %v3899
  %v3901 = vrot.slane %v3897, %v3900
  %v3903 = vsel %vm38, %v3888, 0
  %v3906 = vsel %vm38, %v3889, 0
  %v3909 = vsel %vm38, %v3890, 0
  %v3912 = vsel %vm38, %v3891, 0
  %3914 = vmatprep.subr.mxu0 0.0
  %3915 = vmatpush1.msra.mxu0 %v3893
  %3916 = vmatprep.subr.mxu0 0.0
  %3917 = vmatpush1.msra.mxu0 %v3894
  %3918 = vmatprep.subr.mxu0 0.0
  %3919 = vmatpush1.msra.mxu0 %v3895
  %3920 = vmatprep.subr.mxu0 0.0
  %3921 = vmatpush1.msra.mxu0 %v3896
  %3922 = vmatprep.subr.mxu0 0.0
  %3923 = vmatpush1.msra.mxu0 0.0
  %3924 = vmatprep.subr.mxu0 0.0
  %3925 = vmatpush1.msra.mxu0 0.0
  %3926 = vmatprep.subr.mxu0 0.0
  %3927 = vmatpush1.msra.mxu0 0.0
  %3928 = vmatprep.subr.mxu0 0.0
  %3929 = vmatpush1.msra.mxu0 0.0
  %3930 = vmatprep.subr.mxu0 0.0
  %3931 = vmatpush1.msra.mxu0 0.0
  %3932 = vmatprep.subr.mxu0 0.0
  %3933 = vmatpush1.msra.mxu0 0.0
  %3934 = vmatprep.subr.mxu0 0.0
  %3935 = vmatpush1.msra.mxu0 0.0
  %3936 = vmatprep.subr.mxu0 0.0
  %3937 = vmatpush1.msra.mxu0 0.0
  %3938 = vmatprep.subr.mxu0 0.0
  %3939 = vmatpush1.msra.mxu0 0.0
  %3940 = vmatprep.subr.mxu0 0.0
  %3941 = vmatpush1.msra.mxu0 0.0
  %3942 = vmatprep.subr.mxu0 0.0
  %3943 = vmatpush1.msra.mxu0 0.0
  %3944 = vmatprep.subr.mxu0 0.0
  %3945 = vmatpush1.msra.mxu0 0.0
  %3946 = vmatprep.subr.mxu0 0.0
  %3947 = vmatpush1.msra.mxu0 0.0
  %3948 = vmatprep.subr.mxu0 0.0
  %3949 = vmatpush1.msra.mxu0 0.0
  %3950 = vmatprep.subr.mxu0 0.0
  %3951 = vmatpush1.msra.mxu0 0.0
  %3952 = vmatprep.subr.mxu0 0.0
  %3953 = vmatpush1.msra.mxu0 0.0
  %3954 = vmatprep.subr.mxu0 0.0
  %3955 = vmatpush1.msra.mxu0 0.0
  %3956 = vmatprep.subr.mxu0 0.0
  %3957 = vmatpush1.msra.mxu0 0.0
  %3958 = vmatprep.subr.mxu0 0.0
  %3959 = vmatpush1.msra.mxu0 0.0
  %3960 = vmatprep.subr.mxu0 0.0
  %3961 = vmatpush1.msra.mxu0 0.0
  %3962 = vmatprep.subr.mxu0 0.0
  %3963 = vmatpush1.msra.mxu0 0.0
  %3964 = vmatprep.subr.mxu0 0.0
  %3965 = vmatpush1.msra.mxu0 0.0
  %3966 = vmatprep.subr.mxu0 0.0
  %3967 = vmatpush1.msra.mxu0 0.0
  %3968 = vmatprep.subr.mxu0 0.0
  %3969 = vmatpush1.msra.mxu0 0.0
  %3970 = vmatprep.subr.mxu0 0.0
  %3971 = vmatpush1.msra.mxu0 0.0
  %3972 = vmatprep.subr.mxu0 0.0
  %3973 = vmatpush1.msra.mxu0 0.0
  %3974 = vmatprep.subr.mxu0 0.0
  %3975 = vmatpush1.msra.mxu0 0.0
  %3976 = vmatprep.subr.mxu0 0.0
  %3977 = vmatpush1.msra.mxu0 0.0
  %3978 = vmatprep.mubr.f32.mxu0 0.0
  %3979 = vmatmul.mubr.f32.gmra.mrb[0].mxu0 %v3903
  %v3980 = vpop.f32.mrb[0].mxu0
  %v3981 = vadd.f32 %v3901, %v3980
  %v3982 = vpop.f32.mrb[0].mxu0
  %3983 = vmatprep.mubr.f32.mxu0 0.0
  %3984 = vmatmul.mubr.f32.gmra.mrb[0].mxu0 %v3906
  %v3985 = vpop.f32.mrb[0].mxu0
  %v3986 = vadd.f32 %v3901, %v3985
  %v3987 = vpop.f32.mrb[0].mxu0
  %3988 = vmatprep.mubr.f32.mxu0 0.0
  %3989 = vmatmul.mubr.f32.gmra.mrb[0].mxu0 %v3909
  %v3990 = vpop.f32.mrb[0].mxu0
  %v3991 = vadd.f32 %v3901, %v3990
  %v3992 = vpop.f32.mrb[0].mxu0
  %3993 = vmatprep.mubr.f32.mxu0 0.0
  %3994 = vmatmul.mubr.f32.gmra.mrb[0].mxu0 %v3912
  %v3995 = vpop.f32.mrb[0].mxu0
  %v3996 = vadd.f32 %v3901, %v3995
  %v3997 = vpop.f32.mrb[0].mxu0
  %3998 = vdwg.mxu0
  %v3999 = vmul.f32 %v3981, %v3981
  %v4000 = vmul.f32 %v3986, %v3986
  %v4001 = vmul.f32 %v3991, %v3991
  %v4002 = vmul.f32 %v3996, %v3996
  %v4003 = vmul.f32 %v3981, %v3999
  %v4004 = vmul.f32 %v3986, %v4000
  %v4005 = vmul.f32 %v3991, %v4001
  %v4006 = vmul.f32 %v3996, %v4002
  %v4007 = vmul.f32 %v4003, 0.044715
  %v4008 = vmul.f32 %v4004, 0.044715
  %v4009 = vmul.f32 %v4005, 0.044715
  %v4010 = vmul.f32 %v4006, 0.044715
  %v4011 = vadd.f32 %v3981, %v4007
  %v4012 = vadd.f32 %v3986, %v4008
  %v4013 = vadd.f32 %v3991, %v4009
  %v4014 = vadd.f32 %v3996, %v4010
  %v4015 = vmul.f32 %v4011, 0.7978846
  %v4016 = vmul.f32 %v4012, 0.7978846
  %v4017 = vmul.f32 %v4013, 0.7978846
  %v4018 = vmul.f32 %v4014, 0.7978846
  %v4019 = vtanh.pop %v4015
  %v4020 = vtanh.pop %v4016
  %v4021 = vtanh.pop %v4017
  %v4022 = vtanh.pop %v4018
  %v4023 = vadd.f32 %v4019, 1.0
  %v4024 = vadd.f32 %v4020, 1.0
  %v4025 = vadd.f32 %v4021, 1.0
  %v4026 = vadd.f32 %v4022, 1.0
  %v4027 = vmul.f32 %v4023, 0.5
  %v4028 = vmul.f32 %v4024, 0.5
  %v4029 = vmul.f32 %v4025, 0.5
  %v4030 = vmul.f32 %v4026, 0.5
  %v4031 = vmul.f32 %v3981, %v4027
  %v4032 = vmul.f32 %v3986, %v4028
  %v4033 = vmul.f32 %v3991, %v4029
  %v4034 = vmul.f32 %v3996, %v4030
  %s4035 = scalar_lea.vmem %s8, 128
  %v4036 = vld [vmem:[%s4035] sm:$0xff]
  %v4037 = vld [vmem:[%s4035 + $0x8] sm:$0xff]
  %v4038 = vld [vmem:[%s4035 + $0x10] sm:$0xff]
  %v4039 = vld [vmem:[%s4035 + $0x18] sm:$0xff]
  %v4040 = vld [vmem:[%s4035 + $0x20] sm:$0xff]
  %v4041 = vld [vmem:[%s4035 + $0x28] sm:$0xff]
  %v4042 = vld [vmem:[%s4035 + $0x30] sm:$0xff]
  %v4043 = vld [vmem:[%s4035 + $0x38] sm:$0xff]
  %v4044 = vld [vmem:[%s4035 + $0x40] sm:$0xff]
  %v4045 = vld [vmem:[%s4035 + $0x48] sm:$0xff]
  %v4046 = vld [vmem:[%s4035 + $0x50] sm:$0xff]
  %v4047 = vld [vmem:[%s4035 + $0x58] sm:$0xff]
  %v4048 = vld [vmem:[%s4035 + $0x60] sm:$0xff]
  %v4049 = vld [vmem:[%s4035 + $0x68] sm:$0xff]
  %v4050 = vld [vmem:[%s4035 + $0x70] sm:$0xff]
  %v4051 = vld [vmem:[%s4035 + $0x78] sm:$0xff]
  %4052 = vmatprep.subr.mxu0 0.0
  %4053 = vmatpush1.msra.mxu0 %v4036
  %4054 = vmatprep.subr.mxu0 0.0
  %4055 = vmatpush1.msra.mxu0 %v4037
  %4056 = vmatprep.subr.mxu0 0.0
  %4057 = vmatpush1.msra.mxu0 %v4038
  %4058 = vmatprep.subr.mxu0 0.0
  %4059 = vmatpush1.msra.mxu0 %v4039
  %4060 = vmatprep.subr.mxu0 0.0
  %4061 = vmatpush1.msra.mxu0 %v4040
  %4062 = vmatprep.subr.mxu0 0.0
  %4063 = vmatpush1.msra.mxu0 %v4041
  %4064 = vmatprep.subr.mxu0 0.0
  %4065 = vmatpush1.msra.mxu0 %v4042
  %4066 = vmatprep.subr.mxu0 0.0
  %4067 = vmatpush1.msra.mxu0 %v4043
  %4068 = vmatprep.subr.mxu0 0.0
  %4069 = vmatpush1.msra.mxu0 %v4044
  %4070 = vmatprep.subr.mxu0 0.0
  %4071 = vmatpush1.msra.mxu0 %v4045
  %4072 = vmatprep.subr.mxu0 0.0
  %4073 = vmatpush1.msra.mxu0 %v4046
  %4074 = vmatprep.subr.mxu0 0.0
  %4075 = vmatpush1.msra.mxu0 %v4047
  %4076 = vmatprep.subr.mxu0 0.0
  %4077 = vmatpush1.msra.mxu0 %v4048
  %4078 = vmatprep.subr.mxu0 0.0
  %4079 = vmatpush1.msra.mxu0 %v4049
  %4080 = vmatprep.subr.mxu0 0.0
  %4081 = vmatpush1.msra.mxu0 %v4050
  %4082 = vmatprep.subr.mxu0 0.0
  %4083 = vmatpush1.msra.mxu0 %v4051
  %4084 = vmatprep.subr.mxu0 0.0
  %4085 = vmatpush1.msra.mxu0 0.0
  %4086 = vmatprep.subr.mxu0 0.0
  %4087 = vmatpush1.msra.mxu0 0.0
  %4088 = vmatprep.subr.mxu0 0.0
  %4089 = vmatpush1.msra.mxu0 0.0
  %4090 = vmatprep.subr.mxu0 0.0
  %4091 = vmatpush1.msra.mxu0 0.0
  %4092 = vmatprep.subr.mxu0 0.0
  %4093 = vmatpush1.msra.mxu0 0.0
  %4094 = vmatprep.subr.mxu0 0.0
  %4095 = vmatpush1.msra.mxu0 0.0
  %4096 = vmatprep.subr.mxu0 0.0
  %4097 = vmatpush1.msra.mxu0 0.0
  %4098 = vmatprep.subr.mxu0 0.0
  %4099 = vmatpush1.msra.mxu0 0.0
  %4100 = vmatprep.subr.mxu0 0.0
  %4101 = vmatpush1.msra.mxu0 0.0
  %4102 = vmatprep.subr.mxu0 0.0
  %4103 = vmatpush1.msra.mxu0 0.0
  %4104 = vmatprep.subr.mxu0 0.0
  %4105 = vmatpush1.msra.mxu0 0.0
  %4106 = vmatprep.subr.mxu0 0.0
  %4107 = vmatpush1.msra.mxu0 0.0
  %4108 = vmatprep.subr.mxu0 0.0
  %4109 = vmatpush1.msra.mxu0 0.0
  %4110 = vmatprep.subr.mxu0 0.0
  %4111 = vmatpush1.msra.mxu0 0.0
  %4112 = vmatprep.subr.mxu0 0.0
  %4113 = vmatpush1.msra.mxu0 0.0
  %4114 = vmatprep.subr.mxu0 0.0
  %4115 = vmatpush1.msra.mxu0 0.0
  %4116 = vmatprep.mubr.f32.mxu0 0.0
  %4117 = vmatmul.mubr.f32.gmra.mrb[0].mxu0 %v4031
  %v4118 = vpop.f32.mrb[0].mxu0
  %v4119 = vadd.f32 0.0, %v4118
  %v4120 = vpop.f32.mrb[0].mxu0
  %4121 = vmatprep.mubr.f32.mxu0 0.0
  %4122 = vmatmul.mubr.f32.gmra.mrb[0].mxu0 %v4032
  %v4123 = vpop.f32.mrb[0].mxu0
  %v4124 = vadd.f32 0.0, %v4123
  %v4125 = vpop.f32.mrb[0].mxu0
  %4126 = vmatprep.mubr.f32.mxu0 0.0
  %4127 = vmatmul.mubr.f32.gmra.mrb[0].mxu0 %v4033
  %v4128 = vpop.f32.mrb[0].mxu0
  %v4129 = vadd.f32 0.0, %v4128
  %v4130 = vpop.f32.mrb[0].mxu0
  %4131 = vmatprep.mubr.f32.mxu0 0.0
  %4132 = vmatmul.mubr.f32.gmra.mrb[0].mxu0 %v4034
  %v4133 = vpop.f32.mrb[0].mxu0
  %v4134 = vadd.f32 0.0, %v4133
  %v4135 = vpop.f32.mrb[0].mxu0
  %4136 = vdwg.mxu0
  %v4137 = vadd.f32 %v3810, %v4119
  %v4138 = vadd.f32 %v3811, %v4124
  %v4139 = vadd.f32 %v3812, %v4129
  %v4140 = vadd.f32 %v3813, %v4134
  %v4141 = vld [vmem:[%s2 + $0xd] sm:$0x1]
  %v4142 = vlaneseq
  %v4143 = vshrl.u32 %v4142, 7
  %v4144 = vsub.s32 0, %v4143
  %v4145 = vrot.slane %v4141, %v4144
  %v4146 = vadd.f32 %v4137, %v4145
  %v4147 = vadd.f32 %v4138, %v4145
  %v4148 = vadd.f32 %v4139, %v4145
  %v4149 = vadd.f32 %v4140, %v4145
  %4150 = vst.msk [vmem:[%s9] sm:$0xff] %vm38, %v4146
  %4151 = vst.msk [vmem:[%s9 + $0x8] sm:$0xff] %vm38, %v4147
  %4152 = vst.msk [vmem:[%s9 + $0x10] sm:$0xff] %vm38, %v4148
  %4153 = vst.msk [vmem:[%s9 + $0x18] sm:$0x3] %vm48, %v4149
  // Predicated region
  $region38: #{forward.1} parent=0 // pred_check
    _
  $region39: #{forward.1} parent=0 // pred_check_branch
    %4155 = sbr.rel (0) target = $region41
  $region40: #{forward.1} parent=0 // pred_region
    _
  $region41: #{forward.1} parent=0 // pred_fallthru
    _
  // Predicated region
  $region42: #{forward.1} parent=0 // pred_check
    _
  $region43: #{forward.1} parent=0 // pred_check_branch
    %4157 = sbr.rel (0) target = $region45
  $region44: #{forward.1} parent=0 // pred_region
    _
  $region45: #{forward.1} parent=0 // pred_fallthru
    _

</llo_original>
